<compile_context>
chip_gen: v7x
topology: tpu7x:2x2x1
jax: 0.10.0
libtpu: 0.0.40
codegen_flags: <defaults>
</compile_context>

<pallas_src>
import functools
import math

import jax
import jax.numpy as jnp
from jax.experimental import pallas as pl
from jax.experimental.pallas import tpu as pltpu

_VMEM_LIMIT = 32 * 1024 * 1024  # modest scoped-VMEM; blocks here are small


# ---------------------------------------------------------------------------
# Pallas kernels
# ---------------------------------------------------------------------------
def _conv3x3_accumulate(x_ref, w_ref, row_starts, col_starts, trh, wo):
    """Sum of 9 tap matmuls (trh*wo, Cin) @ (Cin, Cout), f32 accumulation."""
    cin = x_ref.shape[-1]
    cout = w_ref.shape[-1]
    acc = jnp.zeros((trh * wo, cout), jnp.float32)
    for i in range(3):
        for j in range(3):
            rs, cs = row_starts[i], col_starts[j]
            tap = x_ref[rs:rs + trh, cs:cs + wo, :]          # (trh, wo, Cin) bf16
            acc = acc + jnp.dot(tap.reshape(trh * wo, cin), w_ref[i * 3 + j],
                                preferred_element_type=jnp.float32)
    return acc


def _conv3x3_bn_kernel(x_ref, w_ref, b_ref, o_ref, *,
                       row_starts, col_starts, trh, wo, relu):
    cout = o_ref.shape[-1]
    acc = _conv3x3_accumulate(x_ref, w_ref, row_starts, col_starts, trh, wo)
    acc = acc + b_ref[...]                                   # folded BN bias
    if relu:
        acc = jnp.maximum(acc, 0.0)
    o_ref[...] = acc.reshape(trh, wo, cout).astype(o_ref.dtype)


def _conv3x3_bn_psum_kernel(x_ref, w_ref, b_ref, o_ref, ps_ref, *,
                            row_starts, col_starts, trh, wo):
    # conv + folded BN (no relu) + partial spatial sum for the fused ECA
    # average pool.  ps_ref is a revisited accumulator over the row-tile axis.
    cout = o_ref.shape[-1]
    acc = _conv3x3_accumulate(x_ref, w_ref, row_starts, col_starts, trh, wo)
    acc = acc + b_ref[...]

    @pl.when(pl.program_id(1) == 0)
    def _():
        ps_ref[...] = jnp.zeros_like(ps_ref)

    ps_ref[...] += jnp.sum(acc, axis=0, keepdims=True)       # (1, Cout) f32
    o_ref[...] = acc.reshape(trh, wo, cout).astype(o_ref.dtype)


def _eca_attention(ps_ref, band_ref):
    # attention = sigmoid(conv1d_k(avgpool(y2))); the 1-D conv and the 1/(H*W)
    # mean factor are pre-folded into the (C, C) band matrix.  Tiny matmul,
    # recomputed per tile to keep the tail a single fused kernel.
    a = jnp.dot(ps_ref[...], band_ref[...], preferred_element_type=jnp.float32)
    return 1.0 / (1.0 + jnp.exp(-a))                          # (1, C) f32


def _tail_identity_kernel(ps_ref, band_ref, y_ref, x_ref, o_ref, *, trh, wo):
    # out = relu(y2 * attention + x)            (identity shortcut)
    c = o_ref.shape[-1]
    att = _eca_attention(ps_ref, band_ref)
    y = y_ref[...].reshape(trh * wo, c).astype(jnp.float32) * att
    sc = x_ref[...].reshape(trh * wo, c).astype(jnp.float32)
    o_ref[...] = jnp.maximum(y + sc, 0.0).reshape(trh, wo, c).astype(o_ref.dtype)


def _tail_downsample_kernel(ps_ref, band_ref, y_ref, xs_ref, wd_ref, bd_ref,
                            o_ref, *, trh, wo):
    # out = relu(y2 * attention + (x_sub @ Wd + bd))   (1x1 conv + folded BN)
    c = o_ref.shape[-1]
    cin = xs_ref.shape[-1]
    att = _eca_attention(ps_ref, band_ref)
    y = y_ref[...].reshape(trh * wo, c).astype(jnp.float32) * att
    sc = jnp.dot(xs_ref[...].reshape(trh * wo, cin), wd_ref[...],
                 preferred_element_type=jnp.float32) + bd_ref[...]
    o_ref[...] = jnp.maximum(y + sc, 0.0).reshape(trh, wo, c).astype(o_ref.dtype)


# ---------------------------------------------------------------------------
# Wrappers (plain-JAX glue: padding, halo windows, BN folding)
# ---------------------------------------------------------------------------
def _build_row_windows(xp, stride, row_tile, rt):
    """(N, Hp, Wc, C) padded (phase-reordered for s=2) -> (N, RT, L, Wc, C)."""
    wins = []
    for r in range(rt):
        base = r * row_tile * stride
        if stride == 1:
            wins.append(xp[:, base:base + row_tile + 2])
        else:  # stride == 2: even-offset rows first, then odd-offset rows
            even = xp[:, base:base + 2 * row_tile + 1:2]     # row_tile + 1 rows
            odd = xp[:, base + 1:base + 2 * row_tile:2]      # row_tile rows
            wins.append(jnp.concatenate([even, odd], axis=1))
    return jnp.stack(wins, axis=1)


def conv3x3_bn(x, w, scale, bias, *, stride, relu, row_tile, with_psum=False):
    """3x3 conv (pad 1, stride 1/2, no conv bias) + folded BN [+ ReLU].

    If with_psum, also returns the per-(batch, channel) spatial sum of the f32
    pre-cast result (for the fused ECA average pool).
    """
    assert stride in (1, 2), "only ResNet strides 1 / 2 are supported"
    n, h, wdim, cin = x.shape
    cout = w.shape[0]
    ho = (h - 1) // stride + 1
    wo = (wdim - 1) // stride + 1
    assert ho % row_tile == 0, (ho, row_tile)
    rt = ho // row_tile
    win_rows = (row_tile - 1) * stride + 3
    wp = wdim + 2

    xp = jnp.pad(x.astype(jnp.bfloat16), ((0, 0), (1, 1), (1, 1), (0, 0)))
    if stride == 2:
        # Even/odd column-phase reorder: resolves the per-tap column stride in
        # the wrapper (1x data) so the kernel only needs contiguous slices.
        wpe = (wp + 1) // 2
        xp = jnp.concatenate([xp[:, :, 0::2, :], xp[:, :, 1::2, :]], axis=2)
        row_starts = (0, row_tile + 1, 1)
        col_starts = (0, wpe, 1)
    else:
        row_starts = (0, 1, 2)
        col_starts = (0, 1, 2)

    # Halo'd row windows: ~win_rows/(row_tile*stride) duplication, not 9x im2col.
    xw = _build_row_windows(xp, stride, row_tile, rt)  # (n, rt, win_rows, wp, cin)

    # Fold the BN scale into the weight taps; bf16 matmul operands.
    wt = jnp.transpose(w, (2, 3, 1, 0)).reshape(9, cin, cout)
    wt = (wt * scale.reshape(1, 1, cout)).astype(jnp.bfloat16)
    b2 = bias.reshape(1, cout).astype(jnp.float32)

    grid = (n, rt)
    x_spec = pl.BlockSpec((None, None, win_rows, wp, cin),
                          lambda i, r: (i, r, 0, 0, 0))
    w_spec = pl.BlockSpec((9, cin, cout), lambda i, r: (0, 0, 0))
    b_spec = pl.BlockSpec((1, cout), lambda i, r: (0, 0))
    y_spec = pl.BlockSpec((None, row_tile, wo, cout), lambda i, r: (i, r, 0, 0))

    if not with_psum:
        kern = functools.partial(_conv3x3_bn_kernel, row_starts=row_starts,
                                 col_starts=col_starts, trh=row_tile, wo=wo,
                                 relu=relu)
        return pl.pallas_call(
            kern,
            grid=grid,
            in_specs=[x_spec, w_spec, b_spec],
            out_specs=y_spec,
            out_shape=jax.ShapeDtypeStruct((n, ho, wo, cout), jnp.bfloat16),
            compiler_params=pltpu.CompilerParams(
                dimension_semantics=("parallel", "parallel"),
                vmem_limit_bytes=_VMEM_LIMIT),
        )(xw, wt, b2)

    kern = functools.partial(_conv3x3_bn_psum_kernel, row_starts=row_starts,
                             col_starts=col_starts, trh=row_tile, wo=wo)
    ps_spec = pl.BlockSpec((None, 1, cout), lambda i, r: (i, 0, 0))
    y2, psum = pl.pallas_call(
        kern,
        grid=grid,
        in_specs=[x_spec, w_spec, b_spec],
        out_specs=(y_spec, ps_spec),
        out_shape=(jax.ShapeDtypeStruct((n, ho, wo, cout), jnp.bfloat16),
                   jax.ShapeDtypeStruct((n, 1, cout), jnp.float32)),
        compiler_params=pltpu.CompilerParams(
            # row-tile axis accumulates into the psum output block
            dimension_semantics=("parallel", "arbitrary"),
            vmem_limit_bytes=_VMEM_LIMIT),
    )(xw, wt, b2)
    return y2, psum


def _eca_kernel_size(c, b=1, gamma=2):
    t = int(abs((math.log2(c) + b) / gamma))
    return t if t % 2 else t + 1


def _eca_band_matrix(w1d, c):
    """(C, C) banded matrix equivalent to Conv1d(1, 1, k, pad=k//2, bias=False)."""
    k = w1d.shape[0]
    p = k // 2
    i = jnp.arange(c)[:, None]
    j = jnp.arange(c)[None, :]
    d = i - j + p
    valid = (d >= 0) & (d < k)
    return jnp.where(valid, w1d[jnp.clip(d, 0, k - 1)], 0.0).astype(jnp.float32)


def _tail_specs(n, ho, wo, c, row_tile):
    grid = (n, ho // row_tile)
    y_spec = pl.BlockSpec((None, row_tile, wo, c), lambda i, r: (i, r, 0, 0))
    ps_spec = pl.BlockSpec((None, 1, c), lambda i, r: (i, 0, 0))
    band_spec = pl.BlockSpec((c, c), lambda i, r: (0, 0))
    return grid, y_spec, ps_spec, band_spec


def tail_identity(psum, band, y2, x, *, row_tile):
    n, ho, wo, c = y2.shape
    grid, y_spec, ps_spec, band_spec = _tail_specs(n, ho, wo, c, row_tile)
    # NOTE: input_output_aliases not used -- the bf16 y2 activation and the
    # f32 output have different dtypes, so aliasing is not possible.
    return pl.pallas_call(
        functools.partial(_tail_identity_kernel, trh=row_tile, wo=wo),
        grid=grid,
        in_specs=[ps_spec, band_spec, y_spec, y_spec],
        out_specs=y_spec,
        out_shape=jax.ShapeDtypeStruct((n, ho, wo, c), jnp.float32),
        compiler_params=pltpu.CompilerParams(
            dimension_semantics=("parallel", "parallel"),
            vmem_limit_bytes=_VMEM_LIMIT),
    )(psum, band, y2, x)


def tail_downsample(psum, band, y2, xs, wd, bd, *, row_tile):
    n, ho, wo, c = y2.shape
    cin = xs.shape[-1]
    grid, y_spec, ps_spec, band_spec = _tail_specs(n, ho, wo, c, row_tile)
    xs_spec = pl.BlockSpec((None, row_tile, wo, cin), lambda i, r: (i, r, 0, 0))
    wd_spec = pl.BlockSpec((cin, c), lambda i, r: (0, 0))
    bd_spec = pl.BlockSpec((1, c), lambda i, r: (0, 0))
    return pl.pallas_call(
        functools.partial(_tail_downsample_kernel, trh=row_tile, wo=wo),
        grid=grid,
        in_specs=[ps_spec, band_spec, y_spec, xs_spec, wd_spec, bd_spec],
        out_specs=y_spec,
        out_shape=jax.ShapeDtypeStruct((n, ho, wo, c), jnp.float32),
        compiler_params=pltpu.CompilerParams(
            dimension_semantics=("parallel", "parallel"),
            vmem_limit_bytes=_VMEM_LIMIT),
    )(psum, band, y2, xs, wd, bd)


# ---------------------------------------------------------------------------
# Parameters (deterministic, synthetic) and forward pass
# ---------------------------------------------------------------------------
def init_params(key, in_planes, planes, stride):
    ks = jax.random.split(key, 8)

    def conv_w(k, cout, cin, kh, kw):
        fan_in = cin * kh * kw
        return jax.random.normal(k, (cout, cin, kh, kw), jnp.float32) * (
            (2.0 / fan_in) ** 0.5)

    def bn(k, c):
        k1, k2, k3 = jax.random.split(k, 3)
        return {
            "gamma": 1.0 + 0.1 * jax.random.normal(k1, (c,), jnp.float32),
            "beta": 0.1 * jax.random.normal(k2, (c,), jnp.float32),
            "mean": 0.1 * jax.random.normal(k3, (c,), jnp.float32),
            "var": jnp.ones((c,), jnp.float32),
        }

    k_eca = _eca_kernel_size(planes)
    p = {
        "conv1_w": conv_w(ks[0], planes, in_planes, 3, 3),
        "bn1": bn(ks[1], planes),
        "conv2_w": conv_w(ks[2], planes, planes, 3, 3),
        "bn2": bn(ks[3], planes),
        "eca_w": jax.random.normal(ks[4], (k_eca,), jnp.float32)
                 * (1.0 / k_eca) ** 0.5,
    }
    if stride != 1 or in_planes != planes:
        p["ds_w"] = conv_w(ks[5], planes, in_planes, 1, 1)
        p["ds_bn"] = bn(ks[6], planes)
    return p


def _fold_bn(bn, eps=1e-5):
    scale = bn["gamma"] / jnp.sqrt(bn["var"] + eps)
    bias = bn["beta"] - bn["mean"] * scale
    return scale, bias


def _pick_row_tile(ho, wo, target_m=512):
    # Largest divisor of Ho whose tile has <= ~target_m output positions.
    best = 1
    for d in range(1, ho + 1):
        if ho % d == 0 and d * wo <= max(target_m, wo):
            best = d
    return best


def basic_block_forward(params, x_nchw, *, stride, row_tile=None):
    x = jnp.transpose(x_nchw, (0, 2, 3, 1)).astype(jnp.float32)  # NCHW -> NHWC
    n, h, w, in_planes = x.shape
    planes = params["conv1_w"].shape[0]
    ho = (h - 1) // stride + 1
    wo = (w - 1) // stride + 1
    if row_tile is None:
        row_tile = _pick_row_tile(ho, wo)
    assert ho % row_tile == 0, (ho, row_tile)

    # conv1 -> bn1 -> relu
    s1, b1 = _fold_bn(params["bn1"])
    y1 = conv3x3_bn(x, params["conv1_w"], s1, b1, stride=stride, relu=True,
                    row_tile=row_tile)

    # conv2 -> bn2 (+ fused spatial sum for the ECA average pool)
    s2, b2 = _fold_bn(params["bn2"])
    y2, psum = conv3x3_bn(y1, params["conv2_w"], s2, b2, stride=1, relu=False,
                          row_tile=row_tile, with_psum=True)

    # ECA band matrix with the 1/(Ho*Wo) mean factor folded in; the attention
    # itself (band matmul + sigmoid) is fused into the tail kernel.
    band = _eca_band_matrix(params["eca_w"], planes) * (1.0 / (ho * wo))

    # Fused tail: sigmoid(psum @ band) * y2 + shortcut(x), ReLU.
    downsample = (stride != 1) or (in_planes != planes)
    if downsample:
        sd, bd = _fold_bn(params["ds_bn"])
        wd = (params["ds_w"][:, :, 0, 0].T * sd[None, :]).astype(jnp.bfloat16)
        bd2 = bd.reshape(1, planes).astype(jnp.float32)
        xs = x[:, ::stride, ::stride, :].astype(jnp.bfloat16)  # 1x1/s subsample
        out = tail_downsample(psum, band, y2, xs, wd, bd2, row_tile=row_tile)
    else:
        out = tail_identity(psum, band, y2, x, row_tile=row_tile)

    return jnp.transpose(out, (0, 3, 1, 2))                  # NHWC -> NCHW


# ---------------------------------------------------------------------------
# Matched-precision pure-JAX reference (bf16 matmul operands, f32 accumulate)
# ---------------------------------------------------------------------------
def reference_forward(params, x_nchw, *, stride):
    x = jnp.transpose(x_nchw, (0, 2, 3, 1)).astype(jnp.float32)
    planes = params["conv1_w"].shape[0]
    in_planes = x.shape[-1]

    def conv_bn(inp, w, bn, s, relu):
        scale, bias = _fold_bn(bn)
        wt = (jnp.transpose(w, (2, 3, 1, 0))
              * scale.reshape(1, 1, 1, -1)).astype(jnp.bfloat16)
        y = jax.lax.conv_general_dilated(
            inp.astype(jnp.bfloat16), wt, window_strides=(s, s),
            padding=((1, 1), (1, 1)),
            dimension_numbers=("NHWC", "HWIO", "NHWC"),
            preferred_element_type=jnp.float32)
        y = y + bias.reshape(1, 1, 1, -1)
        return jnp.maximum(y, 0.0) if relu else y

    y1 = conv_bn(x, params["conv1_w"], params["bn1"], stride, True)
    y1 = y1.astype(jnp.bfloat16).astype(jnp.float32)
    y2 = conv_bn(y1, params["conv2_w"], params["bn2"], 1, False)

    ho, wo = y2.shape[1], y2.shape[2]
    band = _eca_band_matrix(params["eca_w"], planes)
    pooled = jnp.sum(y2, axis=(1, 2)) * (1.0 / (ho * wo))      # (n, c), f32
    att = 1.0 / (1.0 + jnp.exp(-(pooled @ band)))              # (n, c)

    y2b = y2.astype(jnp.bfloat16).astype(jnp.float32)
    out = y2b * att[:, None, None, :]

    if stride != 1 or in_planes != planes:
        sd, bd = _fold_bn(params["ds_bn"])
        wd = (params["ds_w"][:, :, 0, 0].T * sd[None, :]).astype(jnp.bfloat16)
        xs = x[:, ::stride, ::stride, :].astype(jnp.bfloat16)
        sc = jnp.einsum("nhwc,cd->nhwd", xs, wd,
                        preferred_element_type=jnp.float32) + bd.reshape(1, 1, 1, -1)
    else:
        sc = x
    out = jnp.maximum(out + sc, 0.0)
    return jnp.transpose(out, (0, 3, 1, 2))


if __name__ == "__main__":
    key = jax.random.PRNGKey(0)
    kp, kx = jax.random.split(key)

    # Config 1: downsample block (64 -> 128 planes, stride 2). Cout=128 keeps
    # conv output stores lane-dense; row_tile=4 forces a multi-tile grid so
    # the pipelined / psum-accumulator paths are exercised.
    in_planes, planes, stride = 64, 128, 2
    params = init_params(kp, in_planes, planes, stride)
    x = jax.random.normal(kx, (2, in_planes, 16, 16), jnp.float32)
    fwd = jax.jit(functools.partial(basic_block_forward, stride=stride,
                                    row_tile=4))
    out = fwd(params, x)
    jax.block_until_ready(out)
    assert out.shape == (2, planes, 8, 8), out.shape
    assert bool(jnp.all(jnp.isfinite(out)))
    assert bool(jnp.all(out >= 0.0))  # final ReLU
    ref = reference_forward(params, x, stride=stride)
    err = float(jnp.max(jnp.abs(out - ref)))
    assert err < 5e-2, f"config1 max abs err {err}"

    # Config 2: identity-shortcut block (64 -> 64, stride 1).
    # TODO(synk): Cout=64 output stores are not lane-dense (masked vst);
    # padding channels to 128 would be a further optimization.
    params2 = init_params(kp, 64, 64, 1)
    x2 = jax.random.normal(kx, (2, 64, 16, 16), jnp.float32)
    fwd2 = jax.jit(functools.partial(basic_block_forward, stride=1,
                                     row_tile=4))
    out2 = fwd2(params2, x2)
    jax.block_until_ready(out2)
    assert out2.shape == (2, 64, 16, 16), out2.shape
    assert bool(jnp.all(jnp.isfinite(out2)))
    assert bool(jnp.all(out2 >= 0.0))
    ref2 = reference_forward(params2, x2, stride=1)
    err2 = float(jnp.max(jnp.abs(out2 - ref2)))
    assert err2 < 5e-2, f"config2 max abs err {err2}"

    print("KERNEL_OK")
</pallas_src>

<mosaic_0001>
module attributes {stable_mosaic.version = 11 : i64} {
  func.func @_conv3x3_bn_kernel(%arg0: i32, %arg1: i32, %arg2: memref<1x1x9x18x64xbf16, #tpu.memory_space<vmem>>, %arg3: memref<9x64x128xbf16, #tpu.memory_space<vmem>>, %arg4: memref<1x128xf32, #tpu.memory_space<vmem>>, %arg5: memref<1x4x8x128xbf16, #tpu.memory_space<vmem>>) attributes {dimension_semantics = [#tpu.dimension_semantics<parallel>, #tpu.dimension_semantics<parallel>], iteration_bounds = array<i64: 2, 2>, scalar_prefetch = 0 : i64, scratch_operands = 0 : i64, tpu.core_type = #tpu.core_type<tc>, window_params = [{transform_indices = @transform_0, window_bounds = array<i64: 1, 1, 9, 18, 64>}, {pipeline_mode = #tpu.pipeline_mode<synchronous>, transform_indices = @transform_1, window_bounds = array<i64: 9, 64, 128>}, {pipeline_mode = #tpu.pipeline_mode<synchronous>, transform_indices = @transform_2, window_bounds = array<i64: 1, 128>}, {transform_indices = @transform_3, window_bounds = array<i64: 1, 4, 8, 128>}]} {
    %cst = arith.constant 0.000000e+00 : f32
    %0 = vector.broadcast %cst : f32 to vector<32x128xf32>
    %c0 = arith.constant 0 : index
    %c0_0 = arith.constant 0 : index
    %c0_1 = arith.constant 0 : index
    %c0_2 = arith.constant 0 : index
    %c0_3 = arith.constant 0 : index
    %1 = vector.load %arg2[%c0, %c0_0, %c0_1, %c0_2, %c0_3] : memref<1x1x9x18x64xbf16, #tpu.memory_space<vmem>>, vector<1x1x4x8x64xbf16>
    %2 = vector.shape_cast %1 : vector<1x1x4x8x64xbf16> to vector<4x8x64xbf16>
    %3 = vector.shape_cast %2 : vector<4x8x64xbf16> to vector<32x64xbf16>
    %c0_4 = arith.constant 0 : index
    %c0_5 = arith.constant 0 : index
    %c0_6 = arith.constant 0 : index
    %4 = vector.load %arg3[%c0_4, %c0_5, %c0_6] : memref<9x64x128xbf16, #tpu.memory_space<vmem>>, vector<1x64x128xbf16>
    %5 = vector.shape_cast %4 : vector<1x64x128xbf16> to vector<64x128xbf16>
    %cst_7 = arith.constant dense<0.000000e+00> : vector<32x128xf32>
    %6 = tpu.matmul %3, %5, %cst_7 {dimension_numbers = #tpu.dot_dimension_numbers<[1], [0], [0], [1], [0, 0, 1, 1], [], []>} : vector<32x64xbf16>, vector<64x128xbf16>, vector<32x128xf32> -> vector<32x128xf32>
    %7 = arith.addf %0, %6 : vector<32x128xf32>
    %c0_8 = arith.constant 0 : index
    %c0_9 = arith.constant 0 : index
    %c0_10 = arith.constant 0 : index
    %c9 = arith.constant 9 : index
    %c0_11 = arith.constant 0 : index
    %8 = vector.load %arg2[%c0_8, %c0_9, %c0_10, %c9, %c0_11] : memref<1x1x9x18x64xbf16, #tpu.memory_space<vmem>>, vector<1x1x4x8x64xbf16>
    %9 = vector.shape_cast %8 : vector<1x1x4x8x64xbf16> to vector<4x8x64xbf16>
    %10 = vector.shape_cast %9 : vector<4x8x64xbf16> to vector<32x64xbf16>
    %c1 = arith.constant 1 : index
    %c0_12 = arith.constant 0 : index
    %c0_13 = arith.constant 0 : index
    %11 = vector.load %arg3[%c1, %c0_12, %c0_13] : memref<9x64x128xbf16, #tpu.memory_space<vmem>>, vector<1x64x128xbf16>
    %12 = vector.shape_cast %11 : vector<1x64x128xbf16> to vector<64x128xbf16>
    %cst_14 = arith.constant dense<0.000000e+00> : vector<32x128xf32>
    %13 = tpu.matmul %10, %12, %cst_14 {dimension_numbers = #tpu.dot_dimension_numbers<[1], [0], [0], [1], [0, 0, 1, 1], [], []>} : vector<32x64xbf16>, vector<64x128xbf16>, vector<32x128xf32> -> vector<32x128xf32>
    %14 = arith.addf %7, %13 : vector<32x128xf32>
    %c0_15 = arith.constant 0 : index
    %c0_16 = arith.constant 0 : index
    %c0_17 = arith.constant 0 : index
    %c1_18 = arith.constant 1 : index
    %c0_19 = arith.constant 0 : index
    %15 = vector.load %arg2[%c0_15, %c0_16, %c0_17, %c1_18, %c0_19] : memref<1x1x9x18x64xbf16, #tpu.memory_space<vmem>>, vector<1x1x4x8x64xbf16>
    %16 = vector.shape_cast %15 : vector<1x1x4x8x64xbf16> to vector<4x8x64xbf16>
    %17 = vector.shape_cast %16 : vector<4x8x64xbf16> to vector<32x64xbf16>
    %c2 = arith.constant 2 : index
    %c0_20 = arith.constant 0 : index
    %c0_21 = arith.constant 0 : index
    %18 = vector.load %arg3[%c2, %c0_20, %c0_21] : memref<9x64x128xbf16, #tpu.memory_space<vmem>>, vector<1x64x128xbf16>
    %19 = vector.shape_cast %18 : vector<1x64x128xbf16> to vector<64x128xbf16>
    %cst_22 = arith.constant dense<0.000000e+00> : vector<32x128xf32>
    %20 = tpu.matmul %17, %19, %cst_22 {dimension_numbers = #tpu.dot_dimension_numbers<[1], [0], [0], [1], [0, 0, 1, 1], [], []>} : vector<32x64xbf16>, vector<64x128xbf16>, vector<32x128xf32> -> vector<32x128xf32>
    %21 = arith.addf %14, %20 : vector<32x128xf32>
    %c0_23 = arith.constant 0 : index
    %c0_24 = arith.constant 0 : index
    %c5 = arith.constant 5 : index
    %c0_25 = arith.constant 0 : index
    %c0_26 = arith.constant 0 : index
    %22 = vector.load %arg2[%c0_23, %c0_24, %c5, %c0_25, %c0_26] : memref<1x1x9x18x64xbf16, #tpu.memory_space<vmem>>, vector<1x1x4x8x64xbf16>
    %23 = vector.shape_cast %22 : vector<1x1x4x8x64xbf16> to vector<4x8x64xbf16>
    %24 = vector.shape_cast %23 : vector<4x8x64xbf16> to vector<32x64xbf16>
    %c3 = arith.constant 3 : index
    %c0_27 = arith.constant 0 : index
    %c0_28 = arith.constant 0 : index
    %25 = vector.load %arg3[%c3, %c0_27, %c0_28] : memref<9x64x128xbf16, #tpu.memory_space<vmem>>, vector<1x64x128xbf16>
    %26 = vector.shape_cast %25 : vector<1x64x128xbf16> to vector<64x128xbf16>
    %cst_29 = arith.constant dense<0.000000e+00> : vector<32x128xf32>
    %27 = tpu.matmul %24, %26, %cst_29 {dimension_numbers = #tpu.dot_dimension_numbers<[1], [0], [0], [1], [0, 0, 1, 1], [], []>} : vector<32x64xbf16>, vector<64x128xbf16>, vector<32x128xf32> -> vector<32x128xf32>
    %28 = arith.addf %21, %27 : vector<32x128xf32>
    %c0_30 = arith.constant 0 : index
    %c0_31 = arith.constant 0 : index
    %c5_32 = arith.constant 5 : index
    %c9_33 = arith.constant 9 : index
    %c0_34 = arith.constant 0 : index
    %29 = vector.load %arg2[%c0_30, %c0_31, %c5_32, %c9_33, %c0_34] : memref<1x1x9x18x64xbf16, #tpu.memory_space<vmem>>, vector<1x1x4x8x64xbf16>
    %30 = vector.shape_cast %29 : vector<1x1x4x8x64xbf16> to vector<4x8x64xbf16>
    %31 = vector.shape_cast %30 : vector<4x8x64xbf16> to vector<32x64xbf16>
    %c4 = arith.constant 4 : index
    %c0_35 = arith.constant 0 : index
    %c0_36 = arith.constant 0 : index
    %32 = vector.load %arg3[%c4, %c0_35, %c0_36] : memref<9x64x128xbf16, #tpu.memory_space<vmem>>, vector<1x64x128xbf16>
    %33 = vector.shape_cast %32 : vector<1x64x128xbf16> to vector<64x128xbf16>
    %cst_37 = arith.constant dense<0.000000e+00> : vector<32x128xf32>
    %34 = tpu.matmul %31, %33, %cst_37 {dimension_numbers = #tpu.dot_dimension_numbers<[1], [0], [0], [1], [0, 0, 1, 1], [], []>} : vector<32x64xbf16>, vector<64x128xbf16>, vector<32x128xf32> -> vector<32x128xf32>
    %35 = arith.addf %28, %34 : vector<32x128xf32>
    %c0_38 = arith.constant 0 : index
    %c0_39 = arith.constant 0 : index
    %c5_40 = arith.constant 5 : index
    %c1_41 = arith.constant 1 : index
    %c0_42 = arith.constant 0 : index
    %36 = vector.load %arg2[%c0_38, %c0_39, %c5_40, %c1_41, %c0_42] : memref<1x1x9x18x64xbf16, #tpu.memory_space<vmem>>, vector<1x1x4x8x64xbf16>
    %37 = vector.shape_cast %36 : vector<1x1x4x8x64xbf16> to vector<4x8x64xbf16>
    %38 = vector.shape_cast %37 : vector<4x8x64xbf16> to vector<32x64xbf16>
    %c5_43 = arith.constant 5 : index
    %c0_44 = arith.constant 0 : index
    %c0_45 = arith.constant 0 : index
    %39 = vector.load %arg3[%c5_43, %c0_44, %c0_45] : memref<9x64x128xbf16, #tpu.memory_space<vmem>>, vector<1x64x128xbf16>
    %40 = vector.shape_cast %39 : vector<1x64x128xbf16> to vector<64x128xbf16>
    %cst_46 = arith.constant dense<0.000000e+00> : vector<32x128xf32>
    %41 = tpu.matmul %38, %40, %cst_46 {dimension_numbers = #tpu.dot_dimension_numbers<[1], [0], [0], [1], [0, 0, 1, 1], [], []>} : vector<32x64xbf16>, vector<64x128xbf16>, vector<32x128xf32> -> vector<32x128xf32>
    %42 = arith.addf %35, %41 : vector<32x128xf32>
    %c0_47 = arith.constant 0 : index
    %c0_48 = arith.constant 0 : index
    %c1_49 = arith.constant 1 : index
    %c0_50 = arith.constant 0 : index
    %c0_51 = arith.constant 0 : index
    %43 = vector.load %arg2[%c0_47, %c0_48, %c1_49, %c0_50, %c0_51] : memref<1x1x9x18x64xbf16, #tpu.memory_space<vmem>>, vector<1x1x4x8x64xbf16>
    %44 = vector.shape_cast %43 : vector<1x1x4x8x64xbf16> to vector<4x8x64xbf16>
    %45 = vector.shape_cast %44 : vector<4x8x64xbf16> to vector<32x64xbf16>
    %c6 = arith.constant 6 : index
    %c0_52 = arith.constant 0 : index
    %c0_53 = arith.constant 0 : index
    %46 = vector.load %arg3[%c6, %c0_52, %c0_53] : memref<9x64x128xbf16, #tpu.memory_space<vmem>>, vector<1x64x128xbf16>
    %47 = vector.shape_cast %46 : vector<1x64x128xbf16> to vector<64x128xbf16>
    %cst_54 = arith.constant dense<0.000000e+00> : vector<32x128xf32>
    %48 = tpu.matmul %45, %47, %cst_54 {dimension_numbers = #tpu.dot_dimension_numbers<[1], [0], [0], [1], [0, 0, 1, 1], [], []>} : vector<32x64xbf16>, vector<64x128xbf16>, vector<32x128xf32> -> vector<32x128xf32>
    %49 = arith.addf %42, %48 : vector<32x128xf32>
    %c0_55 = arith.constant 0 : index
    %c0_56 = arith.constant 0 : index
    %c1_57 = arith.constant 1 : index
    %c9_58 = arith.constant 9 : index
    %c0_59 = arith.constant 0 : index
    %50 = vector.load %arg2[%c0_55, %c0_56, %c1_57, %c9_58, %c0_59] : memref<1x1x9x18x64xbf16, #tpu.memory_space<vmem>>, vector<1x1x4x8x64xbf16>
    %51 = vector.shape_cast %50 : vector<1x1x4x8x64xbf16> to vector<4x8x64xbf16>
    %52 = vector.shape_cast %51 : vector<4x8x64xbf16> to vector<32x64xbf16>
    %c7 = arith.constant 7 : index
    %c0_60 = arith.constant 0 : index
    %c0_61 = arith.constant 0 : index
    %53 = vector.load %arg3[%c7, %c0_60, %c0_61] : memref<9x64x128xbf16, #tpu.memory_space<vmem>>, vector<1x64x128xbf16>
    %54 = vector.shape_cast %53 : vector<1x64x128xbf16> to vector<64x128xbf16>
    %cst_62 = arith.constant dense<0.000000e+00> : vector<32x128xf32>
    %55 = tpu.matmul %52, %54, %cst_62 {dimension_numbers = #tpu.dot_dimension_numbers<[1], [0], [0], [1], [0, 0, 1, 1], [], []>} : vector<32x64xbf16>, vector<64x128xbf16>, vector<32x128xf32> -> vector<32x128xf32>
    %56 = arith.addf %49, %55 : vector<32x128xf32>
    %c0_63 = arith.constant 0 : index
    %c0_64 = arith.constant 0 : index
    %c1_65 = arith.constant 1 : index
    %c1_66 = arith.constant 1 : index
    %c0_67 = arith.constant 0 : index
    %57 = vector.load %arg2[%c0_63, %c0_64, %c1_65, %c1_66, %c0_67] : memref<1x1x9x18x64xbf16, #tpu.memory_space<vmem>>, vector<1x1x4x8x64xbf16>
    %58 = vector.shape_cast %57 : vector<1x1x4x8x64xbf16> to vector<4x8x64xbf16>
    %59 = vector.shape_cast %58 : vector<4x8x64xbf16> to vector<32x64xbf16>
    %c8 = arith.constant 8 : index
    %c0_68 = arith.constant 0 : index
    %c0_69 = arith.constant 0 : index
    %60 = vector.load %arg3[%c8, %c0_68, %c0_69] : memref<9x64x128xbf16, #tpu.memory_space<vmem>>, vector<1x64x128xbf16>
    %61 = vector.shape_cast %60 : vector<1x64x128xbf16> to vector<64x128xbf16>
    %cst_70 = arith.constant dense<0.000000e+00> : vector<32x128xf32>
    %62 = tpu.matmul %59, %61, %cst_70 {dimension_numbers = #tpu.dot_dimension_numbers<[1], [0], [0], [1], [0, 0, 1, 1], [], []>} : vector<32x64xbf16>, vector<64x128xbf16>, vector<32x128xf32> -> vector<32x128xf32>
    %63 = arith.addf %56, %62 : vector<32x128xf32>
    %c0_71 = arith.constant 0 : index
    %c0_72 = arith.constant 0 : index
    %64 = vector.load %arg4[%c0_71, %c0_72] : memref<1x128xf32, #tpu.memory_space<vmem>>, vector<1x128xf32>
    %65 = vector.broadcast %64 : vector<1x128xf32> to vector<32x128xf32>
    %66 = arith.addf %63, %65 : vector<32x128xf32>
    %cst_73 = arith.constant 0.000000e+00 : f32
    %67 = vector.broadcast %cst_73 : f32 to vector<32x128xf32>
    %68 = arith.maximumf %66, %67 : vector<32x128xf32>
    %69 = vector.shape_cast %68 : vector<32x128xf32> to vector<4x8x128xf32>
    %70 = arith.truncf %69 : vector<4x8x128xf32> to vector<4x8x128xbf16>
    %c0_74 = arith.constant 0 : index
    %c0_75 = arith.constant 0 : index
    %c0_76 = arith.constant 0 : index
    %c0_77 = arith.constant 0 : index
    %71 = vector.load %arg5[%c0_74, %c0_75, %c0_76, %c0_77] : memref<1x4x8x128xbf16, #tpu.memory_space<vmem>>, vector<1x4x8x128xbf16>
    %72 = vector.shape_cast %71 : vector<1x4x8x128xbf16> to vector<4x8x128xbf16>
    %73 = vector.shape_cast %70 : vector<4x8x128xbf16> to vector<1x4x8x128xbf16>
    tpu.vector_store %arg5[%c0_74, %c0_75, %c0_76, %c0_77], %73 {strides = array<i32>} : memref<1x4x8x128xbf16, #tpu.memory_space<vmem>>, vector<1x4x8x128xbf16>,
    return
  }
  func.func @transform_0(%arg0: i32, %arg1: i32) -> (i32, i32, i32, i32, i32) {
    %c0_i32 = arith.constant 0 : i32
    %c0_i32_0 = arith.constant 0 : i32
    %c0_i32_1 = arith.constant 0 : i32
    %c0_i32_2 = arith.constant 0 : i32
    return %arg0, %arg1, %c0_i32, %c0_i32_0, %c0_i32_1 : i32, i32, i32, i32, i32
  }
  func.func @transform_1(%arg0: i32, %arg1: i32) -> (i32, i32, i32) {
    %c0_i32 = arith.constant 0 : i32
    %c0_i32_0 = arith.constant 0 : i32
    %c0_i32_1 = arith.constant 0 : i32
    %c0_i32_2 = arith.constant 0 : i32
    return %c0_i32, %c0_i32_0, %c0_i32_1 : i32, i32, i32
  }
  func.func @transform_2(%arg0: i32, %arg1: i32) -> (i32, i32) {
    %c0_i32 = arith.constant 0 : i32
    %c0_i32_0 = arith.constant 0 : i32
    %c0_i32_1 = arith.constant 0 : i32
    return %c0_i32, %c0_i32_0 : i32, i32
  }
  func.func @transform_3(%arg0: i32, %arg1: i32) -> (i32, i32, i32, i32) {
    %c0_i32 = arith.constant 0 : i32
    %c0_i32_0 = arith.constant 0 : i32
    %c0_i32_1 = arith.constant 0 : i32
    return %arg0, %arg1, %c0_i32, %c0_i32_0 : i32, i32, i32, i32
  }
}

module attributes {stable_mosaic.version = 11 : i64} {
  func.func @_conv3x3_bn_psum_kernel(%arg0: i32, %arg1: i32, %arg2: memref<1x1x6x10x128xbf16, #tpu.memory_space<vmem>>, %arg3: memref<9x128x128xbf16, #tpu.memory_space<vmem>>, %arg4: memref<1x128xf32, #tpu.memory_space<vmem>>, %arg5: memref<1x4x8x128xbf16, #tpu.memory_space<vmem>>, %arg6: memref<1x1x128xf32, #tpu.memory_space<vmem>>) attributes {dimension_semantics = [#tpu.dimension_semantics<parallel>, #tpu.dimension_semantics<arbitrary>], iteration_bounds = array<i64: 2, 2>, scalar_prefetch = 0 : i64, scratch_operands = 0 : i64, tpu.core_type = #tpu.core_type<tc>, window_params = [{transform_indices = @transform_0, window_bounds = array<i64: 1, 1, 6, 10, 128>}, {pipeline_mode = #tpu.pipeline_mode<synchronous>, transform_indices = @transform_1, window_bounds = array<i64: 9, 128, 128>}, {pipeline_mode = #tpu.pipeline_mode<synchronous>, transform_indices = @transform_2, window_bounds = array<i64: 1, 128>}, {transform_indices = @transform_3, window_bounds = array<i64: 1, 4, 8, 128>}, {transform_indices = @transform_4, window_bounds = array<i64: 1, 1, 128>}]} {
    %cst = arith.constant 0.000000e+00 : f32
    %0 = vector.broadcast %cst : f32 to vector<32x128xf32>
    %c0 = arith.constant 0 : index
    %c0_0 = arith.constant 0 : index
    %c0_1 = arith.constant 0 : index
    %c0_2 = arith.constant 0 : index
    %c0_3 = arith.constant 0 : index
    %1 = vector.load %arg2[%c0, %c0_0, %c0_1, %c0_2, %c0_3] : memref<1x1x6x10x128xbf16, #tpu.memory_space<vmem>>, vector<1x1x4x8x128xbf16>
    %2 = vector.shape_cast %1 : vector<1x1x4x8x128xbf16> to vector<4x8x128xbf16>
    %3 = vector.shape_cast %2 : vector<4x8x128xbf16> to vector<32x128xbf16>
    %c0_4 = arith.constant 0 : index
    %c0_5 = arith.constant 0 : index
    %c0_6 = arith.constant 0 : index
    %4 = vector.load %arg3[%c0_4, %c0_5, %c0_6] : memref<9x128x128xbf16, #tpu.memory_space<vmem>>, vector<1x128x128xbf16>
    %5 = vector.shape_cast %4 : vector<1x128x128xbf16> to vector<128x128xbf16>
    %cst_7 = arith.constant dense<0.000000e+00> : vector<32x128xf32>
    %6 = tpu.matmul %3, %5, %cst_7 {dimension_numbers = #tpu.dot_dimension_numbers<[1], [0], [0], [1], [0, 0, 1, 1], [], []>} : vector<32x128xbf16>, vector<128x128xbf16>, vector<32x128xf32> -> vector<32x128xf32>
    %7 = arith.addf %0, %6 : vector<32x128xf32>
    %c0_8 = arith.constant 0 : index
    %c0_9 = arith.constant 0 : index
    %c0_10 = arith.constant 0 : index
    %c1 = arith.constant 1 : index
    %c0_11 = arith.constant 0 : index
    %8 = vector.load %arg2[%c0_8, %c0_9, %c0_10, %c1, %c0_11] : memref<1x1x6x10x128xbf16, #tpu.memory_space<vmem>>, vector<1x1x4x8x128xbf16>
    %9 = vector.shape_cast %8 : vector<1x1x4x8x128xbf16> to vector<4x8x128xbf16>
    %10 = vector.shape_cast %9 : vector<4x8x128xbf16> to vector<32x128xbf16>
    %c1_12 = arith.constant 1 : index
    %c0_13 = arith.constant 0 : index
    %c0_14 = arith.constant 0 : index
    %11 = vector.load %arg3[%c1_12, %c0_13, %c0_14] : memref<9x128x128xbf16, #tpu.memory_space<vmem>>, vector<1x128x128xbf16>
    %12 = vector.shape_cast %11 : vector<1x128x128xbf16> to vector<128x128xbf16>
    %cst_15 = arith.constant dense<0.000000e+00> : vector<32x128xf32>
    %13 = tpu.matmul %10, %12, %cst_15 {dimension_numbers = #tpu.dot_dimension_numbers<[1], [0], [0], [1], [0, 0, 1, 1], [], []>} : vector<32x128xbf16>, vector<128x128xbf16>, vector<32x128xf32> -> vector<32x128xf32>
    %14 = arith.addf %7, %13 : vector<32x128xf32>
    %c0_16 = arith.constant 0 : index
    %c0_17 = arith.constant 0 : index
    %c0_18 = arith.constant 0 : index
    %c2 = arith.constant 2 : index
    %c0_19 = arith.constant 0 : index
    %15 = vector.load %arg2[%c0_16, %c0_17, %c0_18, %c2, %c0_19] : memref<1x1x6x10x128xbf16, #tpu.memory_space<vmem>>, vector<1x1x4x8x128xbf16>
    %16 = vector.shape_cast %15 : vector<1x1x4x8x128xbf16> to vector<4x8x128xbf16>
    %17 = vector.shape_cast %16 : vector<4x8x128xbf16> to vector<32x128xbf16>
    %c2_20 = arith.constant 2 : index
    %c0_21 = arith.constant 0 : index
    %c0_22 = arith.constant 0 : index
    %18 = vector.load %arg3[%c2_20, %c0_21, %c0_22] : memref<9x128x128xbf16, #tpu.memory_space<vmem>>, vector<1x128x128xbf16>
    %19 = vector.shape_cast %18 : vector<1x128x128xbf16> to vector<128x128xbf16>
    %cst_23 = arith.constant dense<0.000000e+00> : vector<32x128xf32>
    %20 = tpu.matmul %17, %19, %cst_23 {dimension_numbers = #tpu.dot_dimension_numbers<[1], [0], [0], [1], [0, 0, 1, 1], [], []>} : vector<32x128xbf16>, vector<128x128xbf16>, vector<32x128xf32> -> vector<32x128xf32>
    %21 = arith.addf %14, %20 : vector<32x128xf32>
    %c0_24 = arith.constant 0 : index
    %c0_25 = arith.constant 0 : index
    %c1_26 = arith.constant 1 : index
    %c0_27 = arith.constant 0 : index
    %c0_28 = arith.constant 0 : index
    %22 = vector.load %arg2[%c0_24, %c0_25, %c1_26, %c0_27, %c0_28] : memref<1x1x6x10x128xbf16, #tpu.memory_space<vmem>>, vector<1x1x4x8x128xbf16>
    %23 = vector.shape_cast %22 : vector<1x1x4x8x128xbf16> to vector<4x8x128xbf16>
    %24 = vector.shape_cast %23 : vector<4x8x128xbf16> to vector<32x128xbf16>
    %c3 = arith.constant 3 : index
    %c0_29 = arith.constant 0 : index
    %c0_30 = arith.constant 0 : index
    %25 = vector.load %arg3[%c3, %c0_29, %c0_30] : memref<9x128x128xbf16, #tpu.memory_space<vmem>>, vector<1x128x128xbf16>
    %26 = vector.shape_cast %25 : vector<1x128x128xbf16> to vector<128x128xbf16>
    %cst_31 = arith.constant dense<0.000000e+00> : vector<32x128xf32>
    %27 = tpu.matmul %24, %26, %cst_31 {dimension_numbers = #tpu.dot_dimension_numbers<[1], [0], [0], [1], [0, 0, 1, 1], [], []>} : vector<32x128xbf16>, vector<128x128xbf16>, vector<32x128xf32> -> vector<32x128xf32>
    %28 = arith.addf %21, %27 : vector<32x128xf32>
    %c0_32 = arith.constant 0 : index
    %c0_33 = arith.constant 0 : index
    %c1_34 = arith.constant 1 : index
    %c1_35 = arith.constant 1 : index
    %c0_36 = arith.constant 0 : index
    %29 = vector.load %arg2[%c0_32, %c0_33, %c1_34, %c1_35, %c0_36] : memref<1x1x6x10x128xbf16, #tpu.memory_space<vmem>>, vector<1x1x4x8x128xbf16>
    %30 = vector.shape_cast %29 : vector<1x1x4x8x128xbf16> to vector<4x8x128xbf16>
    %31 = vector.shape_cast %30 : vector<4x8x128xbf16> to vector<32x128xbf16>
    %c4 = arith.constant 4 : index
    %c0_37 = arith.constant 0 : index
    %c0_38 = arith.constant 0 : index
    %32 = vector.load %arg3[%c4, %c0_37, %c0_38] : memref<9x128x128xbf16, #tpu.memory_space<vmem>>, vector<1x128x128xbf16>
    %33 = vector.shape_cast %32 : vector<1x128x128xbf16> to vector<128x128xbf16>
    %cst_39 = arith.constant dense<0.000000e+00> : vector<32x128xf32>
    %34 = tpu.matmul %31, %33, %cst_39 {dimension_numbers = #tpu.dot_dimension_numbers<[1], [0], [0], [1], [0, 0, 1, 1], [], []>} : vector<32x128xbf16>, vector<128x128xbf16>, vector<32x128xf32> -> vector<32x128xf32>
    %35 = arith.addf %28, %34 : vector<32x128xf32>
    %c0_40 = arith.constant 0 : index
    %c0_41 = arith.constant 0 : index
    %c1_42 = arith.constant 1 : index
    %c2_43 = arith.constant 2 : index
    %c0_44 = arith.constant 0 : index
    %36 = vector.load %arg2[%c0_40, %c0_41, %c1_42, %c2_43, %c0_44] : memref<1x1x6x10x128xbf16, #tpu.memory_space<vmem>>, vector<1x1x4x8x128xbf16>
    %37 = vector.shape_cast %36 : vector<1x1x4x8x128xbf16> to vector<4x8x128xbf16>
    %38 = vector.shape_cast %37 : vector<4x8x128xbf16> to vector<32x128xbf16>
    %c5 = arith.constant 5 : index
    %c0_45 = arith.constant 0 : index
    %c0_46 = arith.constant 0 : index
    %39 = vector.load %arg3[%c5, %c0_45, %c0_46] : memref<9x128x128xbf16, #tpu.memory_space<vmem>>, vector<1x128x128xbf16>
    %40 = vector.shape_cast %39 : vector<1x128x128xbf16> to vector<128x128xbf16>
    %cst_47 = arith.constant dense<0.000000e+00> : vector<32x128xf32>
    %41 = tpu.matmul %38, %40, %cst_47 {dimension_numbers = #tpu.dot_dimension_numbers<[1], [0], [0], [1], [0, 0, 1, 1], [], []>} : vector<32x128xbf16>, vector<128x128xbf16>, vector<32x128xf32> -> vector<32x128xf32>
    %42 = arith.addf %35, %41 : vector<32x128xf32>
    %c0_48 = arith.constant 0 : index
    %c0_49 = arith.constant 0 : index
    %c2_50 = arith.constant 2 : index
    %c0_51 = arith.constant 0 : index
    %c0_52 = arith.constant 0 : index
    %43 = vector.load %arg2[%c0_48, %c0_49, %c2_50, %c0_51, %c0_52] : memref<1x1x6x10x128xbf16, #tpu.memory_space<vmem>>, vector<1x1x4x8x128xbf16>
    %44 = vector.shape_cast %43 : vector<1x1x4x8x128xbf16> to vector<4x8x128xbf16>
    %45 = vector.shape_cast %44 : vector<4x8x128xbf16> to vector<32x128xbf16>
    %c6 = arith.constant 6 : index
    %c0_53 = arith.constant 0 : index
    %c0_54 = arith.constant 0 : index
    %46 = vector.load %arg3[%c6, %c0_53, %c0_54] : memref<9x128x128xbf16, #tpu.memory_space<vmem>>, vector<1x128x128xbf16>
    %47 = vector.shape_cast %46 : vector<1x128x128xbf16> to vector<128x128xbf16>
    %cst_55 = arith.constant dense<0.000000e+00> : vector<32x128xf32>
    %48 = tpu.matmul %45, %47, %cst_55 {dimension_numbers = #tpu.dot_dimension_numbers<[1], [0], [0], [1], [0, 0, 1, 1], [], []>} : vector<32x128xbf16>, vector<128x128xbf16>, vector<32x128xf32> -> vector<32x128xf32>
    %49 = arith.addf %42, %48 : vector<32x128xf32>
    %c0_56 = arith.constant 0 : index
    %c0_57 = arith.constant 0 : index
    %c2_58 = arith.constant 2 : index
    %c1_59 = arith.constant 1 : index
    %c0_60 = arith.constant 0 : index
    %50 = vector.load %arg2[%c0_56, %c0_57, %c2_58, %c1_59, %c0_60] : memref<1x1x6x10x128xbf16, #tpu.memory_space<vmem>>, vector<1x1x4x8x128xbf16>
    %51 = vector.shape_cast %50 : vector<1x1x4x8x128xbf16> to vector<4x8x128xbf16>
    %52 = vector.shape_cast %51 : vector<4x8x128xbf16> to vector<32x128xbf16>
    %c7 = arith.constant 7 : index
    %c0_61 = arith.constant 0 : index
    %c0_62 = arith.constant 0 : index
    %53 = vector.load %arg3[%c7, %c0_61, %c0_62] : memref<9x128x128xbf16, #tpu.memory_space<vmem>>, vector<1x128x128xbf16>
    %54 = vector.shape_cast %53 : vector<1x128x128xbf16> to vector<128x128xbf16>
    %cst_63 = arith.constant dense<0.000000e+00> : vector<32x128xf32>
    %55 = tpu.matmul %52, %54, %cst_63 {dimension_numbers = #tpu.dot_dimension_numbers<[1], [0], [0], [1], [0, 0, 1, 1], [], []>} : vector<32x128xbf16>, vector<128x128xbf16>, vector<32x128xf32> -> vector<32x128xf32>
    %56 = arith.addf %49, %55 : vector<32x128xf32>
    %c0_64 = arith.constant 0 : index
    %c0_65 = arith.constant 0 : index
    %c2_66 = arith.constant 2 : index
    %c2_67 = arith.constant 2 : index
    %c0_68 = arith.constant 0 : index
    %57 = vector.load %arg2[%c0_64, %c0_65, %c2_66, %c2_67, %c0_68] : memref<1x1x6x10x128xbf16, #tpu.memory_space<vmem>>, vector<1x1x4x8x128xbf16>
    %58 = vector.shape_cast %57 : vector<1x1x4x8x128xbf16> to vector<4x8x128xbf16>
    %59 = vector.shape_cast %58 : vector<4x8x128xbf16> to vector<32x128xbf16>
    %c8 = arith.constant 8 : index
    %c0_69 = arith.constant 0 : index
    %c0_70 = arith.constant 0 : index
    %60 = vector.load %arg3[%c8, %c0_69, %c0_70] : memref<9x128x128xbf16, #tpu.memory_space<vmem>>, vector<1x128x128xbf16>
    %61 = vector.shape_cast %60 : vector<1x128x128xbf16> to vector<128x128xbf16>
    %cst_71 = arith.constant dense<0.000000e+00> : vector<32x128xf32>
    %62 = tpu.matmul %59, %61, %cst_71 {dimension_numbers = #tpu.dot_dimension_numbers<[1], [0], [0], [1], [0, 0, 1, 1], [], []>} : vector<32x128xbf16>, vector<128x128xbf16>, vector<32x128xf32> -> vector<32x128xf32>
    %63 = arith.addf %56, %62 : vector<32x128xf32>
    %c0_72 = arith.constant 0 : index
    %c0_73 = arith.constant 0 : index
    %64 = vector.load %arg4[%c0_72, %c0_73] : memref<1x128xf32, #tpu.memory_space<vmem>>, vector<1x128xf32>
    %65 = vector.broadcast %64 : vector<1x128xf32> to vector<32x128xf32>
    %66 = arith.addf %63, %65 : vector<32x128xf32>
    %c0_i32 = arith.constant 0 : i32
    %67 = arith.cmpi eq, %arg1, %c0_i32 : i32
    %68 = arith.extui %67 : i1 to i32
    %c0_i32_74 = arith.constant 0 : i32
    %69 = arith.cmpi ne, %68, %c0_i32_74 : i32
    scf.if %69 {
      %cst_86 = arith.constant 0.000000e+00 : f32
      %83 = vector.broadcast %cst_86 : f32 to vector<1x128xf32>
      %c0_87 = arith.constant 0 : index
      %c0_88 = arith.constant 0 : index
      %c0_89 = arith.constant 0 : index
      %84 = vector.load %arg6[%c0_87, %c0_88, %c0_89] : memref<1x1x128xf32, #tpu.memory_space<vmem>>, vector<1x1x128xf32>
      %85 = vector.shape_cast %84 : vector<1x1x128xf32> to vector<1x128xf32>
      %86 = vector.shape_cast %83 : vector<1x128xf32> to vector<1x1x128xf32>
      tpu.vector_store %arg6[%c0_87, %c0_88, %c0_89], %86 {strides = array<i32>} : memref<1x1x128xf32, #tpu.memory_space<vmem>>, vector<1x1x128xf32>,
    } else {
    }
    %c0_75 = arith.constant 0 : index
    %c0_76 = arith.constant 0 : index
    %c0_77 = arith.constant 0 : index
    %70 = vector.load %arg6[%c0_75, %c0_76, %c0_77] : memref<1x1x128xf32, #tpu.memory_space<vmem>>, vector<1x1x128xf32>
    %71 = vector.shape_cast %70 : vector<1x1x128xf32> to vector<1x128xf32>
    %cst_78 = arith.constant dense<0.000000e+00> : vector<128xf32>
    %72 = vector.multi_reduction <add>, %66, %cst_78 [0] : vector<32x128xf32> to vector<128xf32>
    %73 = vector.shape_cast %72 : vector<128xf32> to vector<1x128xf32>
    %74 = arith.addf %71, %73 : vector<1x128xf32>
    %c0_79 = arith.constant 0 : index
    %c0_80 = arith.constant 0 : index
    %c0_81 = arith.constant 0 : index
    %75 = vector.load %arg6[%c0_79, %c0_80, %c0_81] : memref<1x1x128xf32, #tpu.memory_space<vmem>>, vector<1x1x128xf32>
    %76 = vector.shape_cast %75 : vector<1x1x128xf32> to vector<1x128xf32>
    %77 = vector.shape_cast %74 : vector<1x128xf32> to vector<1x1x128xf32>
    tpu.vector_store %arg6[%c0_79, %c0_80, %c0_81], %77 {strides = array<i32>} : memref<1x1x128xf32, #tpu.memory_space<vmem>>, vector<1x1x128xf32>,
    %78 = vector.shape_cast %66 : vector<32x128xf32> to vector<4x8x128xf32>
    %79 = arith.truncf %78 : vector<4x8x128xf32> to vector<4x8x128xbf16>
    %c0_82 = arith.constant 0 : index
    %c0_83 = arith.constant 0 : index
    %c0_84 = arith.constant 0 : index
    %c0_85 = arith.constant 0 : index
    %80 = vector.load %arg5[%c0_82, %c0_83, %c0_84, %c0_85] : memref<1x4x8x128xbf16, #tpu.memory_space<vmem>>, vector<1x4x8x128xbf16>
    %81 = vector.shape_cast %80 : vector<1x4x8x128xbf16> to vector<4x8x128xbf16>
    %82 = vector.shape_cast %79 : vector<4x8x128xbf16> to vector<1x4x8x128xbf16>
    tpu.vector_store %arg5[%c0_82, %c0_83, %c0_84, %c0_85], %82 {strides = array<i32>} : memref<1x4x8x128xbf16, #tpu.memory_space<vmem>>, vector<1x4x8x128xbf16>,
    return
  }
  func.func @transform_0(%arg0: i32, %arg1: i32) -> (i32, i32, i32, i32, i32) {
    %c0_i32 = arith.constant 0 : i32
    %c0_i32_0 = arith.constant 0 : i32
    %c0_i32_1 = arith.constant 0 : i32
    %c0_i32_2 = arith.constant 0 : i32
    return %arg0, %arg1, %c0_i32, %c0_i32_0, %c0_i32_1 : i32, i32, i32, i32, i32
  }
  func.func @transform_1(%arg0: i32, %arg1: i32) -> (i32, i32, i32) {
    %c0_i32 = arith.constant 0 : i32
    %c0_i32_0 = arith.constant 0 : i32
    %c0_i32_1 = arith.constant 0 : i32
    %c0_i32_2 = arith.constant 0 : i32
    return %c0_i32, %c0_i32_0, %c0_i32_1 : i32, i32, i32
  }
  func.func @transform_2(%arg0: i32, %arg1: i32) -> (i32, i32) {
    %c0_i32 = arith.constant 0 : i32
    %c0_i32_0 = arith.constant 0 : i32
    %c0_i32_1 = arith.constant 0 : i32
    return %c0_i32, %c0_i32_0 : i32, i32
  }
  func.func @transform_3(%arg0: i32, %arg1: i32) -> (i32, i32, i32, i32) {
    %c0_i32 = arith.constant 0 : i32
    %c0_i32_0 = arith.constant 0 : i32
    %c0_i32_1 = arith.constant 0 : i32
    return %arg0, %arg1, %c0_i32, %c0_i32_0 : i32, i32, i32, i32
  }
  func.func @transform_4(%arg0: i32, %arg1: i32) -> (i32, i32, i32) {
    %c0_i32 = arith.constant 0 : i32
    %c0_i32_0 = arith.constant 0 : i32
    %c0_i32_1 = arith.constant 0 : i32
    return %arg0, %c0_i32, %c0_i32_0 : i32, i32, i32
  }
}

module attributes {stable_mosaic.version = 11 : i64} {
  func.func @_tail_downsample_kernel(%arg0: i32, %arg1: i32, %arg2: memref<1x1x128xf32, #tpu.memory_space<vmem>>, %arg3: memref<128x128xf32, #tpu.memory_space<vmem>>, %arg4: memref<1x4x8x128xbf16, #tpu.memory_space<vmem>>, %arg5: memref<1x4x8x64xbf16, #tpu.memory_space<vmem>>, %arg6: memref<64x128xbf16, #tpu.memory_space<vmem>>, %arg7: memref<1x128xf32, #tpu.memory_space<vmem>>, %arg8: memref<1x4x8x128xf32, #tpu.memory_space<vmem>>) attributes {dimension_semantics = [#tpu.dimension_semantics<parallel>, #tpu.dimension_semantics<parallel>], iteration_bounds = array<i64: 2, 2>, scalar_prefetch = 0 : i64, scratch_operands = 0 : i64, tpu.core_type = #tpu.core_type<tc>, window_params = [{transform_indices = @transform_0, window_bounds = array<i64: 1, 1, 128>}, {pipeline_mode = #tpu.pipeline_mode<synchronous>, transform_indices = @transform_1, window_bounds = array<i64: 128, 128>}, {transform_indices = @transform_2, window_bounds = array<i64: 1, 4, 8, 128>}, {transform_indices = @transform_3, window_bounds = array<i64: 1, 4, 8, 64>}, {pipeline_mode = #tpu.pipeline_mode<synchronous>, transform_indices = @transform_4, window_bounds = array<i64: 64, 128>}, {pipeline_mode = #tpu.pipeline_mode<synchronous>, transform_indices = @transform_5, window_bounds = array<i64: 1, 128>}, {transform_indices = @transform_6, window_bounds = array<i64: 1, 4, 8, 128>}]} {
    %c0 = arith.constant 0 : index
    %c0_0 = arith.constant 0 : index
    %c0_1 = arith.constant 0 : index
    %0 = vector.load %arg2[%c0, %c0_0, %c0_1] : memref<1x1x128xf32, #tpu.memory_space<vmem>>, vector<1x1x128xf32>
    %1 = vector.shape_cast %0 : vector<1x1x128xf32> to vector<1x128xf32>
    %c0_2 = arith.constant 0 : index
    %c0_3 = arith.constant 0 : index
    %2 = vector.load %arg3[%c0_2, %c0_3] : memref<128x128xf32, #tpu.memory_space<vmem>>, vector<128x128xf32>
    %cst = arith.constant dense<0.000000e+00> : vector<1x128xf32>
    %3 = tpu.matmul %1, %2, %cst {dimension_numbers = #tpu.dot_dimension_numbers<[1], [0], [0], [1], [0, 0, 1, 1], [], []>} : vector<1x128xf32>, vector<128x128xf32>, vector<1x128xf32> -> vector<1x128xf32>
    %cst_4 = arith.constant 0.000000e+00 : f32
    %4 = vector.broadcast %cst_4 : f32 to vector<1x128xf32>
    %5 = arith.subf %4, %3 : vector<1x128xf32>
    %6 = math.exp %5 : vector<1x128xf32>
    %cst_5 = arith.constant 1.000000e+00 : f32
    %7 = vector.broadcast %cst_5 : f32 to vector<1x128xf32>
    %8 = arith.addf %7, %6 : vector<1x128xf32>
    %cst_6 = arith.constant 1.000000e+00 : f32
    %9 = vector.broadcast %cst_6 : f32 to vector<1x128xf32>
    %10 = arith.divf %9, %8 : vector<1x128xf32>
    %c0_7 = arith.constant 0 : index
    %c0_8 = arith.constant 0 : index
    %c0_9 = arith.constant 0 : index
    %c0_10 = arith.constant 0 : index
    %11 = vector.load %arg4[%c0_7, %c0_8, %c0_9, %c0_10] : memref<1x4x8x128xbf16, #tpu.memory_space<vmem>>, vector<1x4x8x128xbf16>
    %12 = vector.shape_cast %11 : vector<1x4x8x128xbf16> to vector<4x8x128xbf16>
    %13 = vector.shape_cast %12 : vector<4x8x128xbf16> to vector<32x128xbf16>
    %14 = arith.extf %13 : vector<32x128xbf16> to vector<32x128xf32>
    %15 = vector.broadcast %10 : vector<1x128xf32> to vector<32x128xf32>
    %16 = arith.mulf %14, %15 : vector<32x128xf32>
    %c0_11 = arith.constant 0 : index
    %c0_12 = arith.constant 0 : index
    %c0_13 = arith.constant 0 : index
    %c0_14 = arith.constant 0 : index
    %17 = vector.load %arg5[%c0_11, %c0_12, %c0_13, %c0_14] : memref<1x4x8x64xbf16, #tpu.memory_space<vmem>>, vector<1x4x8x64xbf16>
    %18 = vector.shape_cast %17 : vector<1x4x8x64xbf16> to vector<4x8x64xbf16>
    %19 = vector.shape_cast %18 : vector<4x8x64xbf16> to vector<32x64xbf16>
    %c0_15 = arith.constant 0 : index
    %c0_16 = arith.constant 0 : index
    %20 = vector.load %arg6[%c0_15, %c0_16] : memref<64x128xbf16, #tpu.memory_space<vmem>>, vector<64x128xbf16>
    %cst_17 = arith.constant dense<0.000000e+00> : vector<32x128xf32>
    %21 = tpu.matmul %19, %20, %cst_17 {dimension_numbers = #tpu.dot_dimension_numbers<[1], [0], [0], [1], [0, 0, 1, 1], [], []>} : vector<32x64xbf16>, vector<64x128xbf16>, vector<32x128xf32> -> vector<32x128xf32>
    %c0_18 = arith.constant 0 : index
    %c0_19 = arith.constant 0 : index
    %22 = vector.load %arg7[%c0_18, %c0_19] : memref<1x128xf32, #tpu.memory_space<vmem>>, vector<1x128xf32>
    %23 = vector.broadcast %22 : vector<1x128xf32> to vector<32x128xf32>
    %24 = arith.addf %21, %23 : vector<32x128xf32>
    %25 = arith.addf %16, %24 : vector<32x128xf32>
    %cst_20 = arith.constant 0.000000e+00 : f32
    %26 = vector.broadcast %cst_20 : f32 to vector<32x128xf32>
    %27 = arith.maximumf %25, %26 : vector<32x128xf32>
    %28 = vector.shape_cast %27 : vector<32x128xf32> to vector<4x8x128xf32>
    %c0_21 = arith.constant 0 : index
    %c0_22 = arith.constant 0 : index
    %c0_23 = arith.constant 0 : index
    %c0_24 = arith.constant 0 : index
    %29 = vector.load %arg8[%c0_21, %c0_22, %c0_23, %c0_24] : memref<1x4x8x128xf32, #tpu.memory_space<vmem>>, vector<1x4x8x128xf32>
    %30 = vector.shape_cast %29 : vector<1x4x8x128xf32> to vector<4x8x128xf32>
    %31 = vector.shape_cast %28 : vector<4x8x128xf32> to vector<1x4x8x128xf32>
    tpu.vector_store %arg8[%c0_21, %c0_22, %c0_23, %c0_24], %31 {strides = array<i32>} : memref<1x4x8x128xf32, #tpu.memory_space<vmem>>, vector<1x4x8x128xf32>,
    return
  }
  func.func @transform_0(%arg0: i32, %arg1: i32) -> (i32, i32, i32) {
    %c0_i32 = arith.constant 0 : i32
    %c0_i32_0 = arith.constant 0 : i32
    %c0_i32_1 = arith.constant 0 : i32
    return %arg0, %c0_i32, %c0_i32_0 : i32, i32, i32
  }
  func.func @transform_1(%arg0: i32, %arg1: i32) -> (i32, i32) {
    %c0_i32 = arith.constant 0 : i32
    %c0_i32_0 = arith.constant 0 : i32
    %c0_i32_1 = arith.constant 0 : i32
    return %c0_i32, %c0_i32_0 : i32, i32
  }
  func.func @transform_2(%arg0: i32, %arg1: i32) -> (i32, i32, i32, i32) {
    %c0_i32 = arith.constant 0 : i32
    %c0_i32_0 = arith.constant 0 : i32
    %c0_i32_1 = arith.constant 0 : i32
    return %arg0, %arg1, %c0_i32, %c0_i32_0 : i32, i32, i32, i32
  }
  func.func @transform_3(%arg0: i32, %arg1: i32) -> (i32, i32, i32, i32) {
    %c0_i32 = arith.constant 0 : i32
    %c0_i32_0 = arith.constant 0 : i32
    %c0_i32_1 = arith.constant 0 : i32
    return %arg0, %arg1, %c0_i32, %c0_i32_0 : i32, i32, i32, i32
  }
  func.func @transform_4(%arg0: i32, %arg1: i32) -> (i32, i32) {
    %c0_i32 = arith.constant 0 : i32
    %c0_i32_0 = arith.constant 0 : i32
    %c0_i32_1 = arith.constant 0 : i32
    return %c0_i32, %c0_i32_0 : i32, i32
  }
  func.func @transform_5(%arg0: i32, %arg1: i32) -> (i32, i32) {
    %c0_i32 = arith.constant 0 : i32
    %c0_i32_0 = arith.constant 0 : i32
    %c0_i32_1 = arith.constant 0 : i32
    return %c0_i32, %c0_i32_0 : i32, i32
  }
  func.func @transform_6(%arg0: i32, %arg1: i32) -> (i32, i32, i32, i32) {
    %c0_i32 = arith.constant 0 : i32
    %c0_i32_0 = arith.constant 0 : i32
    %c0_i32_1 = arith.constant 0 : i32
    return %arg0, %arg1, %c0_i32, %c0_i32_0 : i32, i32, i32, i32
  }
}

</mosaic_0001>

<llo_original>
// kernel: basic_block_forward.5
$region0: #{basic_block_forward.5}
  #allocation0 [shape = 'u32[]', space=smem, size = 0x4, offset = 0x4, fixed_abs, tag = 'smem constant byte address 0x4 - core index']
  #allocation1 [shape = 'u32[144,128]{1,0:T(1,128)}', space=vmem, size = 0x12000, scoped, tag = 'internal scratch']
  %s0 = inlined_call_operand.vmem [shape: f32[2,1,128], index: 0, kind: input, shape index: {}]
  %s1 = inlined_call_operand.vmem [shape: f32[128,128], index: 1, kind: input, shape index: {}]
  %s2 = inlined_call_operand.vmem [shape: bf16[2,8,8,128], index: 2, kind: input, shape index: {}]
  %s3 = inlined_call_operand.vmem [shape: bf16[2,8,8,64], index: 3, kind: input, shape index: {}]
  %s4 = inlined_call_operand.vmem [shape: bf16[64,128], index: 4, kind: input, shape index: {}]
  %s5 = inlined_call_operand.vmem [shape: f32[1,128], index: 5, kind: input, shape index: {}]
  %s6 = inlined_call_operand.hbm [shape: f32[2,8,8,128], index: 6, kind: output, shape index: {}]
  %s7 = sld [smem:[#allocation0]]
  $region57: #{basic_block_forward.5} parent=0
    _
  %s9 = ssub.s32 1, %s7
  %s10 = scalar_select 0, %s9, %s7
  $region1: #{basic_block_forward.5} parent=0
    #allocation2 [shape = 'u8[32768]{0}', space=vmem, size = 0x8000, scoped, tag = 'output window, operand 0']
    #allocation3 [shape = 's32[2]{0}', space=sflag, size = 0x8, scoped, tag = 'scoped memory for basic_block_forward.5']
    %11 = vsyncpa [#allocation3], 0
    %s12 = scalar_lea.sflag [#allocation3], 1
    %13 = vsyncpa %s12, 0
    loop: start=0, step=1, limit=6
    $region2: #{basic_block_forward.5} parent=1 // loop_pre_header
      _
    $region3: #{basic_block_forward.5} parent=1 // loop_header
      %s15 = sphi 0, %s19
      %p16 = scmp.ge.s32.totalorder %s15, 6
      %s22 = sphi 0, %s34
      %s23 = sphi 0, %s30
      %s24 = sphi 0, %s22
      %s25 = sphi 0, %s23
      %s26 = sphi 0, %s24
      %s27 = sphi 0, %s25
      %s37 = sphi 0, %s39
      %s40 = sphi 0, %s37
      %s41 = sphi 0, %s40
      %s57 = sphi 0, %s41
      %s61 = sphi 0, %s61
      %s63 = sphi 0, %s61
      %s64 = sphi 0, %s63
      %s78 = sphi 0, %s64
      %s86 = sphi 0, %s88
      %s89 = sphi 0, %s86
      %s90 = sphi 0, %s89
      %s106 = sphi 0, %s90
      %s114 = sphi 0, %s116
      %s117 = sphi 0, %s114
      %s118 = sphi 0, %s117
      %s134 = sphi 0, %s118
      %s138 = sphi 0, %s138
      %s140 = sphi 0, %s138
      %s141 = sphi 0, %s140
      %s155 = sphi 0, %s141
      %s159 = sphi 0, %s159
      %s161 = sphi 0, %s159
      %s162 = sphi 0, %s161
      %s176 = sphi 0, %s162
      %s184 = sphi 0, %s186
      %s187 = sphi 0, %s184
      %s188 = sphi 0, %s187
      %s204 = sphi 0, %s188
    $region4: #{basic_block_forward.5} parent=1 // loop_header_branch
      %18 = sbr.rel (%p16) target = $region8
    $region5: #{basic_block_forward.5} parent=1 // loop_body
      %s20 = ssub.s32 %s15, 1
      %s21 = ssub.s32 %s15, 2
      %s28 = sadd.s32 1, %s23
      %p29 = scmp.ge.s32.totalorder %s28, 2
      %s30 = scalar_select %p29, 0, %s28
      %s31 = sadd.s32 1, %s22
      %s32 = scalar_select %p29, %s31, %s22
      %p33 = scmp.ge.s32.totalorder %s32, 2
      %s34 = scalar_select %p33, 0, %s32
      %s35 = ssub.s32 %s22, %s34
      %p36 = scmp.eq.s32.totalorder %s35, 0
      %s38 = sadd.s32 %s37, 1
      %s39 = scalar_select %p36, %s37, %s38
      %p42 = pneg %p36
      %p43 = scmp.eq.s32.totalorder %s15, 3
      %p44 = por %p42, %p43
      %p45 = scmp.ne.s32.totalorder %s37, %s40
      %p46 = scmp.eq.s32.totalorder %s15, 0
      %p47 = por %p45, %p46
      %p48 = scmp.ne.s32.totalorder %s37, %s40
      %p49 = scmp.eq.s32.totalorder %s20, 3
      %p50 = por %p48, %p49
      %p51 = scmp.ne.s32.totalorder %s40, %s41
      %p52 = scmp.eq.s32.totalorder %s20, 0
      %p53 = por %p51, %p52
      %p54 = scmp.ne.s32.totalorder %s40, %s41
      %p55 = scmp.eq.s32.totalorder %s21, 3
      %p56 = por %p54, %p55
      %p58 = scmp.ne.s32.totalorder %s41, %s57
      %p59 = scmp.eq.s32.totalorder %s21, 0
      %p60 = por %p58, %p59
      %s62 = sadd.s32 %s61, 1
      %p65 = scmp.eq.s32.totalorder %s15, 3
      %p66 = scmp.ne.s32.totalorder %s61, %s63
      %p67 = scmp.eq.s32.totalorder %s15, 0
      %p68 = por %p66, %p67
      %p69 = scmp.ne.s32.totalorder %s61, %s63
      %p70 = scmp.eq.s32.totalorder %s20, 3
      %p71 = por %p69, %p70
      %p72 = scmp.ne.s32.totalorder %s63, %s64
      %p73 = scmp.eq.s32.totalorder %s20, 0
      %p74 = por %p72, %p73
      %p75 = scmp.ne.s32.totalorder %s63, %s64
      %p76 = scmp.eq.s32.totalorder %s21, 3
      %p77 = por %p75, %p76
      %p79 = scmp.ne.s32.totalorder %s64, %s78
      %p80 = scmp.eq.s32.totalorder %s21, 0
      %p81 = por %p79, %p80
      %s82 = ssub.s32 %s22, %s34
      %s83 = ssub.s32 %s23, %s30
      %s84 = sor.u32 %s82, %s83
      %p85 = scmp.eq.s32.totalorder %s84, 0
      %s87 = sadd.s32 %s86, 1
      %s88 = scalar_select %p85, %s86, %s87
      %p91 = pneg %p85
      %p92 = scmp.eq.s32.totalorder %s15, 3
      %p93 = por %p91, %p92
      %p94 = scmp.ne.s32.totalorder %s86, %s89
      %p95 = scmp.eq.s32.totalorder %s15, 0
      %p96 = por %p94, %p95
      %p97 = scmp.ne.s32.totalorder %s86, %s89
      %p98 = scmp.eq.s32.totalorder %s20, 3
      %p99 = por %p97, %p98
      %p100 = scmp.ne.s32.totalorder %s89, %s90
      %p101 = scmp.eq.s32.totalorder %s20, 0
      %p102 = por %p100, %p101
      %p103 = scmp.ne.s32.totalorder %s89, %s90
      %p104 = scmp.eq.s32.totalorder %s21, 3
      %p105 = por %p103, %p104
      %p107 = scmp.ne.s32.totalorder %s90, %s106
      %p108 = scmp.eq.s32.totalorder %s21, 0
      %p109 = por %p107, %p108
      %s110 = ssub.s32 %s22, %s34
      %s111 = ssub.s32 %s23, %s30
      %s112 = sor.u32 %s110, %s111
      %p113 = scmp.eq.s32.totalorder %s112, 0
      %s115 = sadd.s32 %s114, 1
      %s116 = scalar_select %p113, %s114, %s115
      %p119 = pneg %p113
      %p120 = scmp.eq.s32.totalorder %s15, 3
      %p121 = por %p119, %p120
      %p122 = scmp.ne.s32.totalorder %s114, %s117
      %p123 = scmp.eq.s32.totalorder %s15, 0
      %p124 = por %p122, %p123
      %p125 = scmp.ne.s32.totalorder %s114, %s117
      %p126 = scmp.eq.s32.totalorder %s20, 3
      %p127 = por %p125, %p126
      %p128 = scmp.ne.s32.totalorder %s117, %s118
      %p129 = scmp.eq.s32.totalorder %s20, 0
      %p130 = por %p128, %p129
      %p131 = scmp.ne.s32.totalorder %s117, %s118
      %p132 = scmp.eq.s32.totalorder %s21, 3
      %p133 = por %p131, %p132
      %p135 = scmp.ne.s32.totalorder %s118, %s134
      %p136 = scmp.eq.s32.totalorder %s21, 0
      %p137 = por %p135, %p136
      %s139 = sadd.s32 %s138, 1
      %p142 = scmp.eq.s32.totalorder %s15, 3
      %p143 = scmp.ne.s32.totalorder %s138, %s140
      %p144 = scmp.eq.s32.totalorder %s15, 0
      %p145 = por %p143, %p144
      %p146 = scmp.ne.s32.totalorder %s138, %s140
      %p147 = scmp.eq.s32.totalorder %s20, 3
      %p148 = por %p146, %p147
      %p149 = scmp.ne.s32.totalorder %s140, %s141
      %p150 = scmp.eq.s32.totalorder %s20, 0
      %p151 = por %p149, %p150
      %p152 = scmp.ne.s32.totalorder %s140, %s141
      %p153 = scmp.eq.s32.totalorder %s21, 3
      %p154 = por %p152, %p153
      %p156 = scmp.ne.s32.totalorder %s141, %s155
      %p157 = scmp.eq.s32.totalorder %s21, 0
      %p158 = por %p156, %p157
      %s160 = sadd.s32 %s159, 1
      %p163 = scmp.eq.s32.totalorder %s15, 3
      %p164 = scmp.ne.s32.totalorder %s159, %s161
      %p165 = scmp.eq.s32.totalorder %s15, 0
      %p166 = por %p164, %p165
      %p167 = scmp.ne.s32.totalorder %s159, %s161
      %p168 = scmp.eq.s32.totalorder %s20, 3
      %p169 = por %p167, %p168
      %p170 = scmp.ne.s32.totalorder %s161, %s162
      %p171 = scmp.eq.s32.totalorder %s20, 0
      %p172 = por %p170, %p171
      %p173 = scmp.ne.s32.totalorder %s161, %s162
      %p174 = scmp.eq.s32.totalorder %s21, 3
      %p175 = por %p173, %p174
      %p177 = scmp.ne.s32.totalorder %s162, %s176
      %p178 = scmp.eq.s32.totalorder %s21, 0
      %p179 = por %p177, %p178
      %s180 = ssub.s32 %s22, %s34
      %s181 = ssub.s32 %s23, %s30
      %s182 = sor.u32 %s180, %s181
      %p183 = scmp.eq.s32.totalorder %s182, 0
      %s185 = sadd.s32 %s184, 1
      %s186 = scalar_select %p183, %s184, %s185
      %p189 = pneg %p183
      %p190 = scmp.eq.s32.totalorder %s15, 3
      %p191 = por %p189, %p190
      %p192 = scmp.ne.s32.totalorder %s184, %s187
      %p193 = scmp.eq.s32.totalorder %s15, 0
      %p194 = por %p192, %p193
      %p195 = scmp.ne.s32.totalorder %s184, %s187
      %p196 = scmp.eq.s32.totalorder %s20, 3
      %p197 = por %p195, %p196
      %p198 = scmp.ne.s32.totalorder %s187, %s188
      %p199 = scmp.eq.s32.totalorder %s20, 0
      %p200 = por %p198, %p199
      %p201 = scmp.ne.s32.totalorder %s187, %s188
      %p202 = scmp.eq.s32.totalorder %s21, 3
      %p203 = por %p201, %p202
      %p205 = scmp.ne.s32.totalorder %s188, %s204
      %p206 = scmp.eq.s32.totalorder %s21, 0
      %p207 = por %p205, %p206
      %p208 = scmp.le.s32.totalorder 1, %s15
      %p209 = scmp.lt.s32.totalorder %s15, 5
      %p210 = pnand %p208, %p209
      %p211 = pneg %p210
      // Predicated region
      $region9: #{basic_block_forward.5} parent=5 // pred_check
        _
      $region10: #{basic_block_forward.5} parent=5 // pred_check_branch
        %213 = sbr.rel (%p210) target = $region12
      $region11: #{basic_block_forward.5} parent=5 // pred_region
        %s214 = ssub.s32 %s15, 1
        // Predicated region
        $region13: #{basic_block_forward.5} parent=11 // pred_check
          %p215 = pneg %p74
        $region14: #{basic_block_forward.5} parent=11 // pred_check_branch
          %217 = sbr.rel (%p215) target = $region16
        $region15: #{basic_block_forward.5} parent=11 // pred_region
          _
        $region16: #{basic_block_forward.5} parent=11 // pred_fallthru
          _
        // Predicated region
        $region17: #{basic_block_forward.5} parent=11 // pred_check
          %p218 = pneg %p151
        $region18: #{basic_block_forward.5} parent=11 // pred_check_branch
          %220 = sbr.rel (%p218) target = $region20
        $region19: #{basic_block_forward.5} parent=11 // pred_region
          _
        $region20: #{basic_block_forward.5} parent=11 // pred_fallthru
          _
        // Predicated region
        $region21: #{basic_block_forward.5} parent=11 // pred_check
          %p221 = pneg %p172
        $region22: #{basic_block_forward.5} parent=11 // pred_check_branch
          %223 = sbr.rel (%p221) target = $region24
        $region23: #{basic_block_forward.5} parent=11 // pred_region
          _
        $region24: #{basic_block_forward.5} parent=11 // pred_fallthru
          _
      $region12: #{basic_block_forward.5} parent=5 // pred_fallthru
        _
      %p224 = scmp.lt.s32.totalorder %s15, 4
      // Predicated region
      $region25: #{basic_block_forward.5} parent=5 // pred_check
        %p225 = pneg %p224
      $region26: #{basic_block_forward.5} parent=5 // pred_check_branch
        %227 = sbr.rel (%p225) target = $region28
      $region27: #{basic_block_forward.5} parent=5 // pred_region
        // Predicated region
        $region29: #{basic_block_forward.5} parent=27 // pred_check
          %p228 = pneg %p47
        $region30: #{basic_block_forward.5} parent=27 // pred_check_branch
          %230 = sbr.rel (%p228) target = $region32
        $region31: #{basic_block_forward.5} parent=27 // pred_region
          %p231 = scmp.lt.s32.totalorder %s22, 1
          %s232 = scalar_select %p231, %s22, 1
          %s233 = scalar_lea.vmem %s0, %s232
        $region32: #{basic_block_forward.5} parent=27 // pred_fallthru
          _
        // Predicated region
        $region33: #{basic_block_forward.5} parent=27 // pred_check
          %p234 = pneg %p96
        $region34: #{basic_block_forward.5} parent=27 // pred_check_branch
          %236 = sbr.rel (%p234) target = $region36
        $region35: #{basic_block_forward.5} parent=27 // pred_region
          %s237 = smul.u32 4, %s23
          %p238 = scmp.lt.s32.totalorder %s22, 1
          %s239 = scalar_select %p238, %s22, 1
          %p240 = scmp.lt.s32.totalorder %s237, 7
          %s241 = scalar_select %p240, %s237, 7
          %s242 = smul.addr %s239, 8
          %s243 = sadd.s32 %s241, %s242
          %s244 = smul.addr %s243, 4
          %s245 = scalar_lea.vmem %s2, %s244
          %s246 = smul.u32 4, %s23
        $region36: #{basic_block_forward.5} parent=27 // pred_fallthru
          _
        // Predicated region
        $region37: #{basic_block_forward.5} parent=27 // pred_check
          %p247 = pneg %p124
        $region38: #{basic_block_forward.5} parent=27 // pred_check_branch
          %249 = sbr.rel (%p247) target = $region40
        $region39: #{basic_block_forward.5} parent=27 // pred_region
          %s250 = smul.u32 4, %s23
          %p251 = scmp.lt.s32.totalorder %s22, 1
          %s252 = scalar_select %p251, %s22, 1
          %p253 = scmp.lt.s32.totalorder %s250, 7
          %s254 = scalar_select %p253, %s250, 7
          %s255 = smul.addr %s252, 8
          %s256 = sadd.s32 %s254, %s255
          %s257 = smul.addr %s256, 4
          %s258 = scalar_lea.vmem %s3, %s257
          %s259 = smul.u32 4, %s23
        $region40: #{basic_block_forward.5} parent=27 // pred_fallthru
          _
      $region28: #{basic_block_forward.5} parent=5 // pred_fallthru
        _
      %p260 = scmp.le.s32.totalorder 1, %s15
      %p261 = scmp.lt.s32.totalorder %s15, 5
      %p262 = pnand %p260, %p261
      %p263 = pneg %p262
      // Predicated region
      $region41: #{basic_block_forward.5} parent=5 // pred_check
        _
      $region42: #{basic_block_forward.5} parent=5 // pred_check_branch
        %265 = sbr.rel (%p262) target = $region44
      $region43: #{basic_block_forward.5} parent=5 // pred_region
        %s266 = ssub.s32 %s15, 1
        %p267 = scmp.lt.s32.totalorder %s24, 1
        %s268 = scalar_select %p267, %s24, 1
        %s269 = scalar_lea.vmem %s0, %s268
        %p270 = pneg %p53
        %p271 = pneg %p50
        %p272 = pneg %p74
        %p273 = pneg %p71
        %s274 = smul.u32 4, %s25
        %p275 = scmp.lt.s32.totalorder %s24, 1
        %s276 = scalar_select %p275, %s24, 1
        %p277 = scmp.lt.s32.totalorder %s274, 7
        %s278 = scalar_select %p277, %s274, 7
        %s279 = smul.addr %s276, 8
        %s280 = sadd.s32 %s278, %s279
        %s281 = smul.addr %s280, 4
        %s282 = scalar_lea.vmem %s2, %s281
        %p283 = pneg %p102
        %p284 = pneg %p99
        %s285 = smul.u32 4, %s25
        %p286 = scmp.lt.s32.totalorder %s24, 1
        %s287 = scalar_select %p286, %s24, 1
        %p288 = scmp.lt.s32.totalorder %s285, 7
        %s289 = scalar_select %p288, %s285, 7
        %s290 = smul.addr %s287, 8
        %s291 = sadd.s32 %s289, %s290
        %s292 = smul.addr %s291, 4
        %s293 = scalar_lea.vmem %s3, %s292
        %p294 = pneg %p130
        %p295 = pneg %p127
        %p296 = pneg %p151
        %p297 = pneg %p148
        %p298 = pneg %p172
        %p299 = pneg %p169
        %p300 = pneg %p200
        %p301 = pneg %p197
        %s302 = sand.u32 %s187, 1
        %s303 = scalar_lea.sflag [#allocation3], %s302
        %s304 = sand.u32 %s187, 1
        %s305 = smul.addr %s304, 32
        %s306 = scalar_lea.vmem [#allocation2], %s305
        %p307 = scmp.lt.s32.totalorder %s24, 1
        %s308 = scalar_select %p307, %s24, 1
        %s309 = scalar_lea.vmem %s0, %s308
        %s310 = smul.u32 4, %s25
        %p311 = scmp.lt.s32.totalorder %s24, 1
        %s312 = scalar_select %p311, %s24, 1
        %p313 = scmp.lt.s32.totalorder %s310, 7
        %s314 = scalar_select %p313, %s310, 7
        %s315 = smul.addr %s312, 8
        %s316 = sadd.s32 %s314, %s315
        %s317 = smul.addr %s316, 4
        %s318 = scalar_lea.vmem %s2, %s317
        %s319 = smul.u32 4, %s25
        %s320 = smul.u32 4, %s25
        %p321 = scmp.lt.s32.totalorder %s24, 1
        %s322 = scalar_select %p321, %s24, 1
        %p323 = scmp.lt.s32.totalorder %s320, 7
        %s324 = scalar_select %p323, %s320, 7
        %s325 = smul.addr %s322, 8
        %s326 = sadd.s32 %s324, %s325
        %s327 = smul.addr %s326, 4
        %s328 = scalar_lea.vmem %s3, %s327
        %s329 = smul.u32 4, %s25
        %s330 = smul.u32 4, %s25
        %v332 = vld [vmem:[%s309] sm:$0x1]
        %v333 = vld [vmem:[%s1] sm:$0xff]
        %v334 = vld [vmem:[%s1 + $0x8] sm:$0xff]
        %v335 = vld [vmem:[%s1 + $0x10] sm:$0xff]
        %v336 = vld [vmem:[%s1 + $0x18] sm:$0xff]
        %v337 = vld [vmem:[%s1 + $0x20] sm:$0xff]
        %v338 = vld [vmem:[%s1 + $0x28] sm:$0xff]
        %v339 = vld [vmem:[%s1 + $0x30] sm:$0xff]
        %v340 = vld [vmem:[%s1 + $0x38] sm:$0xff]
        %v341 = vld [vmem:[%s1 + $0x40] sm:$0xff]
        %v342 = vld [vmem:[%s1 + $0x48] sm:$0xff]
        %v343 = vld [vmem:[%s1 + $0x50] sm:$0xff]
        %v344 = vld [vmem:[%s1 + $0x58] sm:$0xff]
        %v345 = vld [vmem:[%s1 + $0x60] sm:$0xff]
        %v346 = vld [vmem:[%s1 + $0x68] sm:$0xff]
        %v347 = vld [vmem:[%s1 + $0x70] sm:$0xff]
        %v348 = vld [vmem:[%s1 + $0x78] sm:$0xff]
        %349 = vmatprep.subr.mxu0 0.0
        %350 = vmatpush1.msra.mxu0 %v333
        %351 = vmatprep.subr.mxu0 0.0
        %352 = vmatpush1.msra.mxu0 %v334
        %353 = vmatprep.subr.mxu0 0.0
        %354 = vmatpush1.msra.mxu0 %v335
        %355 = vmatprep.subr.mxu0 0.0
        %356 = vmatpush1.msra.mxu0 %v336
        %357 = vmatprep.subr.mxu0 0.0
        %358 = vmatpush1.msra.mxu0 %v337
        %359 = vmatprep.subr.mxu0 0.0
        %360 = vmatpush1.msra.mxu0 %v338
        %361 = vmatprep.subr.mxu0 0.0
        %362 = vmatpush1.msra.mxu0 %v339
        %363 = vmatprep.subr.mxu0 0.0
        %364 = vmatpush1.msra.mxu0 %v340
        %365 = vmatprep.subr.mxu0 0.0
        %366 = vmatpush1.msra.mxu0 %v341
        %367 = vmatprep.subr.mxu0 0.0
        %368 = vmatpush1.msra.mxu0 %v342
        %369 = vmatprep.subr.mxu0 0.0
        %370 = vmatpush1.msra.mxu0 %v343
        %371 = vmatprep.subr.mxu0 0.0
        %372 = vmatpush1.msra.mxu0 %v344
        %373 = vmatprep.subr.mxu0 0.0
        %374 = vmatpush1.msra.mxu0 %v345
        %375 = vmatprep.subr.mxu0 0.0
        %376 = vmatpush1.msra.mxu0 %v346
        %377 = vmatprep.subr.mxu0 0.0
        %378 = vmatpush1.msra.mxu0 %v347
        %379 = vmatprep.subr.mxu0 0.0
        %380 = vmatpush1.msra.mxu0 %v348
        %381 = vmatprep.subr.mxu0 0.0
        %382 = vmatpush1.msra.mxu0 0.0
        %383 = vmatprep.subr.mxu0 0.0
        %384 = vmatpush1.msra.mxu0 0.0
        %385 = vmatprep.subr.mxu0 0.0
        %386 = vmatpush1.msra.mxu0 0.0
        %387 = vmatprep.subr.mxu0 0.0
        %388 = vmatpush1.msra.mxu0 0.0
        %389 = vmatprep.subr.mxu0 0.0
        %390 = vmatpush1.msra.mxu0 0.0
        %391 = vmatprep.subr.mxu0 0.0
        %392 = vmatpush1.msra.mxu0 0.0
        %393 = vmatprep.subr.mxu0 0.0
        %394 = vmatpush1.msra.mxu0 0.0
        %395 = vmatprep.subr.mxu0 0.0
        %396 = vmatpush1.msra.mxu0 0.0
        %397 = vmatprep.subr.mxu0 0.0
        %398 = vmatpush1.msra.mxu0 0.0
        %399 = vmatprep.subr.mxu0 0.0
        %400 = vmatpush1.msra.mxu0 0.0
        %401 = vmatprep.subr.mxu0 0.0
        %402 = vmatpush1.msra.mxu0 0.0
        %403 = vmatprep.subr.mxu0 0.0
        %404 = vmatpush1.msra.mxu0 0.0
        %405 = vmatprep.subr.mxu0 0.0
        %406 = vmatpush1.msra.mxu0 0.0
        %407 = vmatprep.subr.mxu0 0.0
        %408 = vmatpush1.msra.mxu0 0.0
        %409 = vmatprep.subr.mxu0 0.0
        %410 = vmatpush1.msra.mxu0 0.0
        %411 = vmatprep.subr.mxu0 0.0
        %412 = vmatpush1.msra.mxu0 0.0
        %413 = vmatprep.mubr.f32.mxu0 0.0
        %414 = vmatmul.mubr.f32.gmra.mrb[0].mxu0 %v332
        %v415 = vpop.f32.mrb[0].mxu0
        %v416 = vadd.f32 0.0, %v415
        %v417 = vpop.f32.mrb[0].mxu0
        %418 = vdwg.mxu0
        %v419 = vsub.f32 0.0, %v416
        %v420 = vmul.f32 %v419, 1.442695
        %v421 = vpow.pop %v420
        %v422 = vadd.f32 %v421, 1.0
        %v423 = vrcp.pop %v422
        %v424 = vmul.f32 1.0, %v423
        %v425 = vld [vmem:[%s318] sm:$0xf]
        %v426 = vld [vmem:[%s318 + $0x4] sm:$0xf]
        %v427 = vld [vmem:[%s318 + $0x8] sm:$0xf]
        %v428 = vld [vmem:[%s318 + $0xc] sm:$0xf]
        %v429 = vunpack.c.l.bf16 %v425
        %v430 = vunpack.c.l.bf16 %v426
        %v431 = vunpack.c.l.bf16 %v427
        %v432 = vunpack.c.l.bf16 %v428
        %v433 = vlaneseq
        %v434 = vshrl.u32 %v433, 7
        %v435 = vsub.s32 0, %v434
        %v436 = vrot.slane %v424, %v435
        %v437 = vmul.f32 %v429, %v436
        %v438 = vmul.f32 %v430, %v436
        %v439 = vmul.f32 %v431, %v436
        %v440 = vmul.f32 %v432, %v436
        %v441 = vld [vmem:[%s328] sm:$0xf]
        %v442 = vld [vmem:[%s328 + $0x4] sm:$0xf]
        %v443 = vld [vmem:[%s328 + $0x8] sm:$0xf]
        %v444 = vld [vmem:[%s328 + $0xc] sm:$0xf]
        %v445 = vld [vmem:[%s4] sm:$0xf]
        %v446 = vld [vmem:[%s4 + $0x4] sm:$0xf]
        %v447 = vld [vmem:[%s4 + $0x8] sm:$0xf]
        %v448 = vld [vmem:[%s4 + $0xc] sm:$0xf]
        %v449 = vld [vmem:[%s4 + $0x10] sm:$0xf]
        %v450 = vld [vmem:[%s4 + $0x14] sm:$0xf]
        %v451 = vld [vmem:[%s4 + $0x18] sm:$0xf]
        %v452 = vld [vmem:[%s4 + $0x1c] sm:$0xf]
        %v453 = vld [vmem:[%s5] sm:$0x1]
        %v455 = vlaneseq
        %v456 = vshrl.u32 %v455, 7
        %v457 = vsub.s32 0, %v456
        %v458 = vrot.slane %v453, %v457
        %v464 = vunpack.c.l.b16 %v441
        %v465 = vunpack.c.l.b16 %v442
        %v466 = vunpack.c.l.b16 %v443
        %v467 = vunpack.c.l.b16 %v444
        %v468 = vpack.c.b16 %v465, %v464
        %v469 = vpack.c.b16 %v467, %v466
        %v478 = vunpack.c.l.b16 %v445
        %v479 = vunpack.c.l.b16 %v446
        %v480 = vunpack.c.l.b16 %v447
        %v481 = vunpack.c.l.b16 %v448
        %v482 = vunpack.c.l.b16 %v449
        %v483 = vunpack.c.l.b16 %v450
        %v484 = vunpack.c.l.b16 %v451
        %v485 = vunpack.c.l.b16 %v452
        %v486 = vpack.c.b16 %v479, %v478
        %v487 = vpack.c.b16 %v481, %v480
        %v488 = vpack.c.b16 %v483, %v482
        %v489 = vpack.c.b16 %v485, %v484
        %vm494 = vcmask 523264
        %v496 = vsel %vm494, %v468, 0
        %v499 = vsel %vm494, %v469, 0
        %501 = vmatprep.subr.bf16.mxu0 0
        %502 = vmatpush1.bf16.msra.mxu0 %v486
        %503 = vmatprep.subr.bf16.mxu0 0
        %504 = vmatpush1.bf16.msra.mxu0 %v487
        %505 = vmatprep.subr.bf16.mxu0 0
        %506 = vmatpush1.bf16.msra.mxu0 %v488
        %507 = vmatprep.subr.bf16.mxu0 0
        %508 = vmatpush1.bf16.msra.mxu0 %v489
        %509 = vmatprep.subr.bf16.mxu0 0
        %510 = vmatpush1.bf16.msra.mxu0 0
        %511 = vmatprep.subr.bf16.mxu0 0
        %512 = vmatpush1.bf16.msra.mxu0 0
        %513 = vmatprep.subr.bf16.mxu0 0
        %514 = vmatpush1.bf16.msra.mxu0 0
        %515 = vmatprep.subr.bf16.mxu0 0
        %516 = vmatpush1.bf16.msra.mxu0 0
        %517 = vmatprep.subr.bf16.mxu0 0
        %518 = vmatpush1.bf16.msra.mxu0 0
        %519 = vmatprep.subr.bf16.mxu0 0
        %520 = vmatpush1.bf16.msra.mxu0 0
        %521 = vmatprep.subr.bf16.mxu0 0
        %522 = vmatpush1.bf16.msra.mxu0 0
        %523 = vmatprep.subr.bf16.mxu0 0
        %524 = vmatpush1.bf16.msra.mxu0 0
        %525 = vmatprep.subr.bf16.mxu0 0
        %526 = vmatpush1.bf16.msra.mxu0 0
        %527 = vmatprep.subr.bf16.mxu0 0
        %528 = vmatpush1.bf16.msra.mxu0 0
        %529 = vmatprep.subr.bf16.mxu0 0
        %530 = vmatpush1.bf16.msra.mxu0 0
        %531 = vmatprep.subr.bf16.mxu0 0
        %532 = vmatpush1.bf16.msra.mxu0 0
        %533 = vmatprep.mubr.bf16.mxu0 0
        %534 = vmatmul.mubr.bf16.gmra.mrb[0].mxu0 %v496
        %v535 = vpop.f32.mrb[0].mxu0
        %v536 = vadd.f32 %v458, %v535
        %v537 = vpop.f32.mrb[0].mxu0
        %v538 = vpop.f32.mrb[0].mxu0
        %v539 = vadd.f32 %v458, %v538
        %v540 = vpop.f32.mrb[0].mxu0
        %541 = vmatprep.mubr.bf16.mxu0 0
        %542 = vmatmul.mubr.bf16.gmra.mrb[0].mxu0 %v499
        %v543 = vpop.f32.mrb[0].mxu0
        %v544 = vadd.f32 %v458, %v543
        %v545 = vpop.f32.mrb[0].mxu0
        %v546 = vpop.f32.mrb[0].mxu0
        %v547 = vadd.f32 %v458, %v546
        %v548 = vpop.f32.mrb[0].mxu0
        %549 = vdwg.mxu0
        %v550 = vadd.f32 %v437, %v536
        %v551 = vadd.f32 %v438, %v539
        %v552 = vadd.f32 %v439, %v544
        %v553 = vadd.f32 %v440, %v547
        %v554 = vmax.f32 %v550, 0.0
        %v555 = vmax.f32 %v551, 0.0
        %v556 = vmax.f32 %v552, 0.0
        %v557 = vmax.f32 %v553, 0.0
        %558 = vst [vmem:[%s306] sm:$0xff] %v554
        %559 = vst [vmem:[%s306 + $0x8] sm:$0xff] %v555
        %560 = vst [vmem:[%s306 + $0x10] sm:$0xff] %v556
        %561 = vst [vmem:[%s306 + $0x18] sm:$0xff] %v557
        %s562 = sand.u32 %s187, 1
        %s563 = scalar_lea.sflag [#allocation3], %s562
        %s564 = sand.u32 %s187, 1
        %s565 = smul.addr %s564, 32
        %s566 = scalar_lea.vmem [#allocation2], %s565
        // Predicated region
        $region45: #{basic_block_forward.5} parent=43 // pred_check
          %p567 = pneg %p197
        $region46: #{basic_block_forward.5} parent=43 // pred_check_branch
          %569 = sbr.rel (%p567) target = $region48
        $region47: #{basic_block_forward.5} parent=43 // pred_region
          %s570 = smul.u32 4, %s25
          %s572 = ssub.s32 512, 512
          %573 = vsyncadd %s563, %s572
          %s574 = smul.addr %s24, 8
          %s575 = sadd.s32 %s570, %s574
          %s576 = smul.addr %s575, 128
          %s577 = scalar_lea.hbm %s6, %s576
          %s578 = sshll.u32 %s566, 4
          %s579 = int_to_ptr.vmem [resolvable:$true] %s578
          %584 = dma.vmem_to_hbm [thread:$0]  %s579, 512, %s577, %s563, 128, 128, 8
        $region48: #{basic_block_forward.5} parent=43 // pred_fallthru
          _
      $region44: #{basic_block_forward.5} parent=5 // pred_fallthru
        _
      %p585 = scmp.le.s32.totalorder 2, %s15
      // Predicated region
      $region49: #{basic_block_forward.5} parent=5 // pred_check
        %p586 = pneg %p585
      $region50: #{basic_block_forward.5} parent=5 // pred_check_branch
        %588 = sbr.rel (%p586) target = $region52
      $region51: #{basic_block_forward.5} parent=5 // pred_region
        %s589 = ssub.s32 %s15, 2
        // Predicated region
        $region53: #{basic_block_forward.5} parent=51 // pred_check
          %p590 = pneg %p203
        $region54: #{basic_block_forward.5} parent=51 // pred_check_branch
          %592 = sbr.rel (%p590) target = $region56
        $region55: #{basic_block_forward.5} parent=51 // pred_region
          %s593 = sand.u32 %s188, 1
          %s594 = scalar_lea.sflag [#allocation3], %s593
          %s595 = sand.u32 %s188, 1
          %s596 = smul.addr %s595, 32
          %s597 = scalar_lea.vmem [#allocation2], %s596
          %598 = dma.done %s594, 512
        $region56: #{basic_block_forward.5} parent=51 // pred_fallthru
          _
      $region52: #{basic_block_forward.5} parent=5 // pred_fallthru
        _
    $region6: #{basic_block_forward.5} parent=1 // loop_footer
      %s19 = sadd.s32 1, %s15
    $region7: #{basic_block_forward.5} parent=1 // loop_footer_branch
      %14 = sbr.rel target = $region3
    $region8: #{basic_block_forward.5} parent=1 // loop_exit
      _
    %599 = vsyncpa [#allocation3], 1
    %s600 = scalar_lea.sflag [#allocation3], 1
    %601 = vsyncpa %s600, 1

// kernel: basic_block_forward.3
$region0: #{basic_block_forward.3}
  #allocation0 [shape = 'u32[]', space=smem, size = 0x4, offset = 0x4, fixed_abs, tag = 'smem constant byte address 0x4 - core index']
  #allocation1 [shape = 'u32[144,128]{1,0:T(1,128)}', space=vmem, size = 0x12000, scoped, tag = 'internal scratch']
  %s0 = inlined_call_operand.vmem [shape: bf16[2,2,9,18,64], index: 0, kind: input, shape index: {}]
  %s1 = inlined_call_operand.vmem [shape: bf16[9,64,128], index: 1, kind: input, shape index: {}]
  %s2 = inlined_call_operand.vmem [shape: f32[1,128], index: 2, kind: input, shape index: {}]
  %s3 = inlined_call_operand.vmem [shape: bf16[2,8,8,128], index: 3, kind: output, shape index: {}]
  %s4 = sld [smem:[#allocation0]]
  $region45: #{basic_block_forward.3} parent=0
    _
  %s6 = ssub.s32 1, %s4
  %s7 = scalar_select 0, %s6, %s4
  loop: start=0, step=1, limit=6
  $region2: #{basic_block_forward.3} parent=0 // loop_pre_header
    _
  $region3: #{basic_block_forward.3} parent=0 // loop_header
    %s9 = sphi 0, %s13
    %p10 = scmp.ge.s32.totalorder %s9, 6
    %s16 = sphi 0, %s28
    %s17 = sphi 0, %s24
    %s18 = sphi 0, %s16
    %s19 = sphi 0, %s17
    %s20 = sphi 0, %s18
    %s21 = sphi 0, %s19
    %s33 = sphi 0, %s35
    %s36 = sphi 0, %s33
    %s37 = sphi 0, %s36
    %s53 = sphi 0, %s37
    %s57 = sphi 0, %s57
    %s59 = sphi 0, %s57
    %s60 = sphi 0, %s59
    %s74 = sphi 0, %s60
    %s78 = sphi 0, %s78
    %s80 = sphi 0, %s78
    %s81 = sphi 0, %s80
    %s95 = sphi 0, %s81
    %s103 = sphi 0, %s105
    %s106 = sphi 0, %s103
    %s107 = sphi 0, %s106
    %s123 = sphi 0, %s107
  $region4: #{basic_block_forward.3} parent=0 // loop_header_branch
    %12 = sbr.rel (%p10) target = $region8
  $region5: #{basic_block_forward.3} parent=0 // loop_body
    %s14 = ssub.s32 %s9, 1
    %s15 = ssub.s32 %s9, 2
    %s22 = sadd.s32 1, %s17
    %p23 = scmp.ge.s32.totalorder %s22, 2
    %s24 = scalar_select %p23, 0, %s22
    %s25 = sadd.s32 1, %s16
    %s26 = scalar_select %p23, %s25, %s16
    %p27 = scmp.ge.s32.totalorder %s26, 2
    %s28 = scalar_select %p27, 0, %s26
    %s29 = ssub.s32 %s16, %s28
    %s30 = ssub.s32 %s17, %s24
    %s31 = sor.u32 %s29, %s30
    %p32 = scmp.eq.s32.totalorder %s31, 0
    %s34 = sadd.s32 %s33, 1
    %s35 = scalar_select %p32, %s33, %s34
    %p38 = pneg %p32
    %p39 = scmp.eq.s32.totalorder %s9, 3
    %p40 = por %p38, %p39
    %p41 = scmp.ne.s32.totalorder %s33, %s36
    %p42 = scmp.eq.s32.totalorder %s9, 0
    %p43 = por %p41, %p42
    %p44 = scmp.ne.s32.totalorder %s33, %s36
    %p45 = scmp.eq.s32.totalorder %s14, 3
    %p46 = por %p44, %p45
    %p47 = scmp.ne.s32.totalorder %s36, %s37
    %p48 = scmp.eq.s32.totalorder %s14, 0
    %p49 = por %p47, %p48
    %p50 = scmp.ne.s32.totalorder %s36, %s37
    %p51 = scmp.eq.s32.totalorder %s15, 3
    %p52 = por %p50, %p51
    %p54 = scmp.ne.s32.totalorder %s37, %s53
    %p55 = scmp.eq.s32.totalorder %s15, 0
    %p56 = por %p54, %p55
    %s58 = sadd.s32 %s57, 1
    %p61 = scmp.eq.s32.totalorder %s9, 3
    %p62 = scmp.ne.s32.totalorder %s57, %s59
    %p63 = scmp.eq.s32.totalorder %s9, 0
    %p64 = por %p62, %p63
    %p65 = scmp.ne.s32.totalorder %s57, %s59
    %p66 = scmp.eq.s32.totalorder %s14, 3
    %p67 = por %p65, %p66
    %p68 = scmp.ne.s32.totalorder %s59, %s60
    %p69 = scmp.eq.s32.totalorder %s14, 0
    %p70 = por %p68, %p69
    %p71 = scmp.ne.s32.totalorder %s59, %s60
    %p72 = scmp.eq.s32.totalorder %s15, 3
    %p73 = por %p71, %p72
    %p75 = scmp.ne.s32.totalorder %s60, %s74
    %p76 = scmp.eq.s32.totalorder %s15, 0
    %p77 = por %p75, %p76
    %s79 = sadd.s32 %s78, 1
    %p82 = scmp.eq.s32.totalorder %s9, 3
    %p83 = scmp.ne.s32.totalorder %s78, %s80
    %p84 = scmp.eq.s32.totalorder %s9, 0
    %p85 = por %p83, %p84
    %p86 = scmp.ne.s32.totalorder %s78, %s80
    %p87 = scmp.eq.s32.totalorder %s14, 3
    %p88 = por %p86, %p87
    %p89 = scmp.ne.s32.totalorder %s80, %s81
    %p90 = scmp.eq.s32.totalorder %s14, 0
    %p91 = por %p89, %p90
    %p92 = scmp.ne.s32.totalorder %s80, %s81
    %p93 = scmp.eq.s32.totalorder %s15, 3
    %p94 = por %p92, %p93
    %p96 = scmp.ne.s32.totalorder %s81, %s95
    %p97 = scmp.eq.s32.totalorder %s15, 0
    %p98 = por %p96, %p97
    %s99 = ssub.s32 %s16, %s28
    %s100 = ssub.s32 %s17, %s24
    %s101 = sor.u32 %s99, %s100
    %p102 = scmp.eq.s32.totalorder %s101, 0
    %s104 = sadd.s32 %s103, 1
    %s105 = scalar_select %p102, %s103, %s104
    %p108 = pneg %p102
    %p109 = scmp.eq.s32.totalorder %s9, 3
    %p110 = por %p108, %p109
    %p111 = scmp.ne.s32.totalorder %s103, %s106
    %p112 = scmp.eq.s32.totalorder %s9, 0
    %p113 = por %p111, %p112
    %p114 = scmp.ne.s32.totalorder %s103, %s106
    %p115 = scmp.eq.s32.totalorder %s14, 3
    %p116 = por %p114, %p115
    %p117 = scmp.ne.s32.totalorder %s106, %s107
    %p118 = scmp.eq.s32.totalorder %s14, 0
    %p119 = por %p117, %p118
    %p120 = scmp.ne.s32.totalorder %s106, %s107
    %p121 = scmp.eq.s32.totalorder %s15, 3
    %p122 = por %p120, %p121
    %p124 = scmp.ne.s32.totalorder %s107, %s123
    %p125 = scmp.eq.s32.totalorder %s15, 0
    %p126 = por %p124, %p125
    %p127 = scmp.le.s32.totalorder 1, %s9
    %p128 = scmp.lt.s32.totalorder %s9, 5
    %p129 = pnand %p127, %p128
    %p130 = pneg %p129
    // Predicated region
    $region9: #{basic_block_forward.3} parent=5 // pred_check
      _
    $region10: #{basic_block_forward.3} parent=5 // pred_check_branch
      %132 = sbr.rel (%p129) target = $region12
    $region11: #{basic_block_forward.3} parent=5 // pred_region
      %s133 = ssub.s32 %s9, 1
      // Predicated region
      $region13: #{basic_block_forward.3} parent=11 // pred_check
        %p134 = pneg %p70
      $region14: #{basic_block_forward.3} parent=11 // pred_check_branch
        %136 = sbr.rel (%p134) target = $region16
      $region15: #{basic_block_forward.3} parent=11 // pred_region
        _
      $region16: #{basic_block_forward.3} parent=11 // pred_fallthru
        _
      // Predicated region
      $region17: #{basic_block_forward.3} parent=11 // pred_check
        %p137 = pneg %p91
      $region18: #{basic_block_forward.3} parent=11 // pred_check_branch
        %139 = sbr.rel (%p137) target = $region20
      $region19: #{basic_block_forward.3} parent=11 // pred_region
        _
      $region20: #{basic_block_forward.3} parent=11 // pred_fallthru
        _
    $region12: #{basic_block_forward.3} parent=5 // pred_fallthru
      _
    %p140 = scmp.lt.s32.totalorder %s9, 4
    // Predicated region
    $region21: #{basic_block_forward.3} parent=5 // pred_check
      %p141 = pneg %p140
    $region22: #{basic_block_forward.3} parent=5 // pred_check_branch
      %143 = sbr.rel (%p141) target = $region24
    $region23: #{basic_block_forward.3} parent=5 // pred_region
      // Predicated region
      $region25: #{basic_block_forward.3} parent=23 // pred_check
        %p144 = pneg %p43
      $region26: #{basic_block_forward.3} parent=23 // pred_check_branch
        %146 = sbr.rel (%p144) target = $region28
      $region27: #{basic_block_forward.3} parent=23 // pred_region
        %p147 = scmp.lt.s32.totalorder %s16, 1
        %s148 = scalar_select %p147, %s16, 1
        %p149 = scmp.lt.s32.totalorder %s17, 1
        %s150 = scalar_select %p149, %s17, 1
        %s151 = smul.addr %s150, 27
        %s152 = smul.addr %s148, 54
        %s153 = sadd.s32 %s151, %s152
        %s154 = smul.addr %s153, 4
        %s155 = scalar_lea.vmem %s0, %s154
      $region28: #{basic_block_forward.3} parent=23 // pred_fallthru
        _
    $region24: #{basic_block_forward.3} parent=5 // pred_fallthru
      _
    %p156 = scmp.le.s32.totalorder 1, %s9
    %p157 = scmp.lt.s32.totalorder %s9, 5
    %p158 = pnand %p156, %p157
    %p159 = pneg %p158
    // Predicated region
    $region29: #{basic_block_forward.3} parent=5 // pred_check
      _
    $region30: #{basic_block_forward.3} parent=5 // pred_check_branch
      %161 = sbr.rel (%p158) target = $region32
    $region31: #{basic_block_forward.3} parent=5 // pred_region
      %s162 = ssub.s32 %s9, 1
      %p163 = scmp.lt.s32.totalorder %s18, 1
      %s164 = scalar_select %p163, %s18, 1
      %p165 = scmp.lt.s32.totalorder %s19, 1
      %s166 = scalar_select %p165, %s19, 1
      %s167 = smul.addr %s166, 27
      %s168 = smul.addr %s164, 54
      %s169 = sadd.s32 %s167, %s168
      %s170 = smul.addr %s169, 4
      %s171 = scalar_lea.vmem %s0, %s170
      %p172 = pneg %p49
      %p173 = pneg %p46
      %p174 = pneg %p70
      %p175 = pneg %p67
      %p176 = pneg %p91
      %p177 = pneg %p88
      %p178 = pneg %p119
      %p179 = pneg %p116
      %s180 = smul.u32 4, %s19
      %p181 = scmp.lt.s32.totalorder %s18, 1
      %s182 = scalar_select %p181, %s18, 1
      %p183 = scmp.lt.s32.totalorder %s180, 7
      %s184 = scalar_select %p183, %s180, 7
      %s185 = smul.addr %s182, 8
      %s186 = sadd.s32 %s184, %s185
      %s187 = smul.addr %s186, 4
      %s188 = scalar_lea.vmem %s3, %s187
      %p189 = scmp.lt.s32.totalorder %s18, 1
      %s190 = scalar_select %p189, %s18, 1
      %p191 = scmp.lt.s32.totalorder %s19, 1
      %s192 = scalar_select %p191, %s19, 1
      %s193 = smul.addr %s192, 27
      %s194 = smul.addr %s190, 54
      %s195 = sadd.s32 %s193, %s194
      %s196 = smul.addr %s195, 4
      %s197 = scalar_lea.vmem %s0, %s196
      %s198 = smul.u32 4, %s19
      %p199 = scmp.lt.s32.totalorder %s18, 1
      %s200 = scalar_select %p199, %s18, 1
      %p201 = scmp.lt.s32.totalorder %s198, 7
      %s202 = scalar_select %p201, %s198, 7
      %s203 = smul.addr %s200, 8
      %s204 = sadd.s32 %s202, %s203
      %s205 = smul.addr %s204, 4
      %s206 = scalar_lea.vmem %s3, %s205
      %s207 = smul.u32 4, %s19
      %v209 = vld [vmem:[%s197] sm:$0xf]
      %v210 = vld [vmem:[%s197 + $0xc] sm:$0xf]
      %v211 = vld [vmem:[%s197 + $0x18] sm:$0xf]
      %v212 = vld [vmem:[%s197 + $0x24] sm:$0xf]
      %v213 = vld [vmem:[%s1] sm:$0xf]
      %v214 = vld [vmem:[%s1 + $0x4] sm:$0xf]
      %v215 = vld [vmem:[%s1 + $0x8] sm:$0xf]
      %v216 = vld [vmem:[%s1 + $0xc] sm:$0xf]
      %v217 = vld [vmem:[%s1 + $0x10] sm:$0xf]
      %v218 = vld [vmem:[%s1 + $0x14] sm:$0xf]
      %v219 = vld [vmem:[%s1 + $0x18] sm:$0xf]
      %v220 = vld [vmem:[%s1 + $0x1c] sm:$0xf]
      %v221 = vld [vmem:[%s197 + $0x4] sm:$0xf]
      %v222 = vld [vmem:[%s197 + $0x8] sm:$0x1]
      %v223 = vld [vmem:[%s197 + $0x10] sm:$0xf]
      %v224 = vld [vmem:[%s197 + $0x14] sm:$0x1]
      %v225 = vld [vmem:[%s197 + $0x1c] sm:$0xf]
      %v226 = vld [vmem:[%s197 + $0x20] sm:$0x1]
      %v227 = vld [vmem:[%s197 + $0x28] sm:$0xf]
      %v228 = vld [vmem:[%s197 + $0x2c] sm:$0x1]
      %vm229 = vsmask.f32 3328
      %vm230 = vsmask.f32 7440
      %vm231 = vmor %vm229, %vm230
      %v233 = vshrl.u32 %v221, 16
      %v235 = vrot.slane %v233, 4
      %v236 = vshll.u32 %v221, 16
      %v238 = vrot.slane %v236, 5
      %v239 = vor.u32 %v235, %v238
      %v240 = vrot.slane %v239, 4
      %v242 = vshll.u32 %v222, 16
      %v244 = vrot.slane %v242, 5
      %v245 = vsel %vm231, %v240, %v244
      %v247 = vshrl.u32 %v223, 16
      %v249 = vrot.slane %v247, 4
      %v250 = vshll.u32 %v223, 16
      %v252 = vrot.slane %v250, 5
      %v253 = vor.u32 %v249, %v252
      %v254 = vrot.slane %v253, 4
      %v256 = vshll.u32 %v224, 16
      %v258 = vrot.slane %v256, 5
      %v259 = vsel %vm231, %v254, %v258
      %v261 = vshrl.u32 %v225, 16
      %v263 = vrot.slane %v261, 4
      %v264 = vshll.u32 %v225, 16
      %v266 = vrot.slane %v264, 5
      %v267 = vor.u32 %v263, %v266
      %v268 = vrot.slane %v267, 4
      %v270 = vshll.u32 %v226, 16
      %v272 = vrot.slane %v270, 5
      %v273 = vsel %vm231, %v268, %v272
      %v275 = vshrl.u32 %v227, 16
      %v277 = vrot.slane %v275, 4
      %v278 = vshll.u32 %v227, 16
      %v280 = vrot.slane %v278, 5
      %v281 = vor.u32 %v277, %v280
      %v282 = vrot.slane %v281, 4
      %v284 = vshll.u32 %v228, 16
      %v286 = vrot.slane %v284, 5
      %v287 = vsel %vm231, %v282, %v286
      %s288 = scalar_lea.vmem %s1, 32
      %v289 = vld [vmem:[%s288] sm:$0xf]
      %v290 = vld [vmem:[%s288 + $0x4] sm:$0xf]
      %v291 = vld [vmem:[%s288 + $0x8] sm:$0xf]
      %v292 = vld [vmem:[%s288 + $0xc] sm:$0xf]
      %v293 = vld [vmem:[%s288 + $0x10] sm:$0xf]
      %v294 = vld [vmem:[%s288 + $0x14] sm:$0xf]
      %v295 = vld [vmem:[%s288 + $0x18] sm:$0xf]
      %v296 = vld [vmem:[%s288 + $0x1c] sm:$0xf]
      %v297 = vunpack.c.l.b16 %v245
      %v298 = vunpack.c.l.b16 %v259
      %v299 = vunpack.c.l.b16 %v273
      %v300 = vunpack.c.l.b16 %v287
      %v301 = vpack.c.b16 %v298, %v297
      %v302 = vpack.c.b16 %v300, %v299
      %v311 = vunpack.c.l.b16 %v289
      %v312 = vunpack.c.l.b16 %v290
      %v313 = vunpack.c.l.b16 %v291
      %v314 = vunpack.c.l.b16 %v292
      %v315 = vunpack.c.l.b16 %v293
      %v316 = vunpack.c.l.b16 %v294
      %v317 = vunpack.c.l.b16 %v295
      %v318 = vunpack.c.l.b16 %v296
      %v319 = vpack.c.b16 %v312, %v311
      %v320 = vpack.c.b16 %v314, %v313
      %v321 = vpack.c.b16 %v316, %v315
      %v322 = vpack.c.b16 %v318, %v317
      %vm327 = vcmask 523264
      %v329 = vsel %vm327, %v301, 0
      %v332 = vsel %vm327, %v302, 0
      %334 = vmatprep.subr.bf16.mxu0 0
      %335 = vmatpush1.bf16.msra.mxu0 %v319
      %336 = vmatprep.subr.bf16.mxu0 0
      %337 = vmatpush1.bf16.msra.mxu0 %v320
      %338 = vmatprep.subr.bf16.mxu0 0
      %339 = vmatpush1.bf16.msra.mxu0 %v321
      %340 = vmatprep.subr.bf16.mxu0 0
      %341 = vmatpush1.bf16.msra.mxu0 %v322
      %342 = vmatprep.subr.bf16.mxu0 0
      %343 = vmatpush1.bf16.msra.mxu0 0
      %344 = vmatprep.subr.bf16.mxu0 0
      %345 = vmatpush1.bf16.msra.mxu0 0
      %346 = vmatprep.subr.bf16.mxu0 0
      %347 = vmatpush1.bf16.msra.mxu0 0
      %348 = vmatprep.subr.bf16.mxu0 0
      %349 = vmatpush1.bf16.msra.mxu0 0
      %350 = vmatprep.subr.bf16.mxu0 0
      %351 = vmatpush1.bf16.msra.mxu0 0
      %352 = vmatprep.subr.bf16.mxu0 0
      %353 = vmatpush1.bf16.msra.mxu0 0
      %354 = vmatprep.subr.bf16.mxu0 0
      %355 = vmatpush1.bf16.msra.mxu0 0
      %356 = vmatprep.subr.bf16.mxu0 0
      %357 = vmatpush1.bf16.msra.mxu0 0
      %358 = vmatprep.subr.bf16.mxu0 0
      %359 = vmatpush1.bf16.msra.mxu0 0
      %360 = vmatprep.subr.bf16.mxu0 0
      %361 = vmatpush1.bf16.msra.mxu0 0
      %362 = vmatprep.subr.bf16.mxu0 0
      %363 = vmatpush1.bf16.msra.mxu0 0
      %364 = vmatprep.subr.bf16.mxu0 0
      %365 = vmatpush1.bf16.msra.mxu0 0
      %366 = vmatprep.mubr.bf16.mxu0 0
      %367 = vmatmul.mubr.bf16.gmra.mrb[0].mxu0 %v329
      %v368 = vpop.f32.mrb[0].mxu0
      %v369 = vadd.f32 0.0, %v368
      %v370 = vpop.f32.mrb[0].mxu0
      %v371 = vpop.f32.mrb[0].mxu0
      %v372 = vadd.f32 0.0, %v371
      %v373 = vpop.f32.mrb[0].mxu0
      %374 = vmatprep.mubr.bf16.mxu0 0
      %375 = vmatmul.mubr.bf16.gmra.mrb[0].mxu0 %v332
      %v376 = vpop.f32.mrb[0].mxu0
      %v377 = vadd.f32 0.0, %v376
      %v378 = vpop.f32.mrb[0].mxu0
      %v379 = vpop.f32.mrb[0].mxu0
      %v380 = vadd.f32 0.0, %v379
      %v381 = vpop.f32.mrb[0].mxu0
      %382 = vdwg.mxu0
      %v387 = vunpack.c.l.b16 %v209
      %v388 = vunpack.c.l.b16 %v210
      %v389 = vunpack.c.l.b16 %v211
      %v390 = vunpack.c.l.b16 %v212
      %v391 = vpack.c.b16 %v388, %v387
      %v392 = vpack.c.b16 %v390, %v389
      %v401 = vunpack.c.l.b16 %v213
      %v402 = vunpack.c.l.b16 %v214
      %v403 = vunpack.c.l.b16 %v215
      %v404 = vunpack.c.l.b16 %v216
      %v405 = vunpack.c.l.b16 %v217
      %v406 = vunpack.c.l.b16 %v218
      %v407 = vunpack.c.l.b16 %v219
      %v408 = vunpack.c.l.b16 %v220
      %v409 = vpack.c.b16 %v402, %v401
      %v410 = vpack.c.b16 %v404, %v403
      %v411 = vpack.c.b16 %v406, %v405
      %v412 = vpack.c.b16 %v408, %v407
      %v418 = vsel %vm327, %v391, 0
      %v421 = vsel %vm327, %v392, 0
      %423 = vmatprep.subr.bf16.mxu0 0
      %424 = vmatpush1.bf16.msra.mxu0 %v409
      %425 = vmatprep.subr.bf16.mxu0 0
      %426 = vmatpush1.bf16.msra.mxu0 %v410
      %427 = vmatprep.subr.bf16.mxu0 0
      %428 = vmatpush1.bf16.msra.mxu0 %v411
      %429 = vmatprep.subr.bf16.mxu0 0
      %430 = vmatpush1.bf16.msra.mxu0 %v412
      %431 = vmatprep.subr.bf16.mxu0 0
      %432 = vmatpush1.bf16.msra.mxu0 0
      %433 = vmatprep.subr.bf16.mxu0 0
      %434 = vmatpush1.bf16.msra.mxu0 0
      %435 = vmatprep.subr.bf16.mxu0 0
      %436 = vmatpush1.bf16.msra.mxu0 0
      %437 = vmatprep.subr.bf16.mxu0 0
      %438 = vmatpush1.bf16.msra.mxu0 0
      %439 = vmatprep.subr.bf16.mxu0 0
      %440 = vmatpush1.bf16.msra.mxu0 0
      %441 = vmatprep.subr.bf16.mxu0 0
      %442 = vmatpush1.bf16.msra.mxu0 0
      %443 = vmatprep.subr.bf16.mxu0 0
      %444 = vmatpush1.bf16.msra.mxu0 0
      %445 = vmatprep.subr.bf16.mxu0 0
      %446 = vmatpush1.bf16.msra.mxu0 0
      %447 = vmatprep.subr.bf16.mxu0 0
      %448 = vmatpush1.bf16.msra.mxu0 0
      %449 = vmatprep.subr.bf16.mxu0 0
      %450 = vmatpush1.bf16.msra.mxu0 0
      %451 = vmatprep.subr.bf16.mxu0 0
      %452 = vmatpush1.bf16.msra.mxu0 0
      %453 = vmatprep.subr.bf16.mxu0 0
      %454 = vmatpush1.bf16.msra.mxu0 0
      %455 = vmatprep.mubr.bf16.mxu0 0
      %456 = vmatmul.mubr.bf16.gmra.mrb[0].mxu0 %v418
      %v457 = vpop.f32.mrb[0].mxu0
      %v458 = vadd.f32 %v369, %v457
      %v459 = vpop.f32.mrb[0].mxu0
      %v460 = vpop.f32.mrb[0].mxu0
      %v461 = vadd.f32 %v372, %v460
      %v462 = vpop.f32.mrb[0].mxu0
      %463 = vmatprep.mubr.bf16.mxu0 0
      %464 = vmatmul.mubr.bf16.gmra.mrb[0].mxu0 %v421
      %v465 = vpop.f32.mrb[0].mxu0
      %v466 = vadd.f32 %v377, %v465
      %v467 = vpop.f32.mrb[0].mxu0
      %v468 = vpop.f32.mrb[0].mxu0
      %v469 = vadd.f32 %v380, %v468
      %v470 = vpop.f32.mrb[0].mxu0
      %471 = vdwg.mxu0
      %v472 = vld [vmem:[%s197] sm:$0xf]
      %v473 = vld [vmem:[%s197 + $0x4] sm:$0x1]
      %v474 = vld [vmem:[%s197 + $0xc] sm:$0xf]
      %v475 = vld [vmem:[%s197 + $0x10] sm:$0x1]
      %v476 = vld [vmem:[%s197 + $0x18] sm:$0xf]
      %v477 = vld [vmem:[%s197 + $0x1c] sm:$0x1]
      %v478 = vld [vmem:[%s197 + $0x24] sm:$0xf]
      %v479 = vld [vmem:[%s197 + $0x28] sm:$0x1]
      %v481 = vshrl.u32 %v472, 16
      %v483 = vrot.slane %v481, 4
      %v484 = vshll.u32 %v472, 16
      %v486 = vrot.slane %v484, 5
      %v487 = vor.u32 %v483, %v486
      %v488 = vrot.slane %v487, 4
      %v490 = vshll.u32 %v473, 16
      %v492 = vrot.slane %v490, 5
      %v493 = vsel %vm231, %v488, %v492
      %v495 = vshrl.u32 %v474, 16
      %v497 = vrot.slane %v495, 4
      %v498 = vshll.u32 %v474, 16
      %v500 = vrot.slane %v498, 5
      %v501 = vor.u32 %v497, %v500
      %v502 = vrot.slane %v501, 4
      %v504 = vshll.u32 %v475, 16
      %v506 = vrot.slane %v504, 5
      %v507 = vsel %vm231, %v502, %v506
      %v509 = vshrl.u32 %v476, 16
      %v511 = vrot.slane %v509, 4
      %v512 = vshll.u32 %v476, 16
      %v514 = vrot.slane %v512, 5
      %v515 = vor.u32 %v511, %v514
      %v516 = vrot.slane %v515, 4
      %v518 = vshll.u32 %v477, 16
      %v520 = vrot.slane %v518, 5
      %v521 = vsel %vm231, %v516, %v520
      %v523 = vshrl.u32 %v478, 16
      %v525 = vrot.slane %v523, 4
      %v526 = vshll.u32 %v478, 16
      %v528 = vrot.slane %v526, 5
      %v529 = vor.u32 %v525, %v528
      %v530 = vrot.slane %v529, 4
      %v532 = vshll.u32 %v479, 16
      %v534 = vrot.slane %v532, 5
      %v535 = vsel %vm231, %v530, %v534
      %s536 = scalar_lea.vmem %s1, 64
      %v537 = vld [vmem:[%s536] sm:$0xf]
      %v538 = vld [vmem:[%s536 + $0x4] sm:$0xf]
      %v539 = vld [vmem:[%s536 + $0x8] sm:$0xf]
      %v540 = vld [vmem:[%s536 + $0xc] sm:$0xf]
      %v541 = vld [vmem:[%s536 + $0x10] sm:$0xf]
      %v542 = vld [vmem:[%s536 + $0x14] sm:$0xf]
      %v543 = vld [vmem:[%s536 + $0x18] sm:$0xf]
      %v544 = vld [vmem:[%s536 + $0x1c] sm:$0xf]
      %v545 = vunpack.c.l.b16 %v493
      %v546 = vunpack.c.l.b16 %v507
      %v547 = vunpack.c.l.b16 %v521
      %v548 = vunpack.c.l.b16 %v535
      %v549 = vpack.c.b16 %v546, %v545
      %v550 = vpack.c.b16 %v548, %v547
      %v559 = vunpack.c.l.b16 %v537
      %v560 = vunpack.c.l.b16 %v538
      %v561 = vunpack.c.l.b16 %v539
      %v562 = vunpack.c.l.b16 %v540
      %v563 = vunpack.c.l.b16 %v541
      %v564 = vunpack.c.l.b16 %v542
      %v565 = vunpack.c.l.b16 %v543
      %v566 = vunpack.c.l.b16 %v544
      %v567 = vpack.c.b16 %v560, %v559
      %v568 = vpack.c.b16 %v562, %v561
      %v569 = vpack.c.b16 %v564, %v563
      %v570 = vpack.c.b16 %v566, %v565
      %v576 = vsel %vm327, %v549, 0
      %v579 = vsel %vm327, %v550, 0
      %581 = vmatprep.subr.bf16.mxu0 0
      %582 = vmatpush1.bf16.msra.mxu0 %v567
      %583 = vmatprep.subr.bf16.mxu0 0
      %584 = vmatpush1.bf16.msra.mxu0 %v568
      %585 = vmatprep.subr.bf16.mxu0 0
      %586 = vmatpush1.bf16.msra.mxu0 %v569
      %587 = vmatprep.subr.bf16.mxu0 0
      %588 = vmatpush1.bf16.msra.mxu0 %v570
      %589 = vmatprep.subr.bf16.mxu0 0
      %590 = vmatpush1.bf16.msra.mxu0 0
      %591 = vmatprep.subr.bf16.mxu0 0
      %592 = vmatpush1.bf16.msra.mxu0 0
      %593 = vmatprep.subr.bf16.mxu0 0
      %594 = vmatpush1.bf16.msra.mxu0 0
      %595 = vmatprep.subr.bf16.mxu0 0
      %596 = vmatpush1.bf16.msra.mxu0 0
      %597 = vmatprep.subr.bf16.mxu0 0
      %598 = vmatpush1.bf16.msra.mxu0 0
      %599 = vmatprep.subr.bf16.mxu0 0
      %600 = vmatpush1.bf16.msra.mxu0 0
      %601 = vmatprep.subr.bf16.mxu0 0
      %602 = vmatpush1.bf16.msra.mxu0 0
      %603 = vmatprep.subr.bf16.mxu0 0
      %604 = vmatpush1.bf16.msra.mxu0 0
      %605 = vmatprep.subr.bf16.mxu0 0
      %606 = vmatpush1.bf16.msra.mxu0 0
      %607 = vmatprep.subr.bf16.mxu0 0
      %608 = vmatpush1.bf16.msra.mxu0 0
      %609 = vmatprep.subr.bf16.mxu0 0
      %610 = vmatpush1.bf16.msra.mxu0 0
      %611 = vmatprep.subr.bf16.mxu0 0
      %612 = vmatpush1.bf16.msra.mxu0 0
      %613 = vmatprep.mubr.bf16.mxu0 0
      %614 = vmatmul.mubr.bf16.gmra.mrb[0].mxu0 %v576
      %v615 = vpop.f32.mrb[0].mxu0
      %v616 = vadd.f32 0.0, %v615
      %v617 = vpop.f32.mrb[0].mxu0
      %v618 = vpop.f32.mrb[0].mxu0
      %v619 = vadd.f32 0.0, %v618
      %v620 = vpop.f32.mrb[0].mxu0
      %621 = vmatprep.mubr.bf16.mxu0 0
      %622 = vmatmul.mubr.bf16.gmra.mrb[0].mxu0 %v579
      %v623 = vpop.f32.mrb[0].mxu0
      %v624 = vadd.f32 0.0, %v623
      %v625 = vpop.f32.mrb[0].mxu0
      %v626 = vpop.f32.mrb[0].mxu0
      %v627 = vadd.f32 0.0, %v626
      %v628 = vpop.f32.mrb[0].mxu0
      %629 = vdwg.mxu0
      %v630 = vadd.f32 %v458, %v616
      %v631 = vadd.f32 %v461, %v619
      %v632 = vadd.f32 %v466, %v624
      %v633 = vadd.f32 %v469, %v627
      %s634 = scalar_lea.vmem %s197, 60
      %v635 = vld [vmem:[%s634] sm:$0xf]
      %v636 = vld [vmem:[%s634 + $0xc] sm:$0xf]
      %v637 = vld [vmem:[%s634 + $0x18] sm:$0xf]
      %v638 = vld [vmem:[%s634 + $0x24] sm:$0xf]
      %s639 = scalar_lea.vmem %s1, 96
      %v640 = vld [vmem:[%s639] sm:$0xf]
      %v641 = vld [vmem:[%s639 + $0x4] sm:$0xf]
      %v642 = vld [vmem:[%s639 + $0x8] sm:$0xf]
      %v643 = vld [vmem:[%s639 + $0xc] sm:$0xf]
      %v644 = vld [vmem:[%s639 + $0x10] sm:$0xf]
      %v645 = vld [vmem:[%s639 + $0x14] sm:$0xf]
      %v646 = vld [vmem:[%s639 + $0x18] sm:$0xf]
      %v647 = vld [vmem:[%s639 + $0x1c] sm:$0xf]
      %v652 = vunpack.c.l.b16 %v635
      %v653 = vunpack.c.l.b16 %v636
      %v654 = vunpack.c.l.b16 %v637
      %v655 = vunpack.c.l.b16 %v638
      %v656 = vpack.c.b16 %v653, %v652
      %v657 = vpack.c.b16 %v655, %v654
      %v666 = vunpack.c.l.b16 %v640
      %v667 = vunpack.c.l.b16 %v641
      %v668 = vunpack.c.l.b16 %v642
      %v669 = vunpack.c.l.b16 %v643
      %v670 = vunpack.c.l.b16 %v644
      %v671 = vunpack.c.l.b16 %v645
      %v672 = vunpack.c.l.b16 %v646
      %v673 = vunpack.c.l.b16 %v647
      %v674 = vpack.c.b16 %v667, %v666
      %v675 = vpack.c.b16 %v669, %v668
      %v676 = vpack.c.b16 %v671, %v670
      %v677 = vpack.c.b16 %v673, %v672
      %v683 = vsel %vm327, %v656, 0
      %v686 = vsel %vm327, %v657, 0
      %688 = vmatprep.subr.bf16.mxu0 0
      %689 = vmatpush1.bf16.msra.mxu0 %v674
      %690 = vmatprep.subr.bf16.mxu0 0
      %691 = vmatpush1.bf16.msra.mxu0 %v675
      %692 = vmatprep.subr.bf16.mxu0 0
      %693 = vmatpush1.bf16.msra.mxu0 %v676
      %694 = vmatprep.subr.bf16.mxu0 0
      %695 = vmatpush1.bf16.msra.mxu0 %v677
      %696 = vmatprep.subr.bf16.mxu0 0
      %697 = vmatpush1.bf16.msra.mxu0 0
      %698 = vmatprep.subr.bf16.mxu0 0
      %699 = vmatpush1.bf16.msra.mxu0 0
      %700 = vmatprep.subr.bf16.mxu0 0
      %701 = vmatpush1.bf16.msra.mxu0 0
      %702 = vmatprep.subr.bf16.mxu0 0
      %703 = vmatpush1.bf16.msra.mxu0 0
      %704 = vmatprep.subr.bf16.mxu0 0
      %705 = vmatpush1.bf16.msra.mxu0 0
      %706 = vmatprep.subr.bf16.mxu0 0
      %707 = vmatpush1.bf16.msra.mxu0 0
      %708 = vmatprep.subr.bf16.mxu0 0
      %709 = vmatpush1.bf16.msra.mxu0 0
      %710 = vmatprep.subr.bf16.mxu0 0
      %711 = vmatpush1.bf16.msra.mxu0 0
      %712 = vmatprep.subr.bf16.mxu0 0
      %713 = vmatpush1.bf16.msra.mxu0 0
      %714 = vmatprep.subr.bf16.mxu0 0
      %715 = vmatpush1.bf16.msra.mxu0 0
      %716 = vmatprep.subr.bf16.mxu0 0
      %717 = vmatpush1.bf16.msra.mxu0 0
      %718 = vmatprep.subr.bf16.mxu0 0
      %719 = vmatpush1.bf16.msra.mxu0 0
      %720 = vmatprep.mubr.bf16.mxu0 0
      %721 = vmatmul.mubr.bf16.gmra.mrb[0].mxu0 %v683
      %v722 = vpop.f32.mrb[0].mxu0
      %v723 = vadd.f32 0.0, %v722
      %v724 = vpop.f32.mrb[0].mxu0
      %v725 = vpop.f32.mrb[0].mxu0
      %v726 = vadd.f32 0.0, %v725
      %v727 = vpop.f32.mrb[0].mxu0
      %728 = vmatprep.mubr.bf16.mxu0 0
      %729 = vmatmul.mubr.bf16.gmra.mrb[0].mxu0 %v686
      %v730 = vpop.f32.mrb[0].mxu0
      %v731 = vadd.f32 0.0, %v730
      %v732 = vpop.f32.mrb[0].mxu0
      %v733 = vpop.f32.mrb[0].mxu0
      %v734 = vadd.f32 0.0, %v733
      %v735 = vpop.f32.mrb[0].mxu0
      %736 = vdwg.mxu0
      %v737 = vadd.f32 %v630, %v723
      %v738 = vadd.f32 %v631, %v726
      %v739 = vadd.f32 %v632, %v731
      %v740 = vadd.f32 %v633, %v734
      %v741 = vld [vmem:[%s634 + $0x4] sm:$0xf]
      %v742 = vld [vmem:[%s634 + $0x8] sm:$0x1]
      %v743 = vld [vmem:[%s634 + $0x10] sm:$0xf]
      %v744 = vld [vmem:[%s634 + $0x14] sm:$0x1]
      %v745 = vld [vmem:[%s634 + $0x1c] sm:$0xf]
      %v746 = vld [vmem:[%s634 + $0x20] sm:$0x1]
      %v747 = vld [vmem:[%s634 + $0x28] sm:$0xf]
      %v748 = vld [vmem:[%s634 + $0x2c] sm:$0x1]
      %v750 = vshrl.u32 %v741, 16
      %v752 = vrot.slane %v750, 4
      %v753 = vshll.u32 %v741, 16
      %v755 = vrot.slane %v753, 5
      %v756 = vor.u32 %v752, %v755
      %v757 = vrot.slane %v756, 4
      %v759 = vshll.u32 %v742, 16
      %v761 = vrot.slane %v759, 5
      %v762 = vsel %vm231, %v757, %v761
      %v764 = vshrl.u32 %v743, 16
      %v766 = vrot.slane %v764, 4
      %v767 = vshll.u32 %v743, 16
      %v769 = vrot.slane %v767, 5
      %v770 = vor.u32 %v766, %v769
      %v771 = vrot.slane %v770, 4
      %v773 = vshll.u32 %v744, 16
      %v775 = vrot.slane %v773, 5
      %v776 = vsel %vm231, %v771, %v775
      %v778 = vshrl.u32 %v745, 16
      %v780 = vrot.slane %v778, 4
      %v781 = vshll.u32 %v745, 16
      %v783 = vrot.slane %v781, 5
      %v784 = vor.u32 %v780, %v783
      %v785 = vrot.slane %v784, 4
      %v787 = vshll.u32 %v746, 16
      %v789 = vrot.slane %v787, 5
      %v790 = vsel %vm231, %v785, %v789
      %v792 = vshrl.u32 %v747, 16
      %v794 = vrot.slane %v792, 4
      %v795 = vshll.u32 %v747, 16
      %v797 = vrot.slane %v795, 5
      %v798 = vor.u32 %v794, %v797
      %v799 = vrot.slane %v798, 4
      %v801 = vshll.u32 %v748, 16
      %v803 = vrot.slane %v801, 5
      %v804 = vsel %vm231, %v799, %v803
      %s805 = scalar_lea.vmem %s1, 128
      %v806 = vld [vmem:[%s805] sm:$0xf]
      %v807 = vld [vmem:[%s805 + $0x4] sm:$0xf]
      %v808 = vld [vmem:[%s805 + $0x8] sm:$0xf]
      %v809 = vld [vmem:[%s805 + $0xc] sm:$0xf]
      %v810 = vld [vmem:[%s805 + $0x10] sm:$0xf]
      %v811 = vld [vmem:[%s805 + $0x14] sm:$0xf]
      %v812 = vld [vmem:[%s805 + $0x18] sm:$0xf]
      %v813 = vld [vmem:[%s805 + $0x1c] sm:$0xf]
      %v814 = vunpack.c.l.b16 %v762
      %v815 = vunpack.c.l.b16 %v776
      %v816 = vunpack.c.l.b16 %v790
      %v817 = vunpack.c.l.b16 %v804
      %v818 = vpack.c.b16 %v815, %v814
      %v819 = vpack.c.b16 %v817, %v816
      %v828 = vunpack.c.l.b16 %v806
      %v829 = vunpack.c.l.b16 %v807
      %v830 = vunpack.c.l.b16 %v808
      %v831 = vunpack.c.l.b16 %v809
      %v832 = vunpack.c.l.b16 %v810
      %v833 = vunpack.c.l.b16 %v811
      %v834 = vunpack.c.l.b16 %v812
      %v835 = vunpack.c.l.b16 %v813
      %v836 = vpack.c.b16 %v829, %v828
      %v837 = vpack.c.b16 %v831, %v830
      %v838 = vpack.c.b16 %v833, %v832
      %v839 = vpack.c.b16 %v835, %v834
      %v845 = vsel %vm327, %v818, 0
      %v848 = vsel %vm327, %v819, 0
      %850 = vmatprep.subr.bf16.mxu0 0
      %851 = vmatpush1.bf16.msra.mxu0 %v836
      %852 = vmatprep.subr.bf16.mxu0 0
      %853 = vmatpush1.bf16.msra.mxu0 %v837
      %854 = vmatprep.subr.bf16.mxu0 0
      %855 = vmatpush1.bf16.msra.mxu0 %v838
      %856 = vmatprep.subr.bf16.mxu0 0
      %857 = vmatpush1.bf16.msra.mxu0 %v839
      %858 = vmatprep.subr.bf16.mxu0 0
      %859 = vmatpush1.bf16.msra.mxu0 0
      %860 = vmatprep.subr.bf16.mxu0 0
      %861 = vmatpush1.bf16.msra.mxu0 0
      %862 = vmatprep.subr.bf16.mxu0 0
      %863 = vmatpush1.bf16.msra.mxu0 0
      %864 = vmatprep.subr.bf16.mxu0 0
      %865 = vmatpush1.bf16.msra.mxu0 0
      %866 = vmatprep.subr.bf16.mxu0 0
      %867 = vmatpush1.bf16.msra.mxu0 0
      %868 = vmatprep.subr.bf16.mxu0 0
      %869 = vmatpush1.bf16.msra.mxu0 0
      %870 = vmatprep.subr.bf16.mxu0 0
      %871 = vmatpush1.bf16.msra.mxu0 0
      %872 = vmatprep.subr.bf16.mxu0 0
      %873 = vmatpush1.bf16.msra.mxu0 0
      %874 = vmatprep.subr.bf16.mxu0 0
      %875 = vmatpush1.bf16.msra.mxu0 0
      %876 = vmatprep.subr.bf16.mxu0 0
      %877 = vmatpush1.bf16.msra.mxu0 0
      %878 = vmatprep.subr.bf16.mxu0 0
      %879 = vmatpush1.bf16.msra.mxu0 0
      %880 = vmatprep.subr.bf16.mxu0 0
      %881 = vmatpush1.bf16.msra.mxu0 0
      %882 = vmatprep.mubr.bf16.mxu0 0
      %883 = vmatmul.mubr.bf16.gmra.mrb[0].mxu0 %v845
      %v884 = vpop.f32.mrb[0].mxu0
      %v885 = vadd.f32 0.0, %v884
      %v886 = vpop.f32.mrb[0].mxu0
      %v887 = vpop.f32.mrb[0].mxu0
      %v888 = vadd.f32 0.0, %v887
      %v889 = vpop.f32.mrb[0].mxu0
      %890 = vmatprep.mubr.bf16.mxu0 0
      %891 = vmatmul.mubr.bf16.gmra.mrb[0].mxu0 %v848
      %v892 = vpop.f32.mrb[0].mxu0
      %v893 = vadd.f32 0.0, %v892
      %v894 = vpop.f32.mrb[0].mxu0
      %v895 = vpop.f32.mrb[0].mxu0
      %v896 = vadd.f32 0.0, %v895
      %v897 = vpop.f32.mrb[0].mxu0
      %898 = vdwg.mxu0
      %v899 = vadd.f32 %v737, %v885
      %v900 = vadd.f32 %v738, %v888
      %v901 = vadd.f32 %v739, %v893
      %v902 = vadd.f32 %v740, %v896
      %v903 = vld [vmem:[%s634] sm:$0xf]
      %v904 = vld [vmem:[%s634 + $0x4] sm:$0x1]
      %v905 = vld [vmem:[%s634 + $0xc] sm:$0xf]
      %v906 = vld [vmem:[%s634 + $0x10] sm:$0x1]
      %v907 = vld [vmem:[%s634 + $0x18] sm:$0xf]
      %v908 = vld [vmem:[%s634 + $0x1c] sm:$0x1]
      %v909 = vld [vmem:[%s634 + $0x24] sm:$0xf]
      %v910 = vld [vmem:[%s634 + $0x28] sm:$0x1]
      %v912 = vshrl.u32 %v903, 16
      %v914 = vrot.slane %v912, 4
      %v915 = vshll.u32 %v903, 16
      %v917 = vrot.slane %v915, 5
      %v918 = vor.u32 %v914, %v917
      %v919 = vrot.slane %v918, 4
      %v921 = vshll.u32 %v904, 16
      %v923 = vrot.slane %v921, 5
      %v924 = vsel %vm231, %v919, %v923
      %v926 = vshrl.u32 %v905, 16
      %v928 = vrot.slane %v926, 4
      %v929 = vshll.u32 %v905, 16
      %v931 = vrot.slane %v929, 5
      %v932 = vor.u32 %v928, %v931
      %v933 = vrot.slane %v932, 4
      %v935 = vshll.u32 %v906, 16
      %v937 = vrot.slane %v935, 5
      %v938 = vsel %vm231, %v933, %v937
      %v940 = vshrl.u32 %v907, 16
      %v942 = vrot.slane %v940, 4
      %v943 = vshll.u32 %v907, 16
      %v945 = vrot.slane %v943, 5
      %v946 = vor.u32 %v942, %v945
      %v947 = vrot.slane %v946, 4
      %v949 = vshll.u32 %v908, 16
      %v951 = vrot.slane %v949, 5
      %v952 = vsel %vm231, %v947, %v951
      %v954 = vshrl.u32 %v909, 16
      %v956 = vrot.slane %v954, 4
      %v957 = vshll.u32 %v909, 16
      %v959 = vrot.slane %v957, 5
      %v960 = vor.u32 %v956, %v959
      %v961 = vrot.slane %v960, 4
      %v963 = vshll.u32 %v910, 16
      %v965 = vrot.slane %v963, 5
      %v966 = vsel %vm231, %v961, %v965
      %s967 = scalar_lea.vmem %s1, 160
      %v968 = vld [vmem:[%s967] sm:$0xf]
      %v969 = vld [vmem:[%s967 + $0x4] sm:$0xf]
      %v970 = vld [vmem:[%s967 + $0x8] sm:$0xf]
      %v971 = vld [vmem:[%s967 + $0xc] sm:$0xf]
      %v972 = vld [vmem:[%s967 + $0x10] sm:$0xf]
      %v973 = vld [vmem:[%s967 + $0x14] sm:$0xf]
      %v974 = vld [vmem:[%s967 + $0x18] sm:$0xf]
      %v975 = vld [vmem:[%s967 + $0x1c] sm:$0xf]
      %v976 = vunpack.c.l.b16 %v924
      %v977 = vunpack.c.l.b16 %v938
      %v978 = vunpack.c.l.b16 %v952
      %v979 = vunpack.c.l.b16 %v966
      %v980 = vpack.c.b16 %v977, %v976
      %v981 = vpack.c.b16 %v979, %v978
      %v990 = vunpack.c.l.b16 %v968
      %v991 = vunpack.c.l.b16 %v969
      %v992 = vunpack.c.l.b16 %v970
      %v993 = vunpack.c.l.b16 %v971
      %v994 = vunpack.c.l.b16 %v972
      %v995 = vunpack.c.l.b16 %v973
      %v996 = vunpack.c.l.b16 %v974
      %v997 = vunpack.c.l.b16 %v975
      %v998 = vpack.c.b16 %v991, %v990
      %v999 = vpack.c.b16 %v993, %v992
      %v1000 = vpack.c.b16 %v995, %v994
      %v1001 = vpack.c.b16 %v997, %v996
      %v1007 = vsel %vm327, %v980, 0
      %v1010 = vsel %vm327, %v981, 0
      %1012 = vmatprep.subr.bf16.mxu0 0
      %1013 = vmatpush1.bf16.msra.mxu0 %v998
      %1014 = vmatprep.subr.bf16.mxu0 0
      %1015 = vmatpush1.bf16.msra.mxu0 %v999
      %1016 = vmatprep.subr.bf16.mxu0 0
      %1017 = vmatpush1.bf16.msra.mxu0 %v1000
      %1018 = vmatprep.subr.bf16.mxu0 0
      %1019 = vmatpush1.bf16.msra.mxu0 %v1001
      %1020 = vmatprep.subr.bf16.mxu0 0
      %1021 = vmatpush1.bf16.msra.mxu0 0
      %1022 = vmatprep.subr.bf16.mxu0 0
      %1023 = vmatpush1.bf16.msra.mxu0 0
      %1024 = vmatprep.subr.bf16.mxu0 0
      %1025 = vmatpush1.bf16.msra.mxu0 0
      %1026 = vmatprep.subr.bf16.mxu0 0
      %1027 = vmatpush1.bf16.msra.mxu0 0
      %1028 = vmatprep.subr.bf16.mxu0 0
      %1029 = vmatpush1.bf16.msra.mxu0 0
      %1030 = vmatprep.subr.bf16.mxu0 0
      %1031 = vmatpush1.bf16.msra.mxu0 0
      %1032 = vmatprep.subr.bf16.mxu0 0
      %1033 = vmatpush1.bf16.msra.mxu0 0
      %1034 = vmatprep.subr.bf16.mxu0 0
      %1035 = vmatpush1.bf16.msra.mxu0 0
      %1036 = vmatprep.subr.bf16.mxu0 0
      %1037 = vmatpush1.bf16.msra.mxu0 0
      %1038 = vmatprep.subr.bf16.mxu0 0
      %1039 = vmatpush1.bf16.msra.mxu0 0
      %1040 = vmatprep.subr.bf16.mxu0 0
      %1041 = vmatpush1.bf16.msra.mxu0 0
      %1042 = vmatprep.subr.bf16.mxu0 0
      %1043 = vmatpush1.bf16.msra.mxu0 0
      %1044 = vmatprep.mubr.bf16.mxu0 0
      %1045 = vmatmul.mubr.bf16.gmra.mrb[0].mxu0 %v1007
      %v1046 = vpop.f32.mrb[0].mxu0
      %v1047 = vadd.f32 0.0, %v1046
      %v1048 = vpop.f32.mrb[0].mxu0
      %v1049 = vpop.f32.mrb[0].mxu0
      %v1050 = vadd.f32 0.0, %v1049
      %v1051 = vpop.f32.mrb[0].mxu0
      %1052 = vmatprep.mubr.bf16.mxu0 0
      %1053 = vmatmul.mubr.bf16.gmra.mrb[0].mxu0 %v1010
      %v1054 = vpop.f32.mrb[0].mxu0
      %v1055 = vadd.f32 0.0, %v1054
      %v1056 = vpop.f32.mrb[0].mxu0
      %v1057 = vpop.f32.mrb[0].mxu0
      %v1058 = vadd.f32 0.0, %v1057
      %v1059 = vpop.f32.mrb[0].mxu0
      %1060 = vdwg.mxu0
      %v1061 = vadd.f32 %v899, %v1047
      %v1062 = vadd.f32 %v900, %v1050
      %v1063 = vadd.f32 %v901, %v1055
      %v1064 = vadd.f32 %v902, %v1058
      %s1065 = scalar_lea.vmem %s197, 12
      %v1066 = vld [vmem:[%s1065] sm:$0xf]
      %v1067 = vld [vmem:[%s1065 + $0xc] sm:$0xf]
      %v1068 = vld [vmem:[%s1065 + $0x18] sm:$0xf]
      %v1069 = vld [vmem:[%s1065 + $0x24] sm:$0xf]
      %s1070 = scalar_lea.vmem %s1, 192
      %v1071 = vld [vmem:[%s1070] sm:$0xf]
      %v1072 = vld [vmem:[%s1070 + $0x4] sm:$0xf]
      %v1073 = vld [vmem:[%s1070 + $0x8] sm:$0xf]
      %v1074 = vld [vmem:[%s1070 + $0xc] sm:$0xf]
      %v1075 = vld [vmem:[%s1070 + $0x10] sm:$0xf]
      %v1076 = vld [vmem:[%s1070 + $0x14] sm:$0xf]
      %v1077 = vld [vmem:[%s1070 + $0x18] sm:$0xf]
      %v1078 = vld [vmem:[%s1070 + $0x1c] sm:$0xf]
      %v1083 = vunpack.c.l.b16 %v1066
      %v1084 = vunpack.c.l.b16 %v1067
      %v1085 = vunpack.c.l.b16 %v1068
      %v1086 = vunpack.c.l.b16 %v1069
      %v1087 = vpack.c.b16 %v1084, %v1083
      %v1088 = vpack.c.b16 %v1086, %v1085
      %v1097 = vunpack.c.l.b16 %v1071
      %v1098 = vunpack.c.l.b16 %v1072
      %v1099 = vunpack.c.l.b16 %v1073
      %v1100 = vunpack.c.l.b16 %v1074
      %v1101 = vunpack.c.l.b16 %v1075
      %v1102 = vunpack.c.l.b16 %v1076
      %v1103 = vunpack.c.l.b16 %v1077
      %v1104 = vunpack.c.l.b16 %v1078
      %v1105 = vpack.c.b16 %v1098, %v1097
      %v1106 = vpack.c.b16 %v1100, %v1099
      %v1107 = vpack.c.b16 %v1102, %v1101
      %v1108 = vpack.c.b16 %v1104, %v1103
      %v1114 = vsel %vm327, %v1087, 0
      %v1117 = vsel %vm327, %v1088, 0
      %1119 = vmatprep.subr.bf16.mxu0 0
      %1120 = vmatpush1.bf16.msra.mxu0 %v1105
      %1121 = vmatprep.subr.bf16.mxu0 0
      %1122 = vmatpush1.bf16.msra.mxu0 %v1106
      %1123 = vmatprep.subr.bf16.mxu0 0
      %1124 = vmatpush1.bf16.msra.mxu0 %v1107
      %1125 = vmatprep.subr.bf16.mxu0 0
      %1126 = vmatpush1.bf16.msra.mxu0 %v1108
      %1127 = vmatprep.subr.bf16.mxu0 0
      %1128 = vmatpush1.bf16.msra.mxu0 0
      %1129 = vmatprep.subr.bf16.mxu0 0
      %1130 = vmatpush1.bf16.msra.mxu0 0
      %1131 = vmatprep.subr.bf16.mxu0 0
      %1132 = vmatpush1.bf16.msra.mxu0 0
      %1133 = vmatprep.subr.bf16.mxu0 0
      %1134 = vmatpush1.bf16.msra.mxu0 0
      %1135 = vmatprep.subr.bf16.mxu0 0
      %1136 = vmatpush1.bf16.msra.mxu0 0
      %1137 = vmatprep.subr.bf16.mxu0 0
      %1138 = vmatpush1.bf16.msra.mxu0 0
      %1139 = vmatprep.subr.bf16.mxu0 0
      %1140 = vmatpush1.bf16.msra.mxu0 0
      %1141 = vmatprep.subr.bf16.mxu0 0
      %1142 = vmatpush1.bf16.msra.mxu0 0
      %1143 = vmatprep.subr.bf16.mxu0 0
      %1144 = vmatpush1.bf16.msra.mxu0 0
      %1145 = vmatprep.subr.bf16.mxu0 0
      %1146 = vmatpush1.bf16.msra.mxu0 0
      %1147 = vmatprep.subr.bf16.mxu0 0
      %1148 = vmatpush1.bf16.msra.mxu0 0
      %1149 = vmatprep.subr.bf16.mxu0 0
      %1150 = vmatpush1.bf16.msra.mxu0 0
      %1151 = vmatprep.mubr.bf16.mxu0 0
      %1152 = vmatmul.mubr.bf16.gmra.mrb[0].mxu0 %v1114
      %v1153 = vpop.f32.mrb[0].mxu0
      %v1154 = vadd.f32 0.0, %v1153
      %v1155 = vpop.f32.mrb[0].mxu0
      %v1156 = vpop.f32.mrb[0].mxu0
      %v1157 = vadd.f32 0.0, %v1156
      %v1158 = vpop.f32.mrb[0].mxu0
      %1159 = vmatprep.mubr.bf16.mxu0 0
      %1160 = vmatmul.mubr.bf16.gmra.mrb[0].mxu0 %v1117
      %v1161 = vpop.f32.mrb[0].mxu0
      %v1162 = vadd.f32 0.0, %v1161
      %v1163 = vpop.f32.mrb[0].mxu0
      %v1164 = vpop.f32.mrb[0].mxu0
      %v1165 = vadd.f32 0.0, %v1164
      %v1166 = vpop.f32.mrb[0].mxu0
      %1167 = vdwg.mxu0
      %v1168 = vadd.f32 %v1061, %v1154
      %v1169 = vadd.f32 %v1062, %v1157
      %v1170 = vadd.f32 %v1063, %v1162
      %v1171 = vadd.f32 %v1064, %v1165
      %v1172 = vld [vmem:[%s1065 + $0x4] sm:$0xf]
      %v1173 = vld [vmem:[%s1065 + $0x8] sm:$0x1]
      %v1174 = vld [vmem:[%s1065 + $0x10] sm:$0xf]
      %v1175 = vld [vmem:[%s1065 + $0x14] sm:$0x1]
      %v1176 = vld [vmem:[%s1065 + $0x1c] sm:$0xf]
      %v1177 = vld [vmem:[%s1065 + $0x20] sm:$0x1]
      %v1178 = vld [vmem:[%s1065 + $0x28] sm:$0xf]
      %v1179 = vld [vmem:[%s1065 + $0x2c] sm:$0x1]
      %v1181 = vshrl.u32 %v1172, 16
      %v1183 = vrot.slane %v1181, 4
      %v1184 = vshll.u32 %v1172, 16
      %v1186 = vrot.slane %v1184, 5
      %v1187 = vor.u32 %v1183, %v1186
      %v1188 = vrot.slane %v1187, 4
      %v1190 = vshll.u32 %v1173, 16
      %v1192 = vrot.slane %v1190, 5
      %v1193 = vsel %vm231, %v1188, %v1192
      %v1195 = vshrl.u32 %v1174, 16
      %v1197 = vrot.slane %v1195, 4
      %v1198 = vshll.u32 %v1174, 16
      %v1200 = vrot.slane %v1198, 5
      %v1201 = vor.u32 %v1197, %v1200
      %v1202 = vrot.slane %v1201, 4
      %v1204 = vshll.u32 %v1175, 16
      %v1206 = vrot.slane %v1204, 5
      %v1207 = vsel %vm231, %v1202, %v1206
      %v1209 = vshrl.u32 %v1176, 16
      %v1211 = vrot.slane %v1209, 4
      %v1212 = vshll.u32 %v1176, 16
      %v1214 = vrot.slane %v1212, 5
      %v1215 = vor.u32 %v1211, %v1214
      %v1216 = vrot.slane %v1215, 4
      %v1218 = vshll.u32 %v1177, 16
      %v1220 = vrot.slane %v1218, 5
      %v1221 = vsel %vm231, %v1216, %v1220
      %v1223 = vshrl.u32 %v1178, 16
      %v1225 = vrot.slane %v1223, 4
      %v1226 = vshll.u32 %v1178, 16
      %v1228 = vrot.slane %v1226, 5
      %v1229 = vor.u32 %v1225, %v1228
      %v1230 = vrot.slane %v1229, 4
      %v1232 = vshll.u32 %v1179, 16
      %v1234 = vrot.slane %v1232, 5
      %v1235 = vsel %vm231, %v1230, %v1234
      %s1236 = scalar_lea.vmem %s1, 224
      %v1237 = vld [vmem:[%s1236] sm:$0xf]
      %v1238 = vld [vmem:[%s1236 + $0x4] sm:$0xf]
      %v1239 = vld [vmem:[%s1236 + $0x8] sm:$0xf]
      %v1240 = vld [vmem:[%s1236 + $0xc] sm:$0xf]
      %v1241 = vld [vmem:[%s1236 + $0x10] sm:$0xf]
      %v1242 = vld [vmem:[%s1236 + $0x14] sm:$0xf]
      %v1243 = vld [vmem:[%s1236 + $0x18] sm:$0xf]
      %v1244 = vld [vmem:[%s1236 + $0x1c] sm:$0xf]
      %v1245 = vunpack.c.l.b16 %v1193
      %v1246 = vunpack.c.l.b16 %v1207
      %v1247 = vunpack.c.l.b16 %v1221
      %v1248 = vunpack.c.l.b16 %v1235
      %v1249 = vpack.c.b16 %v1246, %v1245
      %v1250 = vpack.c.b16 %v1248, %v1247
      %v1259 = vunpack.c.l.b16 %v1237
      %v1260 = vunpack.c.l.b16 %v1238
      %v1261 = vunpack.c.l.b16 %v1239
      %v1262 = vunpack.c.l.b16 %v1240
      %v1263 = vunpack.c.l.b16 %v1241
      %v1264 = vunpack.c.l.b16 %v1242
      %v1265 = vunpack.c.l.b16 %v1243
      %v1266 = vunpack.c.l.b16 %v1244
      %v1267 = vpack.c.b16 %v1260, %v1259
      %v1268 = vpack.c.b16 %v1262, %v1261
      %v1269 = vpack.c.b16 %v1264, %v1263
      %v1270 = vpack.c.b16 %v1266, %v1265
      %v1276 = vsel %vm327, %v1249, 0
      %v1279 = vsel %vm327, %v1250, 0
      %1281 = vmatprep.subr.bf16.mxu0 0
      %1282 = vmatpush1.bf16.msra.mxu0 %v1267
      %1283 = vmatprep.subr.bf16.mxu0 0
      %1284 = vmatpush1.bf16.msra.mxu0 %v1268
      %1285 = vmatprep.subr.bf16.mxu0 0
      %1286 = vmatpush1.bf16.msra.mxu0 %v1269
      %1287 = vmatprep.subr.bf16.mxu0 0
      %1288 = vmatpush1.bf16.msra.mxu0 %v1270
      %1289 = vmatprep.subr.bf16.mxu0 0
      %1290 = vmatpush1.bf16.msra.mxu0 0
      %1291 = vmatprep.subr.bf16.mxu0 0
      %1292 = vmatpush1.bf16.msra.mxu0 0
      %1293 = vmatprep.subr.bf16.mxu0 0
      %1294 = vmatpush1.bf16.msra.mxu0 0
      %1295 = vmatprep.subr.bf16.mxu0 0
      %1296 = vmatpush1.bf16.msra.mxu0 0
      %1297 = vmatprep.subr.bf16.mxu0 0
      %1298 = vmatpush1.bf16.msra.mxu0 0
      %1299 = vmatprep.subr.bf16.mxu0 0
      %1300 = vmatpush1.bf16.msra.mxu0 0
      %1301 = vmatprep.subr.bf16.mxu0 0
      %1302 = vmatpush1.bf16.msra.mxu0 0
      %1303 = vmatprep.subr.bf16.mxu0 0
      %1304 = vmatpush1.bf16.msra.mxu0 0
      %1305 = vmatprep.subr.bf16.mxu0 0
      %1306 = vmatpush1.bf16.msra.mxu0 0
      %1307 = vmatprep.subr.bf16.mxu0 0
      %1308 = vmatpush1.bf16.msra.mxu0 0
      %1309 = vmatprep.subr.bf16.mxu0 0
      %1310 = vmatpush1.bf16.msra.mxu0 0
      %1311 = vmatprep.subr.bf16.mxu0 0
      %1312 = vmatpush1.bf16.msra.mxu0 0
      %1313 = vmatprep.mubr.bf16.mxu0 0
      %1314 = vmatmul.mubr.bf16.gmra.mrb[0].mxu0 %v1276
      %v1315 = vpop.f32.mrb[0].mxu0
      %v1316 = vadd.f32 0.0, %v1315
      %v1317 = vpop.f32.mrb[0].mxu0
      %v1318 = vpop.f32.mrb[0].mxu0
      %v1319 = vadd.f32 0.0, %v1318
      %v1320 = vpop.f32.mrb[0].mxu0
      %1321 = vmatprep.mubr.bf16.mxu0 0
      %1322 = vmatmul.mubr.bf16.gmra.mrb[0].mxu0 %v1279
      %v1323 = vpop.f32.mrb[0].mxu0
      %v1324 = vadd.f32 0.0, %v1323
      %v1325 = vpop.f32.mrb[0].mxu0
      %v1326 = vpop.f32.mrb[0].mxu0
      %v1327 = vadd.f32 0.0, %v1326
      %v1328 = vpop.f32.mrb[0].mxu0
      %1329 = vdwg.mxu0
      %v1330 = vadd.f32 %v1168, %v1316
      %v1331 = vadd.f32 %v1169, %v1319
      %v1332 = vadd.f32 %v1170, %v1324
      %v1333 = vadd.f32 %v1171, %v1327
      %v1334 = vld [vmem:[%s1065] sm:$0xf]
      %v1335 = vld [vmem:[%s1065 + $0x4] sm:$0x1]
      %v1336 = vld [vmem:[%s1065 + $0xc] sm:$0xf]
      %v1337 = vld [vmem:[%s1065 + $0x10] sm:$0x1]
      %v1338 = vld [vmem:[%s1065 + $0x18] sm:$0xf]
      %v1339 = vld [vmem:[%s1065 + $0x1c] sm:$0x1]
      %v1340 = vld [vmem:[%s1065 + $0x24] sm:$0xf]
      %v1341 = vld [vmem:[%s1065 + $0x28] sm:$0x1]
      %v1343 = vshrl.u32 %v1334, 16
      %v1345 = vrot.slane %v1343, 4
      %v1346 = vshll.u32 %v1334, 16
      %v1348 = vrot.slane %v1346, 5
      %v1349 = vor.u32 %v1345, %v1348
      %v1350 = vrot.slane %v1349, 4
      %v1352 = vshll.u32 %v1335, 16
      %v1354 = vrot.slane %v1352, 5
      %v1355 = vsel %vm231, %v1350, %v1354
      %v1357 = vshrl.u32 %v1336, 16
      %v1359 = vrot.slane %v1357, 4
      %v1360 = vshll.u32 %v1336, 16
      %v1362 = vrot.slane %v1360, 5
      %v1363 = vor.u32 %v1359, %v1362
      %v1364 = vrot.slane %v1363, 4
      %v1366 = vshll.u32 %v1337, 16
      %v1368 = vrot.slane %v1366, 5
      %v1369 = vsel %vm231, %v1364, %v1368
      %v1371 = vshrl.u32 %v1338, 16
      %v1373 = vrot.slane %v1371, 4
      %v1374 = vshll.u32 %v1338, 16
      %v1376 = vrot.slane %v1374, 5
      %v1377 = vor.u32 %v1373, %v1376
      %v1378 = vrot.slane %v1377, 4
      %v1380 = vshll.u32 %v1339, 16
      %v1382 = vrot.slane %v1380, 5
      %v1383 = vsel %vm231, %v1378, %v1382
      %v1385 = vshrl.u32 %v1340, 16
      %v1387 = vrot.slane %v1385, 4
      %v1388 = vshll.u32 %v1340, 16
      %v1390 = vrot.slane %v1388, 5
      %v1391 = vor.u32 %v1387, %v1390
      %v1392 = vrot.slane %v1391, 4
      %v1394 = vshll.u32 %v1341, 16
      %v1396 = vrot.slane %v1394, 5
      %v1397 = vsel %vm231, %v1392, %v1396
      %s1398 = scalar_lea.vmem %s1, 256
      %v1399 = vld [vmem:[%s1398] sm:$0xf]
      %v1400 = vld [vmem:[%s1398 + $0x4] sm:$0xf]
      %v1401 = vld [vmem:[%s1398 + $0x8] sm:$0xf]
      %v1402 = vld [vmem:[%s1398 + $0xc] sm:$0xf]
      %v1403 = vld [vmem:[%s1398 + $0x10] sm:$0xf]
      %v1404 = vld [vmem:[%s1398 + $0x14] sm:$0xf]
      %v1405 = vld [vmem:[%s1398 + $0x18] sm:$0xf]
      %v1406 = vld [vmem:[%s1398 + $0x1c] sm:$0xf]
      %v1407 = vunpack.c.l.b16 %v1355
      %v1408 = vunpack.c.l.b16 %v1369
      %v1409 = vunpack.c.l.b16 %v1383
      %v1410 = vunpack.c.l.b16 %v1397
      %v1411 = vpack.c.b16 %v1408, %v1407
      %v1412 = vpack.c.b16 %v1410, %v1409
      %v1421 = vunpack.c.l.b16 %v1399
      %v1422 = vunpack.c.l.b16 %v1400
      %v1423 = vunpack.c.l.b16 %v1401
      %v1424 = vunpack.c.l.b16 %v1402
      %v1425 = vunpack.c.l.b16 %v1403
      %v1426 = vunpack.c.l.b16 %v1404
      %v1427 = vunpack.c.l.b16 %v1405
      %v1428 = vunpack.c.l.b16 %v1406
      %v1429 = vpack.c.b16 %v1422, %v1421
      %v1430 = vpack.c.b16 %v1424, %v1423
      %v1431 = vpack.c.b16 %v1426, %v1425
      %v1432 = vpack.c.b16 %v1428, %v1427
      %v1438 = vsel %vm327, %v1411, 0
      %v1441 = vsel %vm327, %v1412, 0
      %1443 = vmatprep.subr.bf16.mxu0 0
      %1444 = vmatpush1.bf16.msra.mxu0 %v1429
      %1445 = vmatprep.subr.bf16.mxu0 0
      %1446 = vmatpush1.bf16.msra.mxu0 %v1430
      %1447 = vmatprep.subr.bf16.mxu0 0
      %1448 = vmatpush1.bf16.msra.mxu0 %v1431
      %1449 = vmatprep.subr.bf16.mxu0 0
      %1450 = vmatpush1.bf16.msra.mxu0 %v1432
      %1451 = vmatprep.subr.bf16.mxu0 0
      %1452 = vmatpush1.bf16.msra.mxu0 0
      %1453 = vmatprep.subr.bf16.mxu0 0
      %1454 = vmatpush1.bf16.msra.mxu0 0
      %1455 = vmatprep.subr.bf16.mxu0 0
      %1456 = vmatpush1.bf16.msra.mxu0 0
      %1457 = vmatprep.subr.bf16.mxu0 0
      %1458 = vmatpush1.bf16.msra.mxu0 0
      %1459 = vmatprep.subr.bf16.mxu0 0
      %1460 = vmatpush1.bf16.msra.mxu0 0
      %1461 = vmatprep.subr.bf16.mxu0 0
      %1462 = vmatpush1.bf16.msra.mxu0 0
      %1463 = vmatprep.subr.bf16.mxu0 0
      %1464 = vmatpush1.bf16.msra.mxu0 0
      %1465 = vmatprep.subr.bf16.mxu0 0
      %1466 = vmatpush1.bf16.msra.mxu0 0
      %1467 = vmatprep.subr.bf16.mxu0 0
      %1468 = vmatpush1.bf16.msra.mxu0 0
      %1469 = vmatprep.subr.bf16.mxu0 0
      %1470 = vmatpush1.bf16.msra.mxu0 0
      %1471 = vmatprep.subr.bf16.mxu0 0
      %1472 = vmatpush1.bf16.msra.mxu0 0
      %1473 = vmatprep.subr.bf16.mxu0 0
      %1474 = vmatpush1.bf16.msra.mxu0 0
      %1475 = vmatprep.mubr.bf16.mxu0 0
      %1476 = vmatmul.mubr.bf16.gmra.mrb[0].mxu0 %v1438
      %v1477 = vpop.f32.mrb[0].mxu0
      %v1478 = vadd.f32 0.0, %v1477
      %v1479 = vpop.f32.mrb[0].mxu0
      %v1480 = vpop.f32.mrb[0].mxu0
      %v1481 = vadd.f32 0.0, %v1480
      %v1482 = vpop.f32.mrb[0].mxu0
      %1483 = vmatprep.mubr.bf16.mxu0 0
      %1484 = vmatmul.mubr.bf16.gmra.mrb[0].mxu0 %v1441
      %v1485 = vpop.f32.mrb[0].mxu0
      %v1486 = vadd.f32 0.0, %v1485
      %v1487 = vpop.f32.mrb[0].mxu0
      %v1488 = vpop.f32.mrb[0].mxu0
      %v1489 = vadd.f32 0.0, %v1488
      %v1490 = vpop.f32.mrb[0].mxu0
      %1491 = vdwg.mxu0
      %v1492 = vadd.f32 %v1330, %v1478
      %v1493 = vadd.f32 %v1331, %v1481
      %v1494 = vadd.f32 %v1332, %v1486
      %v1495 = vadd.f32 %v1333, %v1489
      %v1496 = vld [vmem:[%s2] sm:$0x1]
      %v1498 = vlaneseq
      %v1499 = vshrl.u32 %v1498, 7
      %v1500 = vsub.s32 0, %v1499
      %v1501 = vrot.slane %v1496, %v1500
      %v1503 = vadd.f32 %v1492, %v1501
      %v1504 = vadd.f32 %v1493, %v1501
      %v1505 = vadd.f32 %v1494, %v1501
      %v1506 = vadd.f32 %v1495, %v1501
      %v1507 = vmax.f32 %v1503, 0.0
      %v1508 = vmax.f32 %v1504, 0.0
      %v1509 = vmax.f32 %v1505, 0.0
      %v1510 = vmax.f32 %v1506, 0.0
      %v1511 = vpack.c.bf16 %v1507, %v1507
      %v1512 = vpack.c.bf16 %v1508, %v1508
      %v1513 = vpack.c.bf16 %v1509, %v1509
      %v1514 = vpack.c.bf16 %v1510, %v1510
      %1515 = vst [vmem:[%s206] sm:$0xf] %v1511
      %1516 = vst [vmem:[%s206 + $0x4] sm:$0xf] %v1512
      %1517 = vst [vmem:[%s206 + $0x8] sm:$0xf] %v1513
      %1518 = vst [vmem:[%s206 + $0xc] sm:$0xf] %v1514
      %s1519 = smul.u32 4, %s19
      %p1520 = scmp.lt.s32.totalorder %s18, 1
      %s1521 = scalar_select %p1520, %s18, 1
      %p1522 = scmp.lt.s32.totalorder %s1519, 7
      %s1523 = scalar_select %p1522, %s1519, 7
      %s1524 = smul.addr %s1521, 8
      %s1525 = sadd.s32 %s1523, %s1524
      %s1526 = smul.addr %s1525, 4
      %s1527 = scalar_lea.vmem %s3, %s1526
      // Predicated region
      $region33: #{basic_block_forward.3} parent=31 // pred_check
        %p1528 = pneg %p116
      $region34: #{basic_block_forward.3} parent=31 // pred_check_branch
        %1530 = sbr.rel (%p1528) target = $region36
      $region35: #{basic_block_forward.3} parent=31 // pred_region
        %s1531 = smul.u32 4, %s19
      $region36: #{basic_block_forward.3} parent=31 // pred_fallthru
        _
    $region32: #{basic_block_forward.3} parent=5 // pred_fallthru
      _
    %p1532 = scmp.le.s32.totalorder 2, %s9
    // Predicated region
    $region37: #{basic_block_forward.3} parent=5 // pred_check
      %p1533 = pneg %p1532
    $region38: #{basic_block_forward.3} parent=5 // pred_check_branch
      %1535 = sbr.rel (%p1533) target = $region40
    $region39: #{basic_block_forward.3} parent=5 // pred_region
      %s1536 = ssub.s32 %s9, 2
      // Predicated region
      $region41: #{basic_block_forward.3} parent=39 // pred_check
        %p1537 = pneg %p122
      $region42: #{basic_block_forward.3} parent=39 // pred_check_branch
        %1539 = sbr.rel (%p1537) target = $region44
      $region43: #{basic_block_forward.3} parent=39 // pred_region
        %s1540 = smul.u32 4, %s21
        %p1541 = scmp.lt.s32.totalorder %s20, 1
        %s1542 = scalar_select %p1541, %s20, 1
        %p1543 = scmp.lt.s32.totalorder %s1540, 7
        %s1544 = scalar_select %p1543, %s1540, 7
        %s1545 = smul.addr %s1542, 8
        %s1546 = sadd.s32 %s1544, %s1545
        %s1547 = smul.addr %s1546, 4
        %s1548 = scalar_lea.vmem %s3, %s1547
      $region44: #{basic_block_forward.3} parent=39 // pred_fallthru
        _
    $region40: #{basic_block_forward.3} parent=5 // pred_fallthru
      _
  $region6: #{basic_block_forward.3} parent=0 // loop_footer
    %s13 = sadd.s32 1, %s9
  $region7: #{basic_block_forward.3} parent=0 // loop_footer_branch
    %8 = sbr.rel target = $region3
  $region8: #{basic_block_forward.3} parent=0 // loop_exit
    _

// kernel: basic_block_forward.4
$region0: #{basic_block_forward.4}
  #allocation0 [shape = 'u32[]', space=smem, size = 0x4, offset = 0x4, fixed_abs, tag = 'smem constant byte address 0x4 - core index']
  #allocation1 [shape = 'u32[144,128]{1,0:T(1,128)}', space=vmem, size = 0x12000, scoped, tag = 'internal scratch']
  %s0 = inlined_call_operand.vmem [shape: bf16[2,2,6,10,128], index: 0, kind: input, shape index: {}]
  %s1 = inlined_call_operand.vmem [shape: bf16[9,128,128], index: 1, kind: input, shape index: {}]
  %s2 = inlined_call_operand.vmem [shape: f32[1,128], index: 2, kind: input, shape index: {}]
  %s3 = inlined_call_operand.vmem [shape: bf16[2,8,8,128], index: 3, kind: output, shape index: {0}]
  %s4 = inlined_call_operand.vmem [shape: f32[2,1,128], index: 4, kind: output, shape index: {1}]
  %5 = xla_tuple %s3, %s4
  %s6 = sld [smem:[#allocation0]]
  $region57: #{basic_block_forward.4} parent=0
    _
  %s8 = ssub.s32 1, %s6
  %s9 = scalar_select 0, %s8, %s6
  loop: start=0, step=1, limit=6
  $region2: #{basic_block_forward.4} parent=0 // loop_pre_header
    _
  $region3: #{basic_block_forward.4} parent=0 // loop_header
    %s11 = sphi 0, %s15
    %p12 = scmp.ge.s32.totalorder %s11, 6
    %s18 = sphi 0, %s30
    %s19 = sphi 0, %s26
    %s20 = sphi 0, %s18
    %s21 = sphi 0, %s19
    %s22 = sphi 0, %s20
    %s23 = sphi 0, %s21
    %s35 = sphi 0, %s37
    %s38 = sphi 0, %s35
    %s39 = sphi 0, %s38
    %s55 = sphi 0, %s39
    %s59 = sphi 0, %s59
    %s61 = sphi 0, %s59
    %s62 = sphi 0, %s61
    %s76 = sphi 0, %s62
    %s80 = sphi 0, %s80
    %s82 = sphi 0, %s80
    %s83 = sphi 0, %s82
    %s97 = sphi 0, %s83
    %s105 = sphi 0, %s107
    %s108 = sphi 0, %s105
    %s109 = sphi 0, %s108
    %s125 = sphi 0, %s109
    %s131 = sphi 0, %s133
    %s134 = sphi 0, %s131
    %s135 = sphi 0, %s134
    %s151 = sphi 0, %s135
  $region4: #{basic_block_forward.4} parent=0 // loop_header_branch
    %14 = sbr.rel (%p12) target = $region8
  $region5: #{basic_block_forward.4} parent=0 // loop_body
    %s16 = ssub.s32 %s11, 1
    %s17 = ssub.s32 %s11, 2
    %s24 = sadd.s32 1, %s19
    %p25 = scmp.ge.s32.totalorder %s24, 2
    %s26 = scalar_select %p25, 0, %s24
    %s27 = sadd.s32 1, %s18
    %s28 = scalar_select %p25, %s27, %s18
    %p29 = scmp.ge.s32.totalorder %s28, 2
    %s30 = scalar_select %p29, 0, %s28
    %s31 = ssub.s32 %s18, %s30
    %s32 = ssub.s32 %s19, %s26
    %s33 = sor.u32 %s31, %s32
    %p34 = scmp.eq.s32.totalorder %s33, 0
    %s36 = sadd.s32 %s35, 1
    %s37 = scalar_select %p34, %s35, %s36
    %p40 = pneg %p34
    %p41 = scmp.eq.s32.totalorder %s11, 3
    %p42 = por %p40, %p41
    %p43 = scmp.ne.s32.totalorder %s35, %s38
    %p44 = scmp.eq.s32.totalorder %s11, 0
    %p45 = por %p43, %p44
    %p46 = scmp.ne.s32.totalorder %s35, %s38
    %p47 = scmp.eq.s32.totalorder %s16, 3
    %p48 = por %p46, %p47
    %p49 = scmp.ne.s32.totalorder %s38, %s39
    %p50 = scmp.eq.s32.totalorder %s16, 0
    %p51 = por %p49, %p50
    %p52 = scmp.ne.s32.totalorder %s38, %s39
    %p53 = scmp.eq.s32.totalorder %s17, 3
    %p54 = por %p52, %p53
    %p56 = scmp.ne.s32.totalorder %s39, %s55
    %p57 = scmp.eq.s32.totalorder %s17, 0
    %p58 = por %p56, %p57
    %s60 = sadd.s32 %s59, 1
    %p63 = scmp.eq.s32.totalorder %s11, 3
    %p64 = scmp.ne.s32.totalorder %s59, %s61
    %p65 = scmp.eq.s32.totalorder %s11, 0
    %p66 = por %p64, %p65
    %p67 = scmp.ne.s32.totalorder %s59, %s61
    %p68 = scmp.eq.s32.totalorder %s16, 3
    %p69 = por %p67, %p68
    %p70 = scmp.ne.s32.totalorder %s61, %s62
    %p71 = scmp.eq.s32.totalorder %s16, 0
    %p72 = por %p70, %p71
    %p73 = scmp.ne.s32.totalorder %s61, %s62
    %p74 = scmp.eq.s32.totalorder %s17, 3
    %p75 = por %p73, %p74
    %p77 = scmp.ne.s32.totalorder %s62, %s76
    %p78 = scmp.eq.s32.totalorder %s17, 0
    %p79 = por %p77, %p78
    %s81 = sadd.s32 %s80, 1
    %p84 = scmp.eq.s32.totalorder %s11, 3
    %p85 = scmp.ne.s32.totalorder %s80, %s82
    %p86 = scmp.eq.s32.totalorder %s11, 0
    %p87 = por %p85, %p86
    %p88 = scmp.ne.s32.totalorder %s80, %s82
    %p89 = scmp.eq.s32.totalorder %s16, 3
    %p90 = por %p88, %p89
    %p91 = scmp.ne.s32.totalorder %s82, %s83
    %p92 = scmp.eq.s32.totalorder %s16, 0
    %p93 = por %p91, %p92
    %p94 = scmp.ne.s32.totalorder %s82, %s83
    %p95 = scmp.eq.s32.totalorder %s17, 3
    %p96 = por %p94, %p95
    %p98 = scmp.ne.s32.totalorder %s83, %s97
    %p99 = scmp.eq.s32.totalorder %s17, 0
    %p100 = por %p98, %p99
    %s101 = ssub.s32 %s18, %s30
    %s102 = ssub.s32 %s19, %s26
    %s103 = sor.u32 %s101, %s102
    %p104 = scmp.eq.s32.totalorder %s103, 0
    %s106 = sadd.s32 %s105, 1
    %s107 = scalar_select %p104, %s105, %s106
    %p110 = pneg %p104
    %p111 = scmp.eq.s32.totalorder %s11, 3
    %p112 = por %p110, %p111
    %p113 = scmp.ne.s32.totalorder %s105, %s108
    %p114 = scmp.eq.s32.totalorder %s11, 0
    %p115 = por %p113, %p114
    %p116 = scmp.ne.s32.totalorder %s105, %s108
    %p117 = scmp.eq.s32.totalorder %s16, 3
    %p118 = por %p116, %p117
    %p119 = scmp.ne.s32.totalorder %s108, %s109
    %p120 = scmp.eq.s32.totalorder %s16, 0
    %p121 = por %p119, %p120
    %p122 = scmp.ne.s32.totalorder %s108, %s109
    %p123 = scmp.eq.s32.totalorder %s17, 3
    %p124 = por %p122, %p123
    %p126 = scmp.ne.s32.totalorder %s109, %s125
    %p127 = scmp.eq.s32.totalorder %s17, 0
    %p128 = por %p126, %p127
    %s129 = ssub.s32 %s18, %s30
    %p130 = scmp.eq.s32.totalorder %s129, 0
    %s132 = sadd.s32 %s131, 1
    %s133 = scalar_select %p130, %s131, %s132
    %p136 = pneg %p130
    %p137 = scmp.eq.s32.totalorder %s11, 3
    %p138 = por %p136, %p137
    %p139 = scmp.ne.s32.totalorder %s131, %s134
    %p140 = scmp.eq.s32.totalorder %s11, 0
    %p141 = por %p139, %p140
    %p142 = scmp.ne.s32.totalorder %s131, %s134
    %p143 = scmp.eq.s32.totalorder %s16, 3
    %p144 = por %p142, %p143
    %p145 = scmp.ne.s32.totalorder %s134, %s135
    %p146 = scmp.eq.s32.totalorder %s16, 0
    %p147 = por %p145, %p146
    %p148 = scmp.ne.s32.totalorder %s134, %s135
    %p149 = scmp.eq.s32.totalorder %s17, 3
    %p150 = por %p148, %p149
    %p152 = scmp.ne.s32.totalorder %s135, %s151
    %p153 = scmp.eq.s32.totalorder %s17, 0
    %p154 = por %p152, %p153
    %p155 = scmp.le.s32.totalorder 1, %s11
    %p156 = scmp.lt.s32.totalorder %s11, 5
    %p157 = pnand %p155, %p156
    %p158 = pneg %p157
    // Predicated region
    $region9: #{basic_block_forward.4} parent=5 // pred_check
      _
    $region10: #{basic_block_forward.4} parent=5 // pred_check_branch
      %160 = sbr.rel (%p157) target = $region12
    $region11: #{basic_block_forward.4} parent=5 // pred_region
      %s161 = ssub.s32 %s11, 1
      // Predicated region
      $region13: #{basic_block_forward.4} parent=11 // pred_check
        %p162 = pneg %p72
      $region14: #{basic_block_forward.4} parent=11 // pred_check_branch
        %164 = sbr.rel (%p162) target = $region16
      $region15: #{basic_block_forward.4} parent=11 // pred_region
        _
      $region16: #{basic_block_forward.4} parent=11 // pred_fallthru
        _
      // Predicated region
      $region17: #{basic_block_forward.4} parent=11 // pred_check
        %p165 = pneg %p93
      $region18: #{basic_block_forward.4} parent=11 // pred_check_branch
        %167 = sbr.rel (%p165) target = $region20
      $region19: #{basic_block_forward.4} parent=11 // pred_region
        _
      $region20: #{basic_block_forward.4} parent=11 // pred_fallthru
        _
    $region12: #{basic_block_forward.4} parent=5 // pred_fallthru
      _
    %p168 = scmp.lt.s32.totalorder %s11, 4
    // Predicated region
    $region21: #{basic_block_forward.4} parent=5 // pred_check
      %p169 = pneg %p168
    $region22: #{basic_block_forward.4} parent=5 // pred_check_branch
      %171 = sbr.rel (%p169) target = $region24
    $region23: #{basic_block_forward.4} parent=5 // pred_region
      // Predicated region
      $region25: #{basic_block_forward.4} parent=23 // pred_check
        %p172 = pneg %p45
      $region26: #{basic_block_forward.4} parent=23 // pred_check_branch
        %174 = sbr.rel (%p172) target = $region28
      $region27: #{basic_block_forward.4} parent=23 // pred_region
        %p175 = scmp.lt.s32.totalorder %s18, 1
        %s176 = scalar_select %p175, %s18, 1
        %p177 = scmp.lt.s32.totalorder %s19, 1
        %s178 = scalar_select %p177, %s19, 1
        %s179 = smul.addr %s178, 12
        %s180 = smul.addr %s176, 24
        %s181 = sadd.s32 %s179, %s180
        %s182 = smul.addr %s181, 4
        %s183 = scalar_lea.vmem %s0, %s182
      $region28: #{basic_block_forward.4} parent=23 // pred_fallthru
        _
    $region24: #{basic_block_forward.4} parent=5 // pred_fallthru
      _
    %p184 = scmp.le.s32.totalorder 1, %s11
    %p185 = scmp.lt.s32.totalorder %s11, 5
    %p186 = pnand %p184, %p185
    %p187 = pneg %p186
    // Predicated region
    $region29: #{basic_block_forward.4} parent=5 // pred_check
      _
    $region30: #{basic_block_forward.4} parent=5 // pred_check_branch
      %189 = sbr.rel (%p186) target = $region32
    $region31: #{basic_block_forward.4} parent=5 // pred_region
      %s190 = ssub.s32 %s11, 1
      %p191 = scmp.lt.s32.totalorder %s20, 1
      %s192 = scalar_select %p191, %s20, 1
      %p193 = scmp.lt.s32.totalorder %s21, 1
      %s194 = scalar_select %p193, %s21, 1
      %s195 = smul.addr %s194, 12
      %s196 = smul.addr %s192, 24
      %s197 = sadd.s32 %s195, %s196
      %s198 = smul.addr %s197, 4
      %s199 = scalar_lea.vmem %s0, %s198
      %p200 = pneg %p51
      %p201 = pneg %p48
      %p202 = pneg %p72
      %p203 = pneg %p69
      %p204 = pneg %p93
      %p205 = pneg %p90
      %p206 = pneg %p121
      %p207 = pneg %p118
      %s208 = smul.u32 4, %s21
      %p209 = scmp.lt.s32.totalorder %s20, 1
      %s210 = scalar_select %p209, %s20, 1
      %p211 = scmp.lt.s32.totalorder %s208, 7
      %s212 = scalar_select %p211, %s208, 7
      %s213 = smul.addr %s210, 8
      %s214 = sadd.s32 %s212, %s213
      %s215 = smul.addr %s214, 4
      %s216 = scalar_lea.vmem %s3, %s215
      %p217 = pneg %p147
      %p218 = pneg %p144
      %p219 = scmp.lt.s32.totalorder %s20, 1
      %s220 = scalar_select %p219, %s20, 1
      %s221 = scalar_lea.vmem %s4, %s220
      %p222 = scmp.lt.s32.totalorder %s20, 1
      %s223 = scalar_select %p222, %s20, 1
      %p224 = scmp.lt.s32.totalorder %s21, 1
      %s225 = scalar_select %p224, %s21, 1
      %s226 = smul.addr %s225, 12
      %s227 = smul.addr %s223, 24
      %s228 = sadd.s32 %s226, %s227
      %s229 = smul.addr %s228, 4
      %s230 = scalar_lea.vmem %s0, %s229
      %s231 = smul.u32 4, %s21
      %p232 = scmp.lt.s32.totalorder %s20, 1
      %s233 = scalar_select %p232, %s20, 1
      %p234 = scmp.lt.s32.totalorder %s231, 7
      %s235 = scalar_select %p234, %s231, 7
      %s236 = smul.addr %s233, 8
      %s237 = sadd.s32 %s235, %s236
      %s238 = smul.addr %s237, 4
      %s239 = scalar_lea.vmem %s3, %s238
      %s240 = smul.u32 4, %s21
      %p241 = scmp.lt.s32.totalorder %s20, 1
      %s242 = scalar_select %p241, %s20, 1
      %s243 = scalar_lea.vmem %s4, %s242
      %v245 = vld [vmem:[%s230] sm:$0xf]
      %v246 = vld [vmem:[%s230 + $0x8] sm:$0xf]
      %v247 = vld [vmem:[%s230 + $0x10] sm:$0xf]
      %v248 = vld [vmem:[%s230 + $0x18] sm:$0xf]
      %v249 = vld [vmem:[%s1] sm:$0xf]
      %v250 = vld [vmem:[%s1 + $0x4] sm:$0xf]
      %v251 = vld [vmem:[%s1 + $0x8] sm:$0xf]
      %v252 = vld [vmem:[%s1 + $0xc] sm:$0xf]
      %v253 = vld [vmem:[%s1 + $0x10] sm:$0xf]
      %v254 = vld [vmem:[%s1 + $0x14] sm:$0xf]
      %v255 = vld [vmem:[%s1 + $0x18] sm:$0xf]
      %v256 = vld [vmem:[%s1 + $0x1c] sm:$0xf]
      %v257 = vld [vmem:[%s1 + $0x20] sm:$0xf]
      %v258 = vld [vmem:[%s1 + $0x24] sm:$0xf]
      %v259 = vld [vmem:[%s1 + $0x28] sm:$0xf]
      %v260 = vld [vmem:[%s1 + $0x2c] sm:$0xf]
      %v261 = vld [vmem:[%s1 + $0x30] sm:$0xf]
      %v262 = vld [vmem:[%s1 + $0x34] sm:$0xf]
      %v263 = vld [vmem:[%s1 + $0x38] sm:$0xf]
      %v264 = vld [vmem:[%s1 + $0x3c] sm:$0xf]
      %v265 = vld [vmem:[%s230 + $0x4] sm:$0x1]
      %v266 = vld [vmem:[%s230 + $0xc] sm:$0x1]
      %v267 = vld [vmem:[%s230 + $0x14] sm:$0x1]
      %v268 = vld [vmem:[%s230 + $0x1c] sm:$0x1]
      %vm269 = vsmask.f32 3328
      %vm270 = vsmask.f32 7440
      %vm271 = vmor %vm269, %vm270
      %v273 = vshrl.u32 %v245, 16
      %v275 = vrot.slane %v273, 4
      %v276 = vshll.u32 %v245, 16
      %v278 = vrot.slane %v276, 5
      %v279 = vor.u32 %v275, %v278
      %v280 = vrot.slane %v279, 4
      %v282 = vshll.u32 %v265, 16
      %v284 = vrot.slane %v282, 5
      %v285 = vsel %vm271, %v280, %v284
      %v287 = vshrl.u32 %v246, 16
      %v289 = vrot.slane %v287, 4
      %v290 = vshll.u32 %v246, 16
      %v292 = vrot.slane %v290, 5
      %v293 = vor.u32 %v289, %v292
      %v294 = vrot.slane %v293, 4
      %v296 = vshll.u32 %v266, 16
      %v298 = vrot.slane %v296, 5
      %v299 = vsel %vm271, %v294, %v298
      %v301 = vshrl.u32 %v247, 16
      %v303 = vrot.slane %v301, 4
      %v304 = vshll.u32 %v247, 16
      %v306 = vrot.slane %v304, 5
      %v307 = vor.u32 %v303, %v306
      %v308 = vrot.slane %v307, 4
      %v310 = vshll.u32 %v267, 16
      %v312 = vrot.slane %v310, 5
      %v313 = vsel %vm271, %v308, %v312
      %v315 = vshrl.u32 %v248, 16
      %v317 = vrot.slane %v315, 4
      %v318 = vshll.u32 %v248, 16
      %v320 = vrot.slane %v318, 5
      %v321 = vor.u32 %v317, %v320
      %v322 = vrot.slane %v321, 4
      %v324 = vshll.u32 %v268, 16
      %v326 = vrot.slane %v324, 5
      %v327 = vsel %vm271, %v322, %v326
      %s328 = scalar_lea.vmem %s1, 64
      %v329 = vld [vmem:[%s328] sm:$0xf]
      %v330 = vld [vmem:[%s328 + $0x4] sm:$0xf]
      %v331 = vld [vmem:[%s328 + $0x8] sm:$0xf]
      %v332 = vld [vmem:[%s328 + $0xc] sm:$0xf]
      %v333 = vld [vmem:[%s328 + $0x10] sm:$0xf]
      %v334 = vld [vmem:[%s328 + $0x14] sm:$0xf]
      %v335 = vld [vmem:[%s328 + $0x18] sm:$0xf]
      %v336 = vld [vmem:[%s328 + $0x1c] sm:$0xf]
      %v337 = vld [vmem:[%s328 + $0x20] sm:$0xf]
      %v338 = vld [vmem:[%s328 + $0x24] sm:$0xf]
      %v339 = vld [vmem:[%s328 + $0x28] sm:$0xf]
      %v340 = vld [vmem:[%s328 + $0x2c] sm:$0xf]
      %v341 = vld [vmem:[%s328 + $0x30] sm:$0xf]
      %v342 = vld [vmem:[%s328 + $0x34] sm:$0xf]
      %v343 = vld [vmem:[%s328 + $0x38] sm:$0xf]
      %v344 = vld [vmem:[%s328 + $0x3c] sm:$0xf]
      %v345 = vunpack.c.l.b16 %v285
      %v346 = vunpack.c.l.b16 %v299
      %v347 = vunpack.c.l.b16 %v313
      %v348 = vunpack.c.l.b16 %v327
      %v349 = vpack.c.b16 %v346, %v345
      %v350 = vpack.c.b16 %v348, %v347
      %v369 = vunpack.c.l.b16 %v329
      %v370 = vunpack.c.l.b16 %v330
      %v371 = vunpack.c.l.b16 %v331
      %v372 = vunpack.c.l.b16 %v332
      %v373 = vunpack.c.l.b16 %v333
      %v374 = vunpack.c.l.b16 %v334
      %v375 = vunpack.c.l.b16 %v335
      %v376 = vunpack.c.l.b16 %v336
      %v377 = vunpack.c.l.b16 %v337
      %v378 = vunpack.c.l.b16 %v338
      %v379 = vunpack.c.l.b16 %v339
      %v380 = vunpack.c.l.b16 %v340
      %v381 = vunpack.c.l.b16 %v341
      %v382 = vunpack.c.l.b16 %v342
      %v383 = vunpack.c.l.b16 %v343
      %v384 = vunpack.c.l.b16 %v344
      %v385 = vpack.c.b16 %v370, %v369
      %v386 = vpack.c.b16 %v372, %v371
      %v387 = vpack.c.b16 %v374, %v373
      %v388 = vpack.c.b16 %v376, %v375
      %v389 = vpack.c.b16 %v378, %v377
      %v390 = vpack.c.b16 %v380, %v379
      %v391 = vpack.c.b16 %v382, %v381
      %v392 = vpack.c.b16 %v384, %v383
      %401 = vmatprep.subr.bf16.mxu0 0
      %402 = vmatpush1.bf16.msra.mxu0 %v385
      %403 = vmatprep.subr.bf16.mxu0 0
      %404 = vmatpush1.bf16.msra.mxu0 %v386
      %405 = vmatprep.subr.bf16.mxu0 0
      %406 = vmatpush1.bf16.msra.mxu0 %v387
      %407 = vmatprep.subr.bf16.mxu0 0
      %408 = vmatpush1.bf16.msra.mxu0 %v388
      %409 = vmatprep.subr.bf16.mxu0 0
      %410 = vmatpush1.bf16.msra.mxu0 %v389
      %411 = vmatprep.subr.bf16.mxu0 0
      %412 = vmatpush1.bf16.msra.mxu0 %v390
      %413 = vmatprep.subr.bf16.mxu0 0
      %414 = vmatpush1.bf16.msra.mxu0 %v391
      %415 = vmatprep.subr.bf16.mxu0 0
      %416 = vmatpush1.bf16.msra.mxu0 %v392
      %417 = vmatprep.subr.bf16.mxu0 0
      %418 = vmatpush1.bf16.msra.mxu0 0
      %419 = vmatprep.subr.bf16.mxu0 0
      %420 = vmatpush1.bf16.msra.mxu0 0
      %421 = vmatprep.subr.bf16.mxu0 0
      %422 = vmatpush1.bf16.msra.mxu0 0
      %423 = vmatprep.subr.bf16.mxu0 0
      %424 = vmatpush1.bf16.msra.mxu0 0
      %425 = vmatprep.subr.bf16.mxu0 0
      %426 = vmatpush1.bf16.msra.mxu0 0
      %427 = vmatprep.subr.bf16.mxu0 0
      %428 = vmatpush1.bf16.msra.mxu0 0
      %429 = vmatprep.subr.bf16.mxu0 0
      %430 = vmatpush1.bf16.msra.mxu0 0
      %431 = vmatprep.subr.bf16.mxu0 0
      %432 = vmatpush1.bf16.msra.mxu0 0
      %433 = vmatprep.mubr.bf16.mxu0 0
      %434 = vmatmul.mubr.bf16.gmra.mrb[0].mxu0 %v349
      %v435 = vpop.f32.mrb[0].mxu0
      %v436 = vadd.f32 0.0, %v435
      %v437 = vpop.f32.mrb[0].mxu0
      %v438 = vpop.f32.mrb[0].mxu0
      %v439 = vadd.f32 0.0, %v438
      %v440 = vpop.f32.mrb[0].mxu0
      %441 = vmatprep.mubr.bf16.mxu0 0
      %442 = vmatmul.mubr.bf16.gmra.mrb[0].mxu0 %v350
      %v443 = vpop.f32.mrb[0].mxu0
      %v444 = vadd.f32 0.0, %v443
      %v445 = vpop.f32.mrb[0].mxu0
      %v446 = vpop.f32.mrb[0].mxu0
      %v447 = vadd.f32 0.0, %v446
      %v448 = vpop.f32.mrb[0].mxu0
      %449 = vdwg.mxu0
      %v454 = vunpack.c.l.b16 %v245
      %v455 = vunpack.c.l.b16 %v246
      %v456 = vunpack.c.l.b16 %v247
      %v457 = vunpack.c.l.b16 %v248
      %v458 = vpack.c.b16 %v455, %v454
      %v459 = vpack.c.b16 %v457, %v456
      %v478 = vunpack.c.l.b16 %v249
      %v479 = vunpack.c.l.b16 %v250
      %v480 = vunpack.c.l.b16 %v251
      %v481 = vunpack.c.l.b16 %v252
      %v482 = vunpack.c.l.b16 %v253
      %v483 = vunpack.c.l.b16 %v254
      %v484 = vunpack.c.l.b16 %v255
      %v485 = vunpack.c.l.b16 %v256
      %v486 = vunpack.c.l.b16 %v257
      %v487 = vunpack.c.l.b16 %v258
      %v488 = vunpack.c.l.b16 %v259
      %v489 = vunpack.c.l.b16 %v260
      %v490 = vunpack.c.l.b16 %v261
      %v491 = vunpack.c.l.b16 %v262
      %v492 = vunpack.c.l.b16 %v263
      %v493 = vunpack.c.l.b16 %v264
      %v494 = vpack.c.b16 %v479, %v478
      %v495 = vpack.c.b16 %v481, %v480
      %v496 = vpack.c.b16 %v483, %v482
      %v497 = vpack.c.b16 %v485, %v484
      %v498 = vpack.c.b16 %v487, %v486
      %v499 = vpack.c.b16 %v489, %v488
      %v500 = vpack.c.b16 %v491, %v490
      %v501 = vpack.c.b16 %v493, %v492
      %510 = vmatprep.subr.bf16.mxu0 0
      %511 = vmatpush1.bf16.msra.mxu0 %v494
      %512 = vmatprep.subr.bf16.mxu0 0
      %513 = vmatpush1.bf16.msra.mxu0 %v495
      %514 = vmatprep.subr.bf16.mxu0 0
      %515 = vmatpush1.bf16.msra.mxu0 %v496
      %516 = vmatprep.subr.bf16.mxu0 0
      %517 = vmatpush1.bf16.msra.mxu0 %v497
      %518 = vmatprep.subr.bf16.mxu0 0
      %519 = vmatpush1.bf16.msra.mxu0 %v498
      %520 = vmatprep.subr.bf16.mxu0 0
      %521 = vmatpush1.bf16.msra.mxu0 %v499
      %522 = vmatprep.subr.bf16.mxu0 0
      %523 = vmatpush1.bf16.msra.mxu0 %v500
      %524 = vmatprep.subr.bf16.mxu0 0
      %525 = vmatpush1.bf16.msra.mxu0 %v501
      %526 = vmatprep.subr.bf16.mxu0 0
      %527 = vmatpush1.bf16.msra.mxu0 0
      %528 = vmatprep.subr.bf16.mxu0 0
      %529 = vmatpush1.bf16.msra.mxu0 0
      %530 = vmatprep.subr.bf16.mxu0 0
      %531 = vmatpush1.bf16.msra.mxu0 0
      %532 = vmatprep.subr.bf16.mxu0 0
      %533 = vmatpush1.bf16.msra.mxu0 0
      %534 = vmatprep.subr.bf16.mxu0 0
      %535 = vmatpush1.bf16.msra.mxu0 0
      %536 = vmatprep.subr.bf16.mxu0 0
      %537 = vmatpush1.bf16.msra.mxu0 0
      %538 = vmatprep.subr.bf16.mxu0 0
      %539 = vmatpush1.bf16.msra.mxu0 0
      %540 = vmatprep.subr.bf16.mxu0 0
      %541 = vmatpush1.bf16.msra.mxu0 0
      %542 = vmatprep.mubr.bf16.mxu0 0
      %543 = vmatmul.mubr.bf16.gmra.mrb[0].mxu0 %v458
      %v544 = vpop.f32.mrb[0].mxu0
      %v545 = vadd.f32 %v436, %v544
      %v546 = vpop.f32.mrb[0].mxu0
      %v547 = vpop.f32.mrb[0].mxu0
      %v548 = vadd.f32 %v439, %v547
      %v549 = vpop.f32.mrb[0].mxu0
      %550 = vmatprep.mubr.bf16.mxu0 0
      %551 = vmatmul.mubr.bf16.gmra.mrb[0].mxu0 %v459
      %v552 = vpop.f32.mrb[0].mxu0
      %v553 = vadd.f32 %v444, %v552
      %v554 = vpop.f32.mrb[0].mxu0
      %v555 = vpop.f32.mrb[0].mxu0
      %v556 = vadd.f32 %v447, %v555
      %v557 = vpop.f32.mrb[0].mxu0
      %558 = vdwg.mxu0
      %v559 = vld [vmem:[%s230] sm:$0xe]
      %v560 = vld [vmem:[%s230 + $0x8] sm:$0xe]
      %v561 = vld [vmem:[%s230 + $0x10] sm:$0xe]
      %v562 = vld [vmem:[%s230 + $0x18] sm:$0xe]
      %vm571 = vcmask 1042432
      %vm572 = vcmask 1046532
      %vm573 = vmor %vm571, %vm572
      %v574 = vrot.slane %v559, 5
      %v575 = vrot.slane %v574, 4
      %v576 = vrot.slane %v265, 5
      %v577 = vsel %vm573, %v575, %v576
      %v578 = vrot.slane %v560, 5
      %v579 = vrot.slane %v578, 4
      %v580 = vrot.slane %v266, 5
      %v581 = vsel %vm573, %v579, %v580
      %v582 = vrot.slane %v561, 5
      %v583 = vrot.slane %v582, 4
      %v584 = vrot.slane %v267, 5
      %v585 = vsel %vm573, %v583, %v584
      %v586 = vrot.slane %v562, 5
      %v587 = vrot.slane %v586, 4
      %v588 = vrot.slane %v268, 5
      %v589 = vsel %vm573, %v587, %v588
      %s590 = scalar_lea.vmem %s1, 128
      %v591 = vld [vmem:[%s590] sm:$0xf]
      %v592 = vld [vmem:[%s590 + $0x4] sm:$0xf]
      %v593 = vld [vmem:[%s590 + $0x8] sm:$0xf]
      %v594 = vld [vmem:[%s590 + $0xc] sm:$0xf]
      %v595 = vld [vmem:[%s590 + $0x10] sm:$0xf]
      %v596 = vld [vmem:[%s590 + $0x14] sm:$0xf]
      %v597 = vld [vmem:[%s590 + $0x18] sm:$0xf]
      %v598 = vld [vmem:[%s590 + $0x1c] sm:$0xf]
      %v599 = vld [vmem:[%s590 + $0x20] sm:$0xf]
      %v600 = vld [vmem:[%s590 + $0x24] sm:$0xf]
      %v601 = vld [vmem:[%s590 + $0x28] sm:$0xf]
      %v602 = vld [vmem:[%s590 + $0x2c] sm:$0xf]
      %v603 = vld [vmem:[%s590 + $0x30] sm:$0xf]
      %v604 = vld [vmem:[%s590 + $0x34] sm:$0xf]
      %v605 = vld [vmem:[%s590 + $0x38] sm:$0xf]
      %v606 = vld [vmem:[%s590 + $0x3c] sm:$0xf]
      %v607 = vunpack.c.l.b16 %v577
      %v608 = vunpack.c.l.b16 %v581
      %v609 = vunpack.c.l.b16 %v585
      %v610 = vunpack.c.l.b16 %v589
      %v611 = vpack.c.b16 %v608, %v607
      %v612 = vpack.c.b16 %v610, %v609
      %v631 = vunpack.c.l.b16 %v591
      %v632 = vunpack.c.l.b16 %v592
      %v633 = vunpack.c.l.b16 %v593
      %v634 = vunpack.c.l.b16 %v594
      %v635 = vunpack.c.l.b16 %v595
      %v636 = vunpack.c.l.b16 %v596
      %v637 = vunpack.c.l.b16 %v597
      %v638 = vunpack.c.l.b16 %v598
      %v639 = vunpack.c.l.b16 %v599
      %v640 = vunpack.c.l.b16 %v600
      %v641 = vunpack.c.l.b16 %v601
      %v642 = vunpack.c.l.b16 %v602
      %v643 = vunpack.c.l.b16 %v603
      %v644 = vunpack.c.l.b16 %v604
      %v645 = vunpack.c.l.b16 %v605
      %v646 = vunpack.c.l.b16 %v606
      %v647 = vpack.c.b16 %v632, %v631
      %v648 = vpack.c.b16 %v634, %v633
      %v649 = vpack.c.b16 %v636, %v635
      %v650 = vpack.c.b16 %v638, %v637
      %v651 = vpack.c.b16 %v640, %v639
      %v652 = vpack.c.b16 %v642, %v641
      %v653 = vpack.c.b16 %v644, %v643
      %v654 = vpack.c.b16 %v646, %v645
      %663 = vmatprep.subr.bf16.mxu0 0
      %664 = vmatpush1.bf16.msra.mxu0 %v647
      %665 = vmatprep.subr.bf16.mxu0 0
      %666 = vmatpush1.bf16.msra.mxu0 %v648
      %667 = vmatprep.subr.bf16.mxu0 0
      %668 = vmatpush1.bf16.msra.mxu0 %v649
      %669 = vmatprep.subr.bf16.mxu0 0
      %670 = vmatpush1.bf16.msra.mxu0 %v650
      %671 = vmatprep.subr.bf16.mxu0 0
      %672 = vmatpush1.bf16.msra.mxu0 %v651
      %673 = vmatprep.subr.bf16.mxu0 0
      %674 = vmatpush1.bf16.msra.mxu0 %v652
      %675 = vmatprep.subr.bf16.mxu0 0
      %676 = vmatpush1.bf16.msra.mxu0 %v653
      %677 = vmatprep.subr.bf16.mxu0 0
      %678 = vmatpush1.bf16.msra.mxu0 %v654
      %679 = vmatprep.subr.bf16.mxu0 0
      %680 = vmatpush1.bf16.msra.mxu0 0
      %681 = vmatprep.subr.bf16.mxu0 0
      %682 = vmatpush1.bf16.msra.mxu0 0
      %683 = vmatprep.subr.bf16.mxu0 0
      %684 = vmatpush1.bf16.msra.mxu0 0
      %685 = vmatprep.subr.bf16.mxu0 0
      %686 = vmatpush1.bf16.msra.mxu0 0
      %687 = vmatprep.subr.bf16.mxu0 0
      %688 = vmatpush1.bf16.msra.mxu0 0
      %689 = vmatprep.subr.bf16.mxu0 0
      %690 = vmatpush1.bf16.msra.mxu0 0
      %691 = vmatprep.subr.bf16.mxu0 0
      %692 = vmatpush1.bf16.msra.mxu0 0
      %693 = vmatprep.subr.bf16.mxu0 0
      %694 = vmatpush1.bf16.msra.mxu0 0
      %695 = vmatprep.mubr.bf16.mxu0 0
      %696 = vmatmul.mubr.bf16.gmra.mrb[0].mxu0 %v611
      %v697 = vpop.f32.mrb[0].mxu0
      %v698 = vadd.f32 0.0, %v697
      %v699 = vpop.f32.mrb[0].mxu0
      %v700 = vpop.f32.mrb[0].mxu0
      %v701 = vadd.f32 0.0, %v700
      %v702 = vpop.f32.mrb[0].mxu0
      %703 = vmatprep.mubr.bf16.mxu0 0
      %704 = vmatmul.mubr.bf16.gmra.mrb[0].mxu0 %v612
      %v705 = vpop.f32.mrb[0].mxu0
      %v706 = vadd.f32 0.0, %v705
      %v707 = vpop.f32.mrb[0].mxu0
      %v708 = vpop.f32.mrb[0].mxu0
      %v709 = vadd.f32 0.0, %v708
      %v710 = vpop.f32.mrb[0].mxu0
      %711 = vdwg.mxu0
      %v712 = vadd.f32 %v545, %v698
      %v713 = vadd.f32 %v548, %v701
      %v714 = vadd.f32 %v553, %v706
      %v715 = vadd.f32 %v556, %v709
      %s716 = scalar_lea.vmem %s230, 8
      %v717 = vld [vmem:[%s716] sm:$0xf]
      %v718 = vld [vmem:[%s716 + $0x8] sm:$0xf]
      %v719 = vld [vmem:[%s716 + $0x10] sm:$0xf]
      %v720 = vld [vmem:[%s716 + $0x18] sm:$0xf]
      %s721 = scalar_lea.vmem %s1, 192
      %v722 = vld [vmem:[%s721] sm:$0xf]
      %v723 = vld [vmem:[%s721 + $0x4] sm:$0xf]
      %v724 = vld [vmem:[%s721 + $0x8] sm:$0xf]
      %v725 = vld [vmem:[%s721 + $0xc] sm:$0xf]
      %v726 = vld [vmem:[%s721 + $0x10] sm:$0xf]
      %v727 = vld [vmem:[%s721 + $0x14] sm:$0xf]
      %v728 = vld [vmem:[%s721 + $0x18] sm:$0xf]
      %v729 = vld [vmem:[%s721 + $0x1c] sm:$0xf]
      %v730 = vld [vmem:[%s721 + $0x20] sm:$0xf]
      %v731 = vld [vmem:[%s721 + $0x24] sm:$0xf]
      %v732 = vld [vmem:[%s721 + $0x28] sm:$0xf]
      %v733 = vld [vmem:[%s721 + $0x2c] sm:$0xf]
      %v734 = vld [vmem:[%s721 + $0x30] sm:$0xf]
      %v735 = vld [vmem:[%s721 + $0x34] sm:$0xf]
      %v736 = vld [vmem:[%s721 + $0x38] sm:$0xf]
      %v737 = vld [vmem:[%s721 + $0x3c] sm:$0xf]
      %v742 = vunpack.c.l.b16 %v717
      %v743 = vunpack.c.l.b16 %v718
      %v744 = vunpack.c.l.b16 %v719
      %v745 = vunpack.c.l.b16 %v720
      %v746 = vpack.c.b16 %v743, %v742
      %v747 = vpack.c.b16 %v745, %v744
      %v766 = vunpack.c.l.b16 %v722
      %v767 = vunpack.c.l.b16 %v723
      %v768 = vunpack.c.l.b16 %v724
      %v769 = vunpack.c.l.b16 %v725
      %v770 = vunpack.c.l.b16 %v726
      %v771 = vunpack.c.l.b16 %v727
      %v772 = vunpack.c.l.b16 %v728
      %v773 = vunpack.c.l.b16 %v729
      %v774 = vunpack.c.l.b16 %v730
      %v775 = vunpack.c.l.b16 %v731
      %v776 = vunpack.c.l.b16 %v732
      %v777 = vunpack.c.l.b16 %v733
      %v778 = vunpack.c.l.b16 %v734
      %v779 = vunpack.c.l.b16 %v735
      %v780 = vunpack.c.l.b16 %v736
      %v781 = vunpack.c.l.b16 %v737
      %v782 = vpack.c.b16 %v767, %v766
      %v783 = vpack.c.b16 %v769, %v768
      %v784 = vpack.c.b16 %v771, %v770
      %v785 = vpack.c.b16 %v773, %v772
      %v786 = vpack.c.b16 %v775, %v774
      %v787 = vpack.c.b16 %v777, %v776
      %v788 = vpack.c.b16 %v779, %v778
      %v789 = vpack.c.b16 %v781, %v780
      %798 = vmatprep.subr.bf16.mxu0 0
      %799 = vmatpush1.bf16.msra.mxu0 %v782
      %800 = vmatprep.subr.bf16.mxu0 0
      %801 = vmatpush1.bf16.msra.mxu0 %v783
      %802 = vmatprep.subr.bf16.mxu0 0
      %803 = vmatpush1.bf16.msra.mxu0 %v784
      %804 = vmatprep.subr.bf16.mxu0 0
      %805 = vmatpush1.bf16.msra.mxu0 %v785
      %806 = vmatprep.subr.bf16.mxu0 0
      %807 = vmatpush1.bf16.msra.mxu0 %v786
      %808 = vmatprep.subr.bf16.mxu0 0
      %809 = vmatpush1.bf16.msra.mxu0 %v787
      %810 = vmatprep.subr.bf16.mxu0 0
      %811 = vmatpush1.bf16.msra.mxu0 %v788
      %812 = vmatprep.subr.bf16.mxu0 0
      %813 = vmatpush1.bf16.msra.mxu0 %v789
      %814 = vmatprep.subr.bf16.mxu0 0
      %815 = vmatpush1.bf16.msra.mxu0 0
      %816 = vmatprep.subr.bf16.mxu0 0
      %817 = vmatpush1.bf16.msra.mxu0 0
      %818 = vmatprep.subr.bf16.mxu0 0
      %819 = vmatpush1.bf16.msra.mxu0 0
      %820 = vmatprep.subr.bf16.mxu0 0
      %821 = vmatpush1.bf16.msra.mxu0 0
      %822 = vmatprep.subr.bf16.mxu0 0
      %823 = vmatpush1.bf16.msra.mxu0 0
      %824 = vmatprep.subr.bf16.mxu0 0
      %825 = vmatpush1.bf16.msra.mxu0 0
      %826 = vmatprep.subr.bf16.mxu0 0
      %827 = vmatpush1.bf16.msra.mxu0 0
      %828 = vmatprep.subr.bf16.mxu0 0
      %829 = vmatpush1.bf16.msra.mxu0 0
      %830 = vmatprep.mubr.bf16.mxu0 0
      %831 = vmatmul.mubr.bf16.gmra.mrb[0].mxu0 %v746
      %v832 = vpop.f32.mrb[0].mxu0
      %v833 = vadd.f32 0.0, %v832
      %v834 = vpop.f32.mrb[0].mxu0
      %v835 = vpop.f32.mrb[0].mxu0
      %v836 = vadd.f32 0.0, %v835
      %v837 = vpop.f32.mrb[0].mxu0
      %838 = vmatprep.mubr.bf16.mxu0 0
      %839 = vmatmul.mubr.bf16.gmra.mrb[0].mxu0 %v747
      %v840 = vpop.f32.mrb[0].mxu0
      %v841 = vadd.f32 0.0, %v840
      %v842 = vpop.f32.mrb[0].mxu0
      %v843 = vpop.f32.mrb[0].mxu0
      %v844 = vadd.f32 0.0, %v843
      %v845 = vpop.f32.mrb[0].mxu0
      %846 = vdwg.mxu0
      %v847 = vadd.f32 %v712, %v833
      %v848 = vadd.f32 %v713, %v836
      %v849 = vadd.f32 %v714, %v841
      %v850 = vadd.f32 %v715, %v844
      %v851 = vld [vmem:[%s716] sm:$0xf]
      %v852 = vld [vmem:[%s716 + $0x4] sm:$0x1]
      %v853 = vld [vmem:[%s716 + $0x8] sm:$0xf]
      %v854 = vld [vmem:[%s716 + $0xc] sm:$0x1]
      %v855 = vld [vmem:[%s716 + $0x10] sm:$0xf]
      %v856 = vld [vmem:[%s716 + $0x14] sm:$0x1]
      %v857 = vld [vmem:[%s716 + $0x18] sm:$0xf]
      %v858 = vld [vmem:[%s716 + $0x1c] sm:$0x1]
      %v860 = vshrl.u32 %v851, 16
      %v862 = vrot.slane %v860, 4
      %v863 = vshll.u32 %v851, 16
      %v865 = vrot.slane %v863, 5
      %v866 = vor.u32 %v862, %v865
      %v867 = vrot.slane %v866, 4
      %v869 = vshll.u32 %v852, 16
      %v871 = vrot.slane %v869, 5
      %v872 = vsel %vm271, %v867, %v871
      %v874 = vshrl.u32 %v853, 16
      %v876 = vrot.slane %v874, 4
      %v877 = vshll.u32 %v853, 16
      %v879 = vrot.slane %v877, 5
      %v880 = vor.u32 %v876, %v879
      %v881 = vrot.slane %v880, 4
      %v883 = vshll.u32 %v854, 16
      %v885 = vrot.slane %v883, 5
      %v886 = vsel %vm271, %v881, %v885
      %v888 = vshrl.u32 %v855, 16
      %v890 = vrot.slane %v888, 4
      %v891 = vshll.u32 %v855, 16
      %v893 = vrot.slane %v891, 5
      %v894 = vor.u32 %v890, %v893
      %v895 = vrot.slane %v894, 4
      %v897 = vshll.u32 %v856, 16
      %v899 = vrot.slane %v897, 5
      %v900 = vsel %vm271, %v895, %v899
      %v902 = vshrl.u32 %v857, 16
      %v904 = vrot.slane %v902, 4
      %v905 = vshll.u32 %v857, 16
      %v907 = vrot.slane %v905, 5
      %v908 = vor.u32 %v904, %v907
      %v909 = vrot.slane %v908, 4
      %v911 = vshll.u32 %v858, 16
      %v913 = vrot.slane %v911, 5
      %v914 = vsel %vm271, %v909, %v913
      %s915 = scalar_lea.vmem %s1, 256
      %v916 = vld [vmem:[%s915] sm:$0xf]
      %v917 = vld [vmem:[%s915 + $0x4] sm:$0xf]
      %v918 = vld [vmem:[%s915 + $0x8] sm:$0xf]
      %v919 = vld [vmem:[%s915 + $0xc] sm:$0xf]
      %v920 = vld [vmem:[%s915 + $0x10] sm:$0xf]
      %v921 = vld [vmem:[%s915 + $0x14] sm:$0xf]
      %v922 = vld [vmem:[%s915 + $0x18] sm:$0xf]
      %v923 = vld [vmem:[%s915 + $0x1c] sm:$0xf]
      %v924 = vld [vmem:[%s915 + $0x20] sm:$0xf]
      %v925 = vld [vmem:[%s915 + $0x24] sm:$0xf]
      %v926 = vld [vmem:[%s915 + $0x28] sm:$0xf]
      %v927 = vld [vmem:[%s915 + $0x2c] sm:$0xf]
      %v928 = vld [vmem:[%s915 + $0x30] sm:$0xf]
      %v929 = vld [vmem:[%s915 + $0x34] sm:$0xf]
      %v930 = vld [vmem:[%s915 + $0x38] sm:$0xf]
      %v931 = vld [vmem:[%s915 + $0x3c] sm:$0xf]
      %v932 = vunpack.c.l.b16 %v872
      %v933 = vunpack.c.l.b16 %v886
      %v934 = vunpack.c.l.b16 %v900
      %v935 = vunpack.c.l.b16 %v914
      %v936 = vpack.c.b16 %v933, %v932
      %v937 = vpack.c.b16 %v935, %v934
      %v956 = vunpack.c.l.b16 %v916
      %v957 = vunpack.c.l.b16 %v917
      %v958 = vunpack.c.l.b16 %v918
      %v959 = vunpack.c.l.b16 %v919
      %v960 = vunpack.c.l.b16 %v920
      %v961 = vunpack.c.l.b16 %v921
      %v962 = vunpack.c.l.b16 %v922
      %v963 = vunpack.c.l.b16 %v923
      %v964 = vunpack.c.l.b16 %v924
      %v965 = vunpack.c.l.b16 %v925
      %v966 = vunpack.c.l.b16 %v926
      %v967 = vunpack.c.l.b16 %v927
      %v968 = vunpack.c.l.b16 %v928
      %v969 = vunpack.c.l.b16 %v929
      %v970 = vunpack.c.l.b16 %v930
      %v971 = vunpack.c.l.b16 %v931
      %v972 = vpack.c.b16 %v957, %v956
      %v973 = vpack.c.b16 %v959, %v958
      %v974 = vpack.c.b16 %v961, %v960
      %v975 = vpack.c.b16 %v963, %v962
      %v976 = vpack.c.b16 %v965, %v964
      %v977 = vpack.c.b16 %v967, %v966
      %v978 = vpack.c.b16 %v969, %v968
      %v979 = vpack.c.b16 %v971, %v970
      %988 = vmatprep.subr.bf16.mxu0 0
      %989 = vmatpush1.bf16.msra.mxu0 %v972
      %990 = vmatprep.subr.bf16.mxu0 0
      %991 = vmatpush1.bf16.msra.mxu0 %v973
      %992 = vmatprep.subr.bf16.mxu0 0
      %993 = vmatpush1.bf16.msra.mxu0 %v974
      %994 = vmatprep.subr.bf16.mxu0 0
      %995 = vmatpush1.bf16.msra.mxu0 %v975
      %996 = vmatprep.subr.bf16.mxu0 0
      %997 = vmatpush1.bf16.msra.mxu0 %v976
      %998 = vmatprep.subr.bf16.mxu0 0
      %999 = vmatpush1.bf16.msra.mxu0 %v977
      %1000 = vmatprep.subr.bf16.mxu0 0
      %1001 = vmatpush1.bf16.msra.mxu0 %v978
      %1002 = vmatprep.subr.bf16.mxu0 0
      %1003 = vmatpush1.bf16.msra.mxu0 %v979
      %1004 = vmatprep.subr.bf16.mxu0 0
      %1005 = vmatpush1.bf16.msra.mxu0 0
      %1006 = vmatprep.subr.bf16.mxu0 0
      %1007 = vmatpush1.bf16.msra.mxu0 0
      %1008 = vmatprep.subr.bf16.mxu0 0
      %1009 = vmatpush1.bf16.msra.mxu0 0
      %1010 = vmatprep.subr.bf16.mxu0 0
      %1011 = vmatpush1.bf16.msra.mxu0 0
      %1012 = vmatprep.subr.bf16.mxu0 0
      %1013 = vmatpush1.bf16.msra.mxu0 0
      %1014 = vmatprep.subr.bf16.mxu0 0
      %1015 = vmatpush1.bf16.msra.mxu0 0
      %1016 = vmatprep.subr.bf16.mxu0 0
      %1017 = vmatpush1.bf16.msra.mxu0 0
      %1018 = vmatprep.subr.bf16.mxu0 0
      %1019 = vmatpush1.bf16.msra.mxu0 0
      %1020 = vmatprep.mubr.bf16.mxu0 0
      %1021 = vmatmul.mubr.bf16.gmra.mrb[0].mxu0 %v936
      %v1022 = vpop.f32.mrb[0].mxu0
      %v1023 = vadd.f32 0.0, %v1022
      %v1024 = vpop.f32.mrb[0].mxu0
      %v1025 = vpop.f32.mrb[0].mxu0
      %v1026 = vadd.f32 0.0, %v1025
      %v1027 = vpop.f32.mrb[0].mxu0
      %1028 = vmatprep.mubr.bf16.mxu0 0
      %1029 = vmatmul.mubr.bf16.gmra.mrb[0].mxu0 %v937
      %v1030 = vpop.f32.mrb[0].mxu0
      %v1031 = vadd.f32 0.0, %v1030
      %v1032 = vpop.f32.mrb[0].mxu0
      %v1033 = vpop.f32.mrb[0].mxu0
      %v1034 = vadd.f32 0.0, %v1033
      %v1035 = vpop.f32.mrb[0].mxu0
      %1036 = vdwg.mxu0
      %v1037 = vadd.f32 %v847, %v1023
      %v1038 = vadd.f32 %v848, %v1026
      %v1039 = vadd.f32 %v849, %v1031
      %v1040 = vadd.f32 %v850, %v1034
      %v1041 = vld [vmem:[%s716] sm:$0xe]
      %v1042 = vld [vmem:[%s716 + $0x8] sm:$0xe]
      %v1043 = vld [vmem:[%s716 + $0x10] sm:$0xe]
      %v1044 = vld [vmem:[%s716 + $0x18] sm:$0xe]
      %v1053 = vrot.slane %v1041, 5
      %v1054 = vrot.slane %v1053, 4
      %v1055 = vrot.slane %v852, 5
      %v1056 = vsel %vm573, %v1054, %v1055
      %v1057 = vrot.slane %v1042, 5
      %v1058 = vrot.slane %v1057, 4
      %v1059 = vrot.slane %v854, 5
      %v1060 = vsel %vm573, %v1058, %v1059
      %v1061 = vrot.slane %v1043, 5
      %v1062 = vrot.slane %v1061, 4
      %v1063 = vrot.slane %v856, 5
      %v1064 = vsel %vm573, %v1062, %v1063
      %v1065 = vrot.slane %v1044, 5
      %v1066 = vrot.slane %v1065, 4
      %v1067 = vrot.slane %v858, 5
      %v1068 = vsel %vm573, %v1066, %v1067
      %s1069 = scalar_lea.vmem %s1, 320
      %v1070 = vld [vmem:[%s1069] sm:$0xf]
      %v1071 = vld [vmem:[%s1069 + $0x4] sm:$0xf]
      %v1072 = vld [vmem:[%s1069 + $0x8] sm:$0xf]
      %v1073 = vld [vmem:[%s1069 + $0xc] sm:$0xf]
      %v1074 = vld [vmem:[%s1069 + $0x10] sm:$0xf]
      %v1075 = vld [vmem:[%s1069 + $0x14] sm:$0xf]
      %v1076 = vld [vmem:[%s1069 + $0x18] sm:$0xf]
      %v1077 = vld [vmem:[%s1069 + $0x1c] sm:$0xf]
      %v1078 = vld [vmem:[%s1069 + $0x20] sm:$0xf]
      %v1079 = vld [vmem:[%s1069 + $0x24] sm:$0xf]
      %v1080 = vld [vmem:[%s1069 + $0x28] sm:$0xf]
      %v1081 = vld [vmem:[%s1069 + $0x2c] sm:$0xf]
      %v1082 = vld [vmem:[%s1069 + $0x30] sm:$0xf]
      %v1083 = vld [vmem:[%s1069 + $0x34] sm:$0xf]
      %v1084 = vld [vmem:[%s1069 + $0x38] sm:$0xf]
      %v1085 = vld [vmem:[%s1069 + $0x3c] sm:$0xf]
      %v1086 = vunpack.c.l.b16 %v1056
      %v1087 = vunpack.c.l.b16 %v1060
      %v1088 = vunpack.c.l.b16 %v1064
      %v1089 = vunpack.c.l.b16 %v1068
      %v1090 = vpack.c.b16 %v1087, %v1086
      %v1091 = vpack.c.b16 %v1089, %v1088
      %v1110 = vunpack.c.l.b16 %v1070
      %v1111 = vunpack.c.l.b16 %v1071
      %v1112 = vunpack.c.l.b16 %v1072
      %v1113 = vunpack.c.l.b16 %v1073
      %v1114 = vunpack.c.l.b16 %v1074
      %v1115 = vunpack.c.l.b16 %v1075
      %v1116 = vunpack.c.l.b16 %v1076
      %v1117 = vunpack.c.l.b16 %v1077
      %v1118 = vunpack.c.l.b16 %v1078
      %v1119 = vunpack.c.l.b16 %v1079
      %v1120 = vunpack.c.l.b16 %v1080
      %v1121 = vunpack.c.l.b16 %v1081
      %v1122 = vunpack.c.l.b16 %v1082
      %v1123 = vunpack.c.l.b16 %v1083
      %v1124 = vunpack.c.l.b16 %v1084
      %v1125 = vunpack.c.l.b16 %v1085
      %v1126 = vpack.c.b16 %v1111, %v1110
      %v1127 = vpack.c.b16 %v1113, %v1112
      %v1128 = vpack.c.b16 %v1115, %v1114
      %v1129 = vpack.c.b16 %v1117, %v1116
      %v1130 = vpack.c.b16 %v1119, %v1118
      %v1131 = vpack.c.b16 %v1121, %v1120
      %v1132 = vpack.c.b16 %v1123, %v1122
      %v1133 = vpack.c.b16 %v1125, %v1124
      %1142 = vmatprep.subr.bf16.mxu0 0
      %1143 = vmatpush1.bf16.msra.mxu0 %v1126
      %1144 = vmatprep.subr.bf16.mxu0 0
      %1145 = vmatpush1.bf16.msra.mxu0 %v1127
      %1146 = vmatprep.subr.bf16.mxu0 0
      %1147 = vmatpush1.bf16.msra.mxu0 %v1128
      %1148 = vmatprep.subr.bf16.mxu0 0
      %1149 = vmatpush1.bf16.msra.mxu0 %v1129
      %1150 = vmatprep.subr.bf16.mxu0 0
      %1151 = vmatpush1.bf16.msra.mxu0 %v1130
      %1152 = vmatprep.subr.bf16.mxu0 0
      %1153 = vmatpush1.bf16.msra.mxu0 %v1131
      %1154 = vmatprep.subr.bf16.mxu0 0
      %1155 = vmatpush1.bf16.msra.mxu0 %v1132
      %1156 = vmatprep.subr.bf16.mxu0 0
      %1157 = vmatpush1.bf16.msra.mxu0 %v1133
      %1158 = vmatprep.subr.bf16.mxu0 0
      %1159 = vmatpush1.bf16.msra.mxu0 0
      %1160 = vmatprep.subr.bf16.mxu0 0
      %1161 = vmatpush1.bf16.msra.mxu0 0
      %1162 = vmatprep.subr.bf16.mxu0 0
      %1163 = vmatpush1.bf16.msra.mxu0 0
      %1164 = vmatprep.subr.bf16.mxu0 0
      %1165 = vmatpush1.bf16.msra.mxu0 0
      %1166 = vmatprep.subr.bf16.mxu0 0
      %1167 = vmatpush1.bf16.msra.mxu0 0
      %1168 = vmatprep.subr.bf16.mxu0 0
      %1169 = vmatpush1.bf16.msra.mxu0 0
      %1170 = vmatprep.subr.bf16.mxu0 0
      %1171 = vmatpush1.bf16.msra.mxu0 0
      %1172 = vmatprep.subr.bf16.mxu0 0
      %1173 = vmatpush1.bf16.msra.mxu0 0
      %1174 = vmatprep.mubr.bf16.mxu0 0
      %1175 = vmatmul.mubr.bf16.gmra.mrb[0].mxu0 %v1090
      %v1176 = vpop.f32.mrb[0].mxu0
      %v1177 = vadd.f32 0.0, %v1176
      %v1178 = vpop.f32.mrb[0].mxu0
      %v1179 = vpop.f32.mrb[0].mxu0
      %v1180 = vadd.f32 0.0, %v1179
      %v1181 = vpop.f32.mrb[0].mxu0
      %1182 = vmatprep.mubr.bf16.mxu0 0
      %1183 = vmatmul.mubr.bf16.gmra.mrb[0].mxu0 %v1091
      %v1184 = vpop.f32.mrb[0].mxu0
      %v1185 = vadd.f32 0.0, %v1184
      %v1186 = vpop.f32.mrb[0].mxu0
      %v1187 = vpop.f32.mrb[0].mxu0
      %v1188 = vadd.f32 0.0, %v1187
      %v1189 = vpop.f32.mrb[0].mxu0
      %1190 = vdwg.mxu0
      %v1191 = vadd.f32 %v1037, %v1177
      %v1192 = vadd.f32 %v1038, %v1180
      %v1193 = vadd.f32 %v1039, %v1185
      %v1194 = vadd.f32 %v1040, %v1188
      %s1195 = scalar_lea.vmem %s230, 16
      %v1196 = vld [vmem:[%s1195] sm:$0xf]
      %v1197 = vld [vmem:[%s1195 + $0x8] sm:$0xf]
      %v1198 = vld [vmem:[%s1195 + $0x10] sm:$0xf]
      %v1199 = vld [vmem:[%s1195 + $0x18] sm:$0xf]
      %s1200 = scalar_lea.vmem %s1, 384
      %v1201 = vld [vmem:[%s1200] sm:$0xf]
      %v1202 = vld [vmem:[%s1200 + $0x4] sm:$0xf]
      %v1203 = vld [vmem:[%s1200 + $0x8] sm:$0xf]
      %v1204 = vld [vmem:[%s1200 + $0xc] sm:$0xf]
      %v1205 = vld [vmem:[%s1200 + $0x10] sm:$0xf]
      %v1206 = vld [vmem:[%s1200 + $0x14] sm:$0xf]
      %v1207 = vld [vmem:[%s1200 + $0x18] sm:$0xf]
      %v1208 = vld [vmem:[%s1200 + $0x1c] sm:$0xf]
      %v1209 = vld [vmem:[%s1200 + $0x20] sm:$0xf]
      %v1210 = vld [vmem:[%s1200 + $0x24] sm:$0xf]
      %v1211 = vld [vmem:[%s1200 + $0x28] sm:$0xf]
      %v1212 = vld [vmem:[%s1200 + $0x2c] sm:$0xf]
      %v1213 = vld [vmem:[%s1200 + $0x30] sm:$0xf]
      %v1214 = vld [vmem:[%s1200 + $0x34] sm:$0xf]
      %v1215 = vld [vmem:[%s1200 + $0x38] sm:$0xf]
      %v1216 = vld [vmem:[%s1200 + $0x3c] sm:$0xf]
      %v1221 = vunpack.c.l.b16 %v1196
      %v1222 = vunpack.c.l.b16 %v1197
      %v1223 = vunpack.c.l.b16 %v1198
      %v1224 = vunpack.c.l.b16 %v1199
      %v1225 = vpack.c.b16 %v1222, %v1221
      %v1226 = vpack.c.b16 %v1224, %v1223
      %v1245 = vunpack.c.l.b16 %v1201
      %v1246 = vunpack.c.l.b16 %v1202
      %v1247 = vunpack.c.l.b16 %v1203
      %v1248 = vunpack.c.l.b16 %v1204
      %v1249 = vunpack.c.l.b16 %v1205
      %v1250 = vunpack.c.l.b16 %v1206
      %v1251 = vunpack.c.l.b16 %v1207
      %v1252 = vunpack.c.l.b16 %v1208
      %v1253 = vunpack.c.l.b16 %v1209
      %v1254 = vunpack.c.l.b16 %v1210
      %v1255 = vunpack.c.l.b16 %v1211
      %v1256 = vunpack.c.l.b16 %v1212
      %v1257 = vunpack.c.l.b16 %v1213
      %v1258 = vunpack.c.l.b16 %v1214
      %v1259 = vunpack.c.l.b16 %v1215
      %v1260 = vunpack.c.l.b16 %v1216
      %v1261 = vpack.c.b16 %v1246, %v1245
      %v1262 = vpack.c.b16 %v1248, %v1247
      %v1263 = vpack.c.b16 %v1250, %v1249
      %v1264 = vpack.c.b16 %v1252, %v1251
      %v1265 = vpack.c.b16 %v1254, %v1253
      %v1266 = vpack.c.b16 %v1256, %v1255
      %v1267 = vpack.c.b16 %v1258, %v1257
      %v1268 = vpack.c.b16 %v1260, %v1259
      %1277 = vmatprep.subr.bf16.mxu0 0
      %1278 = vmatpush1.bf16.msra.mxu0 %v1261
      %1279 = vmatprep.subr.bf16.mxu0 0
      %1280 = vmatpush1.bf16.msra.mxu0 %v1262
      %1281 = vmatprep.subr.bf16.mxu0 0
      %1282 = vmatpush1.bf16.msra.mxu0 %v1263
      %1283 = vmatprep.subr.bf16.mxu0 0
      %1284 = vmatpush1.bf16.msra.mxu0 %v1264
      %1285 = vmatprep.subr.bf16.mxu0 0
      %1286 = vmatpush1.bf16.msra.mxu0 %v1265
      %1287 = vmatprep.subr.bf16.mxu0 0
      %1288 = vmatpush1.bf16.msra.mxu0 %v1266
      %1289 = vmatprep.subr.bf16.mxu0 0
      %1290 = vmatpush1.bf16.msra.mxu0 %v1267
      %1291 = vmatprep.subr.bf16.mxu0 0
      %1292 = vmatpush1.bf16.msra.mxu0 %v1268
      %1293 = vmatprep.subr.bf16.mxu0 0
      %1294 = vmatpush1.bf16.msra.mxu0 0
      %1295 = vmatprep.subr.bf16.mxu0 0
      %1296 = vmatpush1.bf16.msra.mxu0 0
      %1297 = vmatprep.subr.bf16.mxu0 0
      %1298 = vmatpush1.bf16.msra.mxu0 0
      %1299 = vmatprep.subr.bf16.mxu0 0
      %1300 = vmatpush1.bf16.msra.mxu0 0
      %1301 = vmatprep.subr.bf16.mxu0 0
      %1302 = vmatpush1.bf16.msra.mxu0 0
      %1303 = vmatprep.subr.bf16.mxu0 0
      %1304 = vmatpush1.bf16.msra.mxu0 0
      %1305 = vmatprep.subr.bf16.mxu0 0
      %1306 = vmatpush1.bf16.msra.mxu0 0
      %1307 = vmatprep.subr.bf16.mxu0 0
      %1308 = vmatpush1.bf16.msra.mxu0 0
      %1309 = vmatprep.mubr.bf16.mxu0 0
      %1310 = vmatmul.mubr.bf16.gmra.mrb[0].mxu0 %v1225
      %v1311 = vpop.f32.mrb[0].mxu0
      %v1312 = vadd.f32 0.0, %v1311
      %v1313 = vpop.f32.mrb[0].mxu0
      %v1314 = vpop.f32.mrb[0].mxu0
      %v1315 = vadd.f32 0.0, %v1314
      %v1316 = vpop.f32.mrb[0].mxu0
      %1317 = vmatprep.mubr.bf16.mxu0 0
      %1318 = vmatmul.mubr.bf16.gmra.mrb[0].mxu0 %v1226
      %v1319 = vpop.f32.mrb[0].mxu0
      %v1320 = vadd.f32 0.0, %v1319
      %v1321 = vpop.f32.mrb[0].mxu0
      %v1322 = vpop.f32.mrb[0].mxu0
      %v1323 = vadd.f32 0.0, %v1322
      %v1324 = vpop.f32.mrb[0].mxu0
      %1325 = vdwg.mxu0
      %v1326 = vadd.f32 %v1191, %v1312
      %v1327 = vadd.f32 %v1192, %v1315
      %v1328 = vadd.f32 %v1193, %v1320
      %v1329 = vadd.f32 %v1194, %v1323
      %v1330 = vld [vmem:[%s1195] sm:$0xf]
      %v1331 = vld [vmem:[%s1195 + $0x4] sm:$0x1]
      %v1332 = vld [vmem:[%s1195 + $0x8] sm:$0xf]
      %v1333 = vld [vmem:[%s1195 + $0xc] sm:$0x1]
      %v1334 = vld [vmem:[%s1195 + $0x10] sm:$0xf]
      %v1335 = vld [vmem:[%s1195 + $0x14] sm:$0x1]
      %v1336 = vld [vmem:[%s1195 + $0x18] sm:$0xf]
      %v1337 = vld [vmem:[%s1195 + $0x1c] sm:$0x1]
      %v1339 = vshrl.u32 %v1330, 16
      %v1341 = vrot.slane %v1339, 4
      %v1342 = vshll.u32 %v1330, 16
      %v1344 = vrot.slane %v1342, 5
      %v1345 = vor.u32 %v1341, %v1344
      %v1346 = vrot.slane %v1345, 4
      %v1348 = vshll.u32 %v1331, 16
      %v1350 = vrot.slane %v1348, 5
      %v1351 = vsel %vm271, %v1346, %v1350
      %v1353 = vshrl.u32 %v1332, 16
      %v1355 = vrot.slane %v1353, 4
      %v1356 = vshll.u32 %v1332, 16
      %v1358 = vrot.slane %v1356, 5
      %v1359 = vor.u32 %v1355, %v1358
      %v1360 = vrot.slane %v1359, 4
      %v1362 = vshll.u32 %v1333, 16
      %v1364 = vrot.slane %v1362, 5
      %v1365 = vsel %vm271, %v1360, %v1364
      %v1367 = vshrl.u32 %v1334, 16
      %v1369 = vrot.slane %v1367, 4
      %v1370 = vshll.u32 %v1334, 16
      %v1372 = vrot.slane %v1370, 5
      %v1373 = vor.u32 %v1369, %v1372
      %v1374 = vrot.slane %v1373, 4
      %v1376 = vshll.u32 %v1335, 16
      %v1378 = vrot.slane %v1376, 5
      %v1379 = vsel %vm271, %v1374, %v1378
      %v1381 = vshrl.u32 %v1336, 16
      %v1383 = vrot.slane %v1381, 4
      %v1384 = vshll.u32 %v1336, 16
      %v1386 = vrot.slane %v1384, 5
      %v1387 = vor.u32 %v1383, %v1386
      %v1388 = vrot.slane %v1387, 4
      %v1390 = vshll.u32 %v1337, 16
      %v1392 = vrot.slane %v1390, 5
      %v1393 = vsel %vm271, %v1388, %v1392
      %s1394 = scalar_lea.vmem %s1, 448
      %v1395 = vld [vmem:[%s1394] sm:$0xf]
      %v1396 = vld [vmem:[%s1394 + $0x4] sm:$0xf]
      %v1397 = vld [vmem:[%s1394 + $0x8] sm:$0xf]
      %v1398 = vld [vmem:[%s1394 + $0xc] sm:$0xf]
      %v1399 = vld [vmem:[%s1394 + $0x10] sm:$0xf]
      %v1400 = vld [vmem:[%s1394 + $0x14] sm:$0xf]
      %v1401 = vld [vmem:[%s1394 + $0x18] sm:$0xf]
      %v1402 = vld [vmem:[%s1394 + $0x1c] sm:$0xf]
      %v1403 = vld [vmem:[%s1394 + $0x20] sm:$0xf]
      %v1404 = vld [vmem:[%s1394 + $0x24] sm:$0xf]
      %v1405 = vld [vmem:[%s1394 + $0x28] sm:$0xf]
      %v1406 = vld [vmem:[%s1394 + $0x2c] sm:$0xf]
      %v1407 = vld [vmem:[%s1394 + $0x30] sm:$0xf]
      %v1408 = vld [vmem:[%s1394 + $0x34] sm:$0xf]
      %v1409 = vld [vmem:[%s1394 + $0x38] sm:$0xf]
      %v1410 = vld [vmem:[%s1394 + $0x3c] sm:$0xf]
      %v1411 = vunpack.c.l.b16 %v1351
      %v1412 = vunpack.c.l.b16 %v1365
      %v1413 = vunpack.c.l.b16 %v1379
      %v1414 = vunpack.c.l.b16 %v1393
      %v1415 = vpack.c.b16 %v1412, %v1411
      %v1416 = vpack.c.b16 %v1414, %v1413
      %v1435 = vunpack.c.l.b16 %v1395
      %v1436 = vunpack.c.l.b16 %v1396
      %v1437 = vunpack.c.l.b16 %v1397
      %v1438 = vunpack.c.l.b16 %v1398
      %v1439 = vunpack.c.l.b16 %v1399
      %v1440 = vunpack.c.l.b16 %v1400
      %v1441 = vunpack.c.l.b16 %v1401
      %v1442 = vunpack.c.l.b16 %v1402
      %v1443 = vunpack.c.l.b16 %v1403
      %v1444 = vunpack.c.l.b16 %v1404
      %v1445 = vunpack.c.l.b16 %v1405
      %v1446 = vunpack.c.l.b16 %v1406
      %v1447 = vunpack.c.l.b16 %v1407
      %v1448 = vunpack.c.l.b16 %v1408
      %v1449 = vunpack.c.l.b16 %v1409
      %v1450 = vunpack.c.l.b16 %v1410
      %v1451 = vpack.c.b16 %v1436, %v1435
      %v1452 = vpack.c.b16 %v1438, %v1437
      %v1453 = vpack.c.b16 %v1440, %v1439
      %v1454 = vpack.c.b16 %v1442, %v1441
      %v1455 = vpack.c.b16 %v1444, %v1443
      %v1456 = vpack.c.b16 %v1446, %v1445
      %v1457 = vpack.c.b16 %v1448, %v1447
      %v1458 = vpack.c.b16 %v1450, %v1449
      %1467 = vmatprep.subr.bf16.mxu0 0
      %1468 = vmatpush1.bf16.msra.mxu0 %v1451
      %1469 = vmatprep.subr.bf16.mxu0 0
      %1470 = vmatpush1.bf16.msra.mxu0 %v1452
      %1471 = vmatprep.subr.bf16.mxu0 0
      %1472 = vmatpush1.bf16.msra.mxu0 %v1453
      %1473 = vmatprep.subr.bf16.mxu0 0
      %1474 = vmatpush1.bf16.msra.mxu0 %v1454
      %1475 = vmatprep.subr.bf16.mxu0 0
      %1476 = vmatpush1.bf16.msra.mxu0 %v1455
      %1477 = vmatprep.subr.bf16.mxu0 0
      %1478 = vmatpush1.bf16.msra.mxu0 %v1456
      %1479 = vmatprep.subr.bf16.mxu0 0
      %1480 = vmatpush1.bf16.msra.mxu0 %v1457
      %1481 = vmatprep.subr.bf16.mxu0 0
      %1482 = vmatpush1.bf16.msra.mxu0 %v1458
      %1483 = vmatprep.subr.bf16.mxu0 0
      %1484 = vmatpush1.bf16.msra.mxu0 0
      %1485 = vmatprep.subr.bf16.mxu0 0
      %1486 = vmatpush1.bf16.msra.mxu0 0
      %1487 = vmatprep.subr.bf16.mxu0 0
      %1488 = vmatpush1.bf16.msra.mxu0 0
      %1489 = vmatprep.subr.bf16.mxu0 0
      %1490 = vmatpush1.bf16.msra.mxu0 0
      %1491 = vmatprep.subr.bf16.mxu0 0
      %1492 = vmatpush1.bf16.msra.mxu0 0
      %1493 = vmatprep.subr.bf16.mxu0 0
      %1494 = vmatpush1.bf16.msra.mxu0 0
      %1495 = vmatprep.subr.bf16.mxu0 0
      %1496 = vmatpush1.bf16.msra.mxu0 0
      %1497 = vmatprep.subr.bf16.mxu0 0
      %1498 = vmatpush1.bf16.msra.mxu0 0
      %1499 = vmatprep.mubr.bf16.mxu0 0
      %1500 = vmatmul.mubr.bf16.gmra.mrb[0].mxu0 %v1415
      %v1501 = vpop.f32.mrb[0].mxu0
      %v1502 = vadd.f32 0.0, %v1501
      %v1503 = vpop.f32.mrb[0].mxu0
      %v1504 = vpop.f32.mrb[0].mxu0
      %v1505 = vadd.f32 0.0, %v1504
      %v1506 = vpop.f32.mrb[0].mxu0
      %1507 = vmatprep.mubr.bf16.mxu0 0
      %1508 = vmatmul.mubr.bf16.gmra.mrb[0].mxu0 %v1416
      %v1509 = vpop.f32.mrb[0].mxu0
      %v1510 = vadd.f32 0.0, %v1509
      %v1511 = vpop.f32.mrb[0].mxu0
      %v1512 = vpop.f32.mrb[0].mxu0
      %v1513 = vadd.f32 0.0, %v1512
      %v1514 = vpop.f32.mrb[0].mxu0
      %1515 = vdwg.mxu0
      %v1516 = vadd.f32 %v1326, %v1502
      %v1517 = vadd.f32 %v1327, %v1505
      %v1518 = vadd.f32 %v1328, %v1510
      %v1519 = vadd.f32 %v1329, %v1513
      %v1520 = vld [vmem:[%s1195] sm:$0xe]
      %v1521 = vld [vmem:[%s1195 + $0x8] sm:$0xe]
      %v1522 = vld [vmem:[%s1195 + $0x10] sm:$0xe]
      %v1523 = vld [vmem:[%s1195 + $0x18] sm:$0xe]
      %v1532 = vrot.slane %v1520, 5
      %v1533 = vrot.slane %v1532, 4
      %v1534 = vrot.slane %v1331, 5
      %v1535 = vsel %vm573, %v1533, %v1534
      %v1536 = vrot.slane %v1521, 5
      %v1537 = vrot.slane %v1536, 4
      %v1538 = vrot.slane %v1333, 5
      %v1539 = vsel %vm573, %v1537, %v1538
      %v1540 = vrot.slane %v1522, 5
      %v1541 = vrot.slane %v1540, 4
      %v1542 = vrot.slane %v1335, 5
      %v1543 = vsel %vm573, %v1541, %v1542
      %v1544 = vrot.slane %v1523, 5
      %v1545 = vrot.slane %v1544, 4
      %v1546 = vrot.slane %v1337, 5
      %v1547 = vsel %vm573, %v1545, %v1546
      %s1548 = scalar_lea.vmem %s1, 512
      %v1549 = vld [vmem:[%s1548] sm:$0xf]
      %v1550 = vld [vmem:[%s1548 + $0x4] sm:$0xf]
      %v1551 = vld [vmem:[%s1548 + $0x8] sm:$0xf]
      %v1552 = vld [vmem:[%s1548 + $0xc] sm:$0xf]
      %v1553 = vld [vmem:[%s1548 + $0x10] sm:$0xf]
      %v1554 = vld [vmem:[%s1548 + $0x14] sm:$0xf]
      %v1555 = vld [vmem:[%s1548 + $0x18] sm:$0xf]
      %v1556 = vld [vmem:[%s1548 + $0x1c] sm:$0xf]
      %v1557 = vld [vmem:[%s1548 + $0x20] sm:$0xf]
      %v1558 = vld [vmem:[%s1548 + $0x24] sm:$0xf]
      %v1559 = vld [vmem:[%s1548 + $0x28] sm:$0xf]
      %v1560 = vld [vmem:[%s1548 + $0x2c] sm:$0xf]
      %v1561 = vld [vmem:[%s1548 + $0x30] sm:$0xf]
      %v1562 = vld [vmem:[%s1548 + $0x34] sm:$0xf]
      %v1563 = vld [vmem:[%s1548 + $0x38] sm:$0xf]
      %v1564 = vld [vmem:[%s1548 + $0x3c] sm:$0xf]
      %v1565 = vunpack.c.l.b16 %v1535
      %v1566 = vunpack.c.l.b16 %v1539
      %v1567 = vunpack.c.l.b16 %v1543
      %v1568 = vunpack.c.l.b16 %v1547
      %v1569 = vpack.c.b16 %v1566, %v1565
      %v1570 = vpack.c.b16 %v1568, %v1567
      %v1589 = vunpack.c.l.b16 %v1549
      %v1590 = vunpack.c.l.b16 %v1550
      %v1591 = vunpack.c.l.b16 %v1551
      %v1592 = vunpack.c.l.b16 %v1552
      %v1593 = vunpack.c.l.b16 %v1553
      %v1594 = vunpack.c.l.b16 %v1554
      %v1595 = vunpack.c.l.b16 %v1555
      %v1596 = vunpack.c.l.b16 %v1556
      %v1597 = vunpack.c.l.b16 %v1557
      %v1598 = vunpack.c.l.b16 %v1558
      %v1599 = vunpack.c.l.b16 %v1559
      %v1600 = vunpack.c.l.b16 %v1560
      %v1601 = vunpack.c.l.b16 %v1561
      %v1602 = vunpack.c.l.b16 %v1562
      %v1603 = vunpack.c.l.b16 %v1563
      %v1604 = vunpack.c.l.b16 %v1564
      %v1605 = vpack.c.b16 %v1590, %v1589
      %v1606 = vpack.c.b16 %v1592, %v1591
      %v1607 = vpack.c.b16 %v1594, %v1593
      %v1608 = vpack.c.b16 %v1596, %v1595
      %v1609 = vpack.c.b16 %v1598, %v1597
      %v1610 = vpack.c.b16 %v1600, %v1599
      %v1611 = vpack.c.b16 %v1602, %v1601
      %v1612 = vpack.c.b16 %v1604, %v1603
      %1621 = vmatprep.subr.bf16.mxu0 0
      %1622 = vmatpush1.bf16.msra.mxu0 %v1605
      %1623 = vmatprep.subr.bf16.mxu0 0
      %1624 = vmatpush1.bf16.msra.mxu0 %v1606
      %1625 = vmatprep.subr.bf16.mxu0 0
      %1626 = vmatpush1.bf16.msra.mxu0 %v1607
      %1627 = vmatprep.subr.bf16.mxu0 0
      %1628 = vmatpush1.bf16.msra.mxu0 %v1608
      %1629 = vmatprep.subr.bf16.mxu0 0
      %1630 = vmatpush1.bf16.msra.mxu0 %v1609
      %1631 = vmatprep.subr.bf16.mxu0 0
      %1632 = vmatpush1.bf16.msra.mxu0 %v1610
      %1633 = vmatprep.subr.bf16.mxu0 0
      %1634 = vmatpush1.bf16.msra.mxu0 %v1611
      %1635 = vmatprep.subr.bf16.mxu0 0
      %1636 = vmatpush1.bf16.msra.mxu0 %v1612
      %1637 = vmatprep.subr.bf16.mxu0 0
      %1638 = vmatpush1.bf16.msra.mxu0 0
      %1639 = vmatprep.subr.bf16.mxu0 0
      %1640 = vmatpush1.bf16.msra.mxu0 0
      %1641 = vmatprep.subr.bf16.mxu0 0
      %1642 = vmatpush1.bf16.msra.mxu0 0
      %1643 = vmatprep.subr.bf16.mxu0 0
      %1644 = vmatpush1.bf16.msra.mxu0 0
      %1645 = vmatprep.subr.bf16.mxu0 0
      %1646 = vmatpush1.bf16.msra.mxu0 0
      %1647 = vmatprep.subr.bf16.mxu0 0
      %1648 = vmatpush1.bf16.msra.mxu0 0
      %1649 = vmatprep.subr.bf16.mxu0 0
      %1650 = vmatpush1.bf16.msra.mxu0 0
      %1651 = vmatprep.subr.bf16.mxu0 0
      %1652 = vmatpush1.bf16.msra.mxu0 0
      %1653 = vmatprep.mubr.bf16.mxu0 0
      %1654 = vmatmul.mubr.bf16.gmra.mrb[0].mxu0 %v1569
      %v1655 = vpop.f32.mrb[0].mxu0
      %v1656 = vadd.f32 0.0, %v1655
      %v1657 = vpop.f32.mrb[0].mxu0
      %v1658 = vpop.f32.mrb[0].mxu0
      %v1659 = vadd.f32 0.0, %v1658
      %v1660 = vpop.f32.mrb[0].mxu0
      %1661 = vmatprep.mubr.bf16.mxu0 0
      %1662 = vmatmul.mubr.bf16.gmra.mrb[0].mxu0 %v1570
      %v1663 = vpop.f32.mrb[0].mxu0
      %v1664 = vadd.f32 0.0, %v1663
      %v1665 = vpop.f32.mrb[0].mxu0
      %v1666 = vpop.f32.mrb[0].mxu0
      %v1667 = vadd.f32 0.0, %v1666
      %v1668 = vpop.f32.mrb[0].mxu0
      %1669 = vdwg.mxu0
      %v1670 = vadd.f32 %v1516, %v1656
      %v1671 = vadd.f32 %v1517, %v1659
      %v1672 = vadd.f32 %v1518, %v1664
      %v1673 = vadd.f32 %v1519, %v1667
      %v1674 = vld [vmem:[%s2] sm:$0x1]
      %v1676 = vlaneseq
      %v1677 = vshrl.u32 %v1676, 7
      %v1678 = vsub.s32 0, %v1677
      %v1679 = vrot.slane %v1674, %v1678
      %v1681 = vadd.f32 %v1670, %v1679
      %v1682 = vadd.f32 %v1671, %v1679
      %v1683 = vadd.f32 %v1672, %v1679
      %v1684 = vadd.f32 %v1673, %v1679
      %p1685 = scmp.eq.s32.totalorder %s21, 0
      // Predicated region
      $region33: #{basic_block_forward.4} parent=31 // pred_check
        %p1686 = pneg %p1685
      $region34: #{basic_block_forward.4} parent=31 // pred_check_branch
        %1688 = sbr.rel (%p1686) target = $region36
      $region35: #{basic_block_forward.4} parent=31 // pred_region
        %1689 = vst [vmem:[%s243] sm:$0x1] 0.0
      $region36: #{basic_block_forward.4} parent=31 // pred_fallthru
        _
      %v1690 = vld [vmem:[%s243] sm:$0x1]
      %v1691 = vadd.f32 %v1681, %v1682
      %v1692 = vadd.f32 %v1691, %v1683
      %v1693 = vadd.f32 %v1692, %v1684
      %v1694 = vrot.slane %v1693, 4
      %v1695 = vadd.f32 %v1693, %v1694
      %v1696 = vrot.slane %v1695, 2
      %v1697 = vadd.f32 %v1695, %v1696
      %v1698 = vrot.slane %v1697, 1
      %v1699 = vadd.f32 %v1697, %v1698
      %v1700 = vadd.f32 %v1690, %v1699
      %1701 = vst [vmem:[%s243] sm:$0x1] %v1700
      %v1702 = vpack.c.bf16 %v1681, %v1681
      %v1703 = vpack.c.bf16 %v1682, %v1682
      %v1704 = vpack.c.bf16 %v1683, %v1683
      %v1705 = vpack.c.bf16 %v1684, %v1684
      %1706 = vst [vmem:[%s239] sm:$0xf] %v1702
      %1707 = vst [vmem:[%s239 + $0x4] sm:$0xf] %v1703
      %1708 = vst [vmem:[%s239 + $0x8] sm:$0xf] %v1704
      %1709 = vst [vmem:[%s239 + $0xc] sm:$0xf] %v1705
      %s1710 = smul.u32 4, %s21
      %p1711 = scmp.lt.s32.totalorder %s20, 1
      %s1712 = scalar_select %p1711, %s20, 1
      %p1713 = scmp.lt.s32.totalorder %s1710, 7
      %s1714 = scalar_select %p1713, %s1710, 7
      %s1715 = smul.addr %s1712, 8
      %s1716 = sadd.s32 %s1714, %s1715
      %s1717 = smul.addr %s1716, 4
      %s1718 = scalar_lea.vmem %s3, %s1717
      %p1719 = scmp.lt.s32.totalorder %s20, 1
      %s1720 = scalar_select %p1719, %s20, 1
      %s1721 = scalar_lea.vmem %s4, %s1720
      // Predicated region
      $region37: #{basic_block_forward.4} parent=31 // pred_check
        %p1722 = pneg %p118
      $region38: #{basic_block_forward.4} parent=31 // pred_check_branch
        %1724 = sbr.rel (%p1722) target = $region40
      $region39: #{basic_block_forward.4} parent=31 // pred_region
        %s1725 = smul.u32 4, %s21
      $region40: #{basic_block_forward.4} parent=31 // pred_fallthru
        _
      // Predicated region
      $region41: #{basic_block_forward.4} parent=31 // pred_check
        %p1726 = pneg %p144
      $region42: #{basic_block_forward.4} parent=31 // pred_check_branch
        %1728 = sbr.rel (%p1726) target = $region44
      $region43: #{basic_block_forward.4} parent=31 // pred_region
        _
      $region44: #{basic_block_forward.4} parent=31 // pred_fallthru
        _
    $region32: #{basic_block_forward.4} parent=5 // pred_fallthru
      _
    %p1729 = scmp.le.s32.totalorder 2, %s11
    // Predicated region
    $region45: #{basic_block_forward.4} parent=5 // pred_check
      %p1730 = pneg %p1729
    $region46: #{basic_block_forward.4} parent=5 // pred_check_branch
      %1732 = sbr.rel (%p1730) target = $region48
    $region47: #{basic_block_forward.4} parent=5 // pred_region
      %s1733 = ssub.s32 %s11, 2
      // Predicated region
      $region49: #{basic_block_forward.4} parent=47 // pred_check
        %p1734 = pneg %p124
      $region50: #{basic_block_forward.4} parent=47 // pred_check_branch
        %1736 = sbr.rel (%p1734) target = $region52
      $region51: #{basic_block_forward.4} parent=47 // pred_region
        %s1737 = smul.u32 4, %s23
        %p1738 = scmp.lt.s32.totalorder %s22, 1
        %s1739 = scalar_select %p1738, %s22, 1
        %p1740 = scmp.lt.s32.totalorder %s1737, 7
        %s1741 = scalar_select %p1740, %s1737, 7
        %s1742 = smul.addr %s1739, 8
        %s1743 = sadd.s32 %s1741, %s1742
        %s1744 = smul.addr %s1743, 4
        %s1745 = scalar_lea.vmem %s3, %s1744
      $region52: #{basic_block_forward.4} parent=47 // pred_fallthru
        _
      // Predicated region
      $region53: #{basic_block_forward.4} parent=47 // pred_check
        %p1746 = pneg %p150
      $region54: #{basic_block_forward.4} parent=47 // pred_check_branch
        %1748 = sbr.rel (%p1746) target = $region56
      $region55: #{basic_block_forward.4} parent=47 // pred_region
        %p1749 = scmp.lt.s32.totalorder %s22, 1
        %s1750 = scalar_select %p1749, %s22, 1
        %s1751 = scalar_lea.vmem %s4, %s1750
      $region56: #{basic_block_forward.4} parent=47 // pred_fallthru
        _
    $region48: #{basic_block_forward.4} parent=5 // pred_fallthru
      _
  $region6: #{basic_block_forward.4} parent=0 // loop_footer
    %s15 = sadd.s32 1, %s11
  $region7: #{basic_block_forward.4} parent=0 // loop_footer_branch
    %10 = sbr.rel target = $region3
  $region8: #{basic_block_forward.4} parent=0 // loop_exit
    _

</llo_original>
